<compile_context>
chip_gen: v7x
topology: tpu7x:2x2x1
jax: 0.10.0
libtpu: 0.0.40
codegen_flags: <defaults>
</compile_context>

<pallas_src>
import functools

import jax
import jax.numpy as jnp
from jax.experimental import pallas as pl
from jax.experimental.pallas import tpu as pltpu

_BN_EPS = 1e-5


def _vmem_spec():
    return pl.BlockSpec(memory_space=pltpu.MemorySpace.VMEM)


# ---------------------------------------------------------------------------
# Host-side (one-time) layout / weight preparation
# ---------------------------------------------------------------------------
def _space_to_depth(x_nhwc):
    """(N,H,W,C) -> (N,H/2,W/2,4C); folds a stride-2 conv into a stride-1 conv."""
    n, h, w, c = x_nhwc.shape
    x = x_nhwc.reshape(n, h // 2, 2, w // 2, 2, c)
    x = jnp.transpose(x, (0, 1, 3, 2, 4, 5))
    return x.reshape(n, h // 2, w // 2, 4 * c)


def _conv_s2_equiv_weight(w):
    """Conv2d (Cout,Cin,k,k) stride 2, even k -> stride-1 conv weight on the
    space-to-depth input: (Cout, 4*Cin, k/2, k/2)."""
    cout, cin, k, _ = w.shape
    kk = k // 2
    wr = w.reshape(cout, cin, kk, 2, kk, 2)         # (co, ci, qa, di, qb, dj)
    wr = jnp.transpose(wr, (0, 3, 5, 1, 2, 4))      # (co, di, dj, ci, qa, qb)
    return wr.reshape(cout, 4 * cin, kk, kk)


def _convT_s1_equiv_weight(wt):
    """ConvTranspose2d (Cin,Cout,k,k) stride 1 -> equivalent regular conv weight
    (Cout,Cin,k,k) (spatially flipped) on the (k-1)-zero-padded input."""
    return jnp.transpose(wt[:, :, ::-1, ::-1], (1, 0, 2, 3))


def _convT_s2_equiv_weight(wt):
    """ConvTranspose2d (Cin,Cout,k,k) stride 2, even k -> sub-pixel equivalent conv
    weight (4*Cout, Cin, k/2, k/2); out-channel order (rh, rw, co)."""
    cin, cout, k, _ = wt.shape
    kk = k // 2
    wr = wt.reshape(cin, cout, kk, 2, kk, 2)        # (ci, co, a, rh, b, rw)
    wr = wr[:, :, ::-1, :, ::-1, :]                 # index by (qh, rh, qw, rw)
    wr = jnp.transpose(wr, (3, 5, 1, 0, 2, 4))      # (rh, rw, co, ci, qh, qw)
    return wr.reshape(4 * cout, cin, kk, kk)


def _conv_row_mats(w_conv, w_in_pad):
    """Conv weight (Cout,Cin,kh,kw) -> kh block-Toeplitz row matrices of shape
    (W_in_pad*Cin, W_out*Cout): one whole output row per matmul row."""
    cout, cin, kh, kw = w_conv.shape
    w_out = w_in_pad - kw + 1
    zeros = jnp.zeros((cin, cout), w_conv.dtype)
    mats = []
    for i in range(kh):
        cols = []
        for wo in range(w_out):
            blocks = []
            for wi in range(w_in_pad):
                j = wi - wo
                blocks.append(jnp.transpose(w_conv[:, :, i, j]) if 0 <= j < kw else zeros)
            cols.append(jnp.concatenate(blocks, axis=0))        # (W_in_pad*Cin, Cout)
        mats.append(jnp.concatenate(cols, axis=1))              # (W_in_pad*Cin, W_out*Cout)
    return jnp.stack(mats, axis=0)                               # (kh, ., .)


def _fold_matrix(w_out, c_eff, c_bn):
    """0/1 matrix (W_out*c_eff, c_bn) that folds per-(w, channel-group) columns to
    per-BN-channel columns (and, transposed, broadcasts scale/shift back)."""
    eye = jnp.eye(c_bn, dtype=jnp.float32)
    block = jnp.tile(eye, (c_eff // c_bn, 1))
    return jnp.tile(block, (w_out, 1))


def _codebook_row_mat(codebook, w_lat):
    """Block-diagonal codebook expansion (w_lat*D, w_lat*Kcb) so the whole latent
    row-slab hits the codebook in one matmul."""
    kcb, d = codebook.shape
    cbt = jnp.transpose(codebook)                   # (D, Kcb)
    zeros = jnp.zeros((d, kcb), codebook.dtype)
    cols = []
    for w in range(w_lat):
        blocks = [cbt if wi == w else zeros for wi in range(w_lat)]
        cols.append(jnp.concatenate(blocks, axis=0))
    return jnp.concatenate(cols, axis=1)


# ---------------------------------------------------------------------------
# Fused VQ-VAE kernel (encoder + quantizer + decoder in one pallas_call)
# ---------------------------------------------------------------------------
def _build_kernel(n_b, plans, ne, kcb, d_lat):
    n_layers = len(plans)
    h_lat = plans[ne - 1]["h"]
    w_lat = plans[ne - 1]["w"]

    def kernel(*refs):
        pos = 0
        x_ref = refs[pos]; pos += 1
        layer_refs = [refs[pos + 4 * i: pos + 4 * i + 4] for i in range(n_layers)]
        pos += 4 * n_layers
        ew_ref, e2_ref = refs[pos], refs[pos + 1]; pos += 2
        dec_out_ref, idx_ref, loss_ref = refs[pos], refs[pos + 1], refs[pos + 2]; pos += 3
        act_refs = list(refs[pos:])

        # Zero ONLY the padding ring of padded scratches (interior is overwritten);
        # the zero ring IS the conv-transpose "full" padding.
        for lp, act in zip(plans[:-1], act_refs):
            pad = lp["pad"]
            if pad == 0:
                continue
            rows_i = lp["h"] * n_b
            cols_i = lp["w"] * lp["c_eff"]
            pr = pad * n_b
            pc = pad * lp["c_eff"]
            nrow, ncol = act.shape
            act[0:pr, :] = jnp.zeros((pr, ncol), jnp.float32)
            act[pr + rows_i:nrow, :] = jnp.zeros((nrow - pr - rows_i, ncol), jnp.float32)
            act[pr:pr + rows_i, 0:pc] = jnp.zeros((rows_i, pc), jnp.float32)
            act[pr:pr + rows_i, pc + cols_i:ncol] = jnp.zeros(
                (rows_i, ncol - pc - cols_i), jnp.float32)

        src = x_ref
        for li, lp in enumerate(plans):
            b_ref, f_ref, g_ref, be_ref = layer_refs[li]
            m_rows = lp["h"] * n_b
            n_cols = lp["w"] * lp["c_eff"]

            # ---- one accumulated matmul chain per layer (kh dots, whole rows) ----
            y = jnp.dot(src[0:m_rows, :], b_ref[0], preferred_element_type=jnp.float32)
            for i in range(1, lp["kh"]):
                y = y + jnp.dot(src[i * n_b: i * n_b + m_rows, :], b_ref[i],
                                preferred_element_type=jnp.float32)

            # ---- single-reduction train-mode BatchNorm + ReLU (no serial chain) ----
            fold = f_ref[...]
            s_c = jnp.dot(jnp.sum(y, axis=0, keepdims=True), fold,
                          preferred_element_type=jnp.float32)
            q_c = jnp.dot(jnp.sum(y * y, axis=0, keepdims=True), fold,
                          preferred_element_type=jnp.float32)
            count = float(lp["count"])
            mean = s_c / count
            var = jnp.maximum(q_c / count - mean * mean, 0.0)
            inv = jax.lax.rsqrt(var + _BN_EPS)
            scale = g_ref[...] * inv
            shift = be_ref[...] - mean * scale
            scale_w = jax.lax.dot_general(scale, fold, (((1,), (1,)), ((), ())),
                                          preferred_element_type=jnp.float32)
            shift_w = jax.lax.dot_general(shift, fold, (((1,), (1,)), ((), ())),
                                          preferred_element_type=jnp.float32)
            out = jnp.maximum(y * scale_w + shift_w, 0.0)

            if li < n_layers - 1:
                dst = act_refs[li]
                pr = lp["pad"] * n_b
                pc = lp["pad"] * lp["c_eff"]
                dst[pr:pr + m_rows, pc:pc + n_cols] = out       # one interior store
                src = dst
            else:
                dec_out_ref[...] = out                          # lane-dense slab, one store

            if li == ne - 1:
                # -------------------- quantizer on the encoder output --------------------
                lat = out                                        # (h_lat*N, w_lat*D)
                xe = jnp.dot(lat, ew_ref[...], preferred_element_type=jnp.float32)
                dist = e2_ref[...] - 2.0 * xe                    # ||x||^2 dropped (row const)
                col = jax.lax.broadcasted_iota(jnp.int32, (m_rows, w_lat), 1)
                idx_mat = jnp.zeros((m_rows, w_lat), jnp.int32)
                min_sum = jnp.zeros((), jnp.float32)
                for w in range(w_lat):
                    blk = dist[:, w * kcb:(w + 1) * kcb]
                    minv = jnp.min(blk, axis=-1, keepdims=True)
                    lanes = jax.lax.broadcasted_iota(jnp.int32, blk.shape, 1)
                    idx_w = jnp.min(jnp.where(blk <= minv, lanes, kcb),
                                    axis=-1, keepdims=True)     # first argmin
                    idx_mat = jnp.where(col == w, idx_w, idx_mat)
                    min_sum = min_sum + jnp.sum(minv)
                idx_ref[...] = idx_mat                           # one int32 block store
                total = jnp.maximum(jnp.sum(lat * lat) + min_sum, 0.0)
                loss_ref[0] = total / float(n_b * h_lat * w_lat * d_lat)

    return kernel


# ---------------------------------------------------------------------------
# Full VQ-VAE forward (host wrapper around the single fused kernel)
# ---------------------------------------------------------------------------
def vqvae_forward(params, x, config):
    n_b, _c_in, h_in, w_in = x.shape
    enc_params = params["encoder"]
    dec_params = params["decoder"]
    codebook = params["codebook"]

    k_enc = list(config["kernel_size"])
    s_enc = list(config["kernel_strides"])
    k_dec = list(config["transpose_kernel_size"])
    s_dec = list(config["transpose_kernel_strides"])
    ne, nd = len(k_enc), len(k_dec)

    # Supported structure (matches the reference VQ-VAE config):
    #   encoder: first conv stride 1 or 2 (even kernel if 2), remaining convs stride 1
    #   decoder: stride-1 conv-transposes, then a final stride-2 (even kernel) one
    # TODO(synk): other stride layouts would need extra in-kernel plumbing.
    assert s_enc[0] in (1, 2) and all(s == 1 for s in s_enc[1:])
    assert s_enc[0] == 1 or (k_enc[0] % 2 == 0 and h_in % 2 == 0 and w_in % 2 == 0)
    assert nd >= 1 and all(s == 1 for s in s_dec[:-1])
    assert s_dec[-1] == 2 and k_dec[-1] % 2 == 0

    def dec_in_pad(j):   # padding decoder layer j needs on ITS input activation
        return (k_dec[j] - 1) if j < nd - 1 else (k_dec[j] // 2 - 1)

    # ---- one-time boundary layout: NCHW -> row-slab (rows = h*N + n, cols = w*C + c) ----
    x_nhwc = jnp.transpose(x, (0, 2, 3, 1))
    x_p = _space_to_depth(x_nhwc) if s_enc[0] == 2 else x_nhwc
    h_pad, w_pad, c_cur = x_p.shape[1], x_p.shape[2], x_p.shape[3]
    x2d = jnp.transpose(x_p, (1, 0, 2, 3)).reshape(h_pad * n_b, w_pad * c_cur)

    kernel_inputs = [x2d]
    plans = []
    state = {"h": h_pad, "w": w_pad, "c": c_cur}

    def add_layer(w_conv, gamma, beta, c_bn, out_pad, count_mult):
        c_eff, c_in_eff, kh, kw = w_conv.shape
        assert c_in_eff == state["c"]
        h_out, w_out = state["h"] - kh + 1, state["w"] - kw + 1
        b_mats = _conv_row_mats(w_conv, state["w"])
        fold = _fold_matrix(w_out, c_eff, c_bn)
        plans.append(dict(kh=kh, h=h_out, w=w_out, c_eff=c_eff, c_bn=c_bn, pad=out_pad,
                          count=n_b * h_out * w_out * count_mult))
        kernel_inputs.extend([b_mats, fold,
                              gamma.reshape(1, c_bn), beta.reshape(1, c_bn)])
        state["h"], state["w"], state["c"] = h_out + 2 * out_pad, w_out + 2 * out_pad, c_eff

    # -------- encoder --------
    for i in range(ne):
        wgt, _bias, gamma, beta = enc_params[i]      # bias: exact no-op under train-mode BN
        cout = wgt.shape[0]
        w_conv = _conv_s2_equiv_weight(wgt) if (i == 0 and s_enc[0] == 2) else wgt
        out_pad = 0 if i < ne - 1 else dec_in_pad(0)
        add_layer(w_conv, gamma, beta, cout, out_pad, 1)

    h_lat, w_lat, d_lat = plans[ne - 1]["h"], plans[ne - 1]["w"], plans[ne - 1]["c_eff"]
    assert codebook.shape[1] == d_lat

    # -------- decoder (fed the ENCODER output, exactly as in the reference) --------
    for j in range(nd):
        wgt, _bias, gamma, beta = dec_params[j]
        cout = wgt.shape[1]
        if j < nd - 1:
            add_layer(_convT_s1_equiv_weight(wgt), gamma, beta, cout, dec_in_pad(j + 1), 1)
        else:
            add_layer(_convT_s2_equiv_weight(wgt), gamma, beta, cout, 0, 4)

    # -------- quantizer operands --------
    kcb = codebook.shape[0]
    e2 = jnp.sum(codebook * codebook, axis=-1).reshape(1, kcb)
    kernel_inputs.extend([_codebook_row_mat(codebook, w_lat), jnp.tile(e2, (1, w_lat))])

    lp_last = plans[-1]
    hr, wr, c4, c_last = lp_last["h"], lp_last["w"], lp_last["c_eff"], lp_last["c_bn"]

    out_shape = (
        jax.ShapeDtypeStruct((hr * n_b, wr * c4), jnp.float32),       # lane-dense slab
        jax.ShapeDtypeStruct((h_lat * n_b, w_lat), jnp.int32),
        jax.ShapeDtypeStruct((1,), jnp.float32),
    )
    scratch_shapes = [
        pltpu.VMEM(((lp["h"] + 2 * lp["pad"]) * n_b,
                    (lp["w"] + 2 * lp["pad"]) * lp["c_eff"]), jnp.float32)
        for lp in plans[:-1]
    ]

    kernel = _build_kernel(n_b, plans, ne, kcb, d_lat)

    dec_out, idx, vq_mse = pl.pallas_call(
        kernel,
        out_shape=out_shape,
        in_specs=[_vmem_spec() for _ in kernel_inputs],
        out_specs=(
            _vmem_spec(),
            _vmem_spec(),
            pl.BlockSpec(memory_space=pltpu.MemorySpace.SMEM),
        ),
        scratch_shapes=scratch_shapes,
        compiler_params=pltpu.CompilerParams(vmem_limit_bytes=32 * 1024 * 1024),
    )(*kernel_inputs)

    # ---- one-time boundary layout: un-interleave residues + rows -> NCHW ----
    d = dec_out.reshape(hr, n_b, wr, 2, 2, c_last)
    decoder_output = jnp.transpose(d, (1, 5, 0, 3, 2, 4)).reshape(
        n_b, c_last, 2 * hr, 2 * wr)
    min_index = jnp.transpose(idx.reshape(h_lat, n_b, w_lat), (1, 0, 2)).reshape(
        n_b, h_lat * w_lat)

    mse = vq_mse[0]
    cookbook_loss = mse                     # stop-gradients only differ in backward
    comitment_loss = mse
    quantizer_loss = cookbook_loss + config["beta"] * comitment_loss

    return {
        "decoder_output": decoder_output,
        "cookbook": cookbook_loss,
        "comitment": comitment_loss,
        "quantizer_loss": quantizer_loss,
        "min_index": min_index,
    }


# ---------------------------------------------------------------------------
# Deterministic parameter init (PyTorch layouts; bias kept for parity, unused)
# ---------------------------------------------------------------------------
def init_params(key, config):
    keys = iter(jax.random.split(key, 64))
    enc = []
    for i in range(len(config["kernel_size"])):
        cin, cout = config["in_channels"][i], config["in_channels"][i + 1]
        k = config["kernel_size"][i]
        w = jax.random.normal(next(keys), (cout, cin, k, k), jnp.float32) * 0.1
        b = jax.random.normal(next(keys), (cout,), jnp.float32) * 0.01
        enc.append((w, b, jnp.ones((cout,), jnp.float32), jnp.zeros((cout,), jnp.float32)))
    dec = []
    for i in range(len(config["transpose_kernel_size"])):
        cin = config["transposebn_channels"][i]
        cout = config["transposebn_channels"][i + 1]
        k = config["transpose_kernel_size"][i]
        w = jax.random.normal(next(keys), (cin, cout, k, k), jnp.float32) * 0.1
        b = jax.random.normal(next(keys), (cout,), jnp.float32) * 0.01
        dec.append((w, b, jnp.ones((cout,), jnp.float32), jnp.zeros((cout,), jnp.float32)))
    codebook = jax.random.normal(
        next(keys), (config["codebook_size"], config["latent_dim"]), jnp.float32
    )
    return {"encoder": enc, "decoder": dec, "codebook": codebook}


if __name__ == "__main__":
    config = {
        "in_channels": [4, 8, 8],              # encoder channel progression
        "kernel_size": [4, 3],
        "kernel_strides": [2, 1],
        "transposebn_channels": [8, 8, 4],     # decoder channel progression
        "transpose_kernel_size": [3, 4],
        "transpose_kernel_strides": [1, 2],
        "latent_dim": 8,
        "codebook_size": 128,
        "beta": 0.2,
    }

    key = jax.random.PRNGKey(0)
    kp, kx = jax.random.split(key)
    params = init_params(kp, config)
    x = jax.random.normal(kx, (2, 4, 16, 16), jnp.float32)   # NCHW, as in PyTorch

    fwd = jax.jit(functools.partial(vqvae_forward, config=config))
    out = fwd(params, x)
    jax.block_until_ready(out)

    assert out["decoder_output"].shape == (2, 4, 16, 16)
    assert out["min_index"].shape == (2, 5 * 5)
    assert out["min_index"].dtype == jnp.int32

    print("KERNEL_OK")
</pallas_src>

<mosaic_0001>
module attributes {stable_mosaic.version = 11 : i64} {
  func.func @kernel(%arg0: memref<16x128xf32, #tpu.memory_space<vmem>>, %arg1: memref<2x128x56xf32, #tpu.memory_space<vmem>>, %arg2: memref<56x8xf32, #tpu.memory_space<vmem>>, %arg3: memref<1x8xf32, #tpu.memory_space<vmem>>, %arg4: memref<1x8xf32, #tpu.memory_space<vmem>>, %arg5: memref<3x56x40xf32, #tpu.memory_space<vmem>>, %arg6: memref<40x8xf32, #tpu.memory_space<vmem>>, %arg7: memref<1x8xf32, #tpu.memory_space<vmem>>, %arg8: memref<1x8xf32, #tpu.memory_space<vmem>>, %arg9: memref<3x72x56xf32, #tpu.memory_space<vmem>>, %arg10: memref<56x8xf32, #tpu.memory_space<vmem>>, %arg11: memref<1x8xf32, #tpu.memory_space<vmem>>, %arg12: memref<1x8xf32, #tpu.memory_space<vmem>>, %arg13: memref<2x72x128xf32, #tpu.memory_space<vmem>>, %arg14: memref<128x4xf32, #tpu.memory_space<vmem>>, %arg15: memref<1x4xf32, #tpu.memory_space<vmem>>, %arg16: memref<1x4xf32, #tpu.memory_space<vmem>>, %arg17: memref<40x640xf32, #tpu.memory_space<vmem>>, %arg18: memref<1x640xf32, #tpu.memory_space<vmem>>, %arg19: memref<16x128xf32, #tpu.memory_space<vmem>>, %arg20: memref<10x5xi32, #tpu.memory_space<vmem>>, %arg21: memref<1xf32, #tpu.memory_space<smem>>, %arg22: memref<14x56xf32, #tpu.memory_space<vmem>>, %arg23: memref<18x72xf32, #tpu.memory_space<vmem>>, %arg24: memref<18x72xf32, #tpu.memory_space<vmem>>) attributes {dimension_semantics = [], scalar_prefetch = 0 : i64, scratch_operands = 3 : i64, tpu.core_type = #tpu.core_type<tc>} {
    %cst = arith.constant 0.000000e+00 : f32
    %0 = vector.broadcast %cst : f32 to vector<4x72xf32>
    %c0 = arith.constant 0 : index
    %c0_0 = arith.constant 0 : index
    %1 = vector.load %arg23[%c0, %c0_0] : memref<18x72xf32, #tpu.memory_space<vmem>>, vector<4x72xf32>
    tpu.vector_store %arg23[%c0, %c0_0], %0 {strides = array<i32>} : memref<18x72xf32, #tpu.memory_space<vmem>>, vector<4x72xf32>,
    %cst_1 = arith.constant 0.000000e+00 : f32
    %2 = vector.broadcast %cst_1 : f32 to vector<4x72xf32>
    %c14 = arith.constant 14 : index
    %c0_2 = arith.constant 0 : index
    %3 = vector.load %arg23[%c14, %c0_2] : memref<18x72xf32, #tpu.memory_space<vmem>>, vector<4x72xf32>
    tpu.vector_store %arg23[%c14, %c0_2], %2 {strides = array<i32>} : memref<18x72xf32, #tpu.memory_space<vmem>>, vector<4x72xf32>,
    %cst_3 = arith.constant 0.000000e+00 : f32
    %4 = vector.broadcast %cst_3 : f32 to vector<10x16xf32>
    %c4 = arith.constant 4 : index
    %c0_4 = arith.constant 0 : index
    %5 = vector.load %arg23[%c4, %c0_4] : memref<18x72xf32, #tpu.memory_space<vmem>>, vector<10x16xf32>
    tpu.vector_store %arg23[%c4, %c0_4], %4 {strides = array<i32>} : memref<18x72xf32, #tpu.memory_space<vmem>>, vector<10x16xf32>,
    %cst_5 = arith.constant 0.000000e+00 : f32
    %6 = vector.broadcast %cst_5 : f32 to vector<10x16xf32>
    %c4_6 = arith.constant 4 : index
    %c56 = arith.constant 56 : index
    %7 = vector.load %arg23[%c4_6, %c56] : memref<18x72xf32, #tpu.memory_space<vmem>>, vector<10x16xf32>
    tpu.vector_store %arg23[%c4_6, %c56], %6 {strides = array<i32>} : memref<18x72xf32, #tpu.memory_space<vmem>>, vector<10x16xf32>,
    %cst_7 = arith.constant 0.000000e+00 : f32
    %8 = vector.broadcast %cst_7 : f32 to vector<2x72xf32>
    %c0_8 = arith.constant 0 : index
    %c0_9 = arith.constant 0 : index
    %9 = vector.load %arg24[%c0_8, %c0_9] : memref<18x72xf32, #tpu.memory_space<vmem>>, vector<2x72xf32>
    tpu.vector_store %arg24[%c0_8, %c0_9], %8 {strides = array<i32>} : memref<18x72xf32, #tpu.memory_space<vmem>>, vector<2x72xf32>,
    %cst_10 = arith.constant 0.000000e+00 : f32
    %10 = vector.broadcast %cst_10 : f32 to vector<2x72xf32>
    %c16 = arith.constant 16 : index
    %c0_11 = arith.constant 0 : index
    %11 = vector.load %arg24[%c16, %c0_11] : memref<18x72xf32, #tpu.memory_space<vmem>>, vector<2x72xf32>
    tpu.vector_store %arg24[%c16, %c0_11], %10 {strides = array<i32>} : memref<18x72xf32, #tpu.memory_space<vmem>>, vector<2x72xf32>,
    %cst_12 = arith.constant 0.000000e+00 : f32
    %12 = vector.broadcast %cst_12 : f32 to vector<14x8xf32>
    %c2 = arith.constant 2 : index
    %c0_13 = arith.constant 0 : index
    %13 = vector.load %arg24[%c2, %c0_13] : memref<18x72xf32, #tpu.memory_space<vmem>>, vector<14x8xf32>
    tpu.vector_store %arg24[%c2, %c0_13], %12 {strides = array<i32>} : memref<18x72xf32, #tpu.memory_space<vmem>>, vector<14x8xf32>,
    %cst_14 = arith.constant 0.000000e+00 : f32
    %14 = vector.broadcast %cst_14 : f32 to vector<14x8xf32>
    %c2_15 = arith.constant 2 : index
    %c64 = arith.constant 64 : index
    %15 = vector.load %arg24[%c2_15, %c64] : memref<18x72xf32, #tpu.memory_space<vmem>>, vector<14x8xf32>
    tpu.vector_store %arg24[%c2_15, %c64], %14 {strides = array<i32>} : memref<18x72xf32, #tpu.memory_space<vmem>>, vector<14x8xf32>,
    %c0_16 = arith.constant 0 : index
    %c0_17 = arith.constant 0 : index
    %16 = vector.load %arg0[%c0_16, %c0_17] : memref<16x128xf32, #tpu.memory_space<vmem>>, vector<14x128xf32>
    %c0_18 = arith.constant 0 : index
    %c0_19 = arith.constant 0 : index
    %c0_20 = arith.constant 0 : index
    %17 = vector.load %arg1[%c0_18, %c0_19, %c0_20] : memref<2x128x56xf32, #tpu.memory_space<vmem>>, vector<1x128x56xf32>
    %18 = vector.shape_cast %17 : vector<1x128x56xf32> to vector<128x56xf32>
    %cst_21 = arith.constant dense<0.000000e+00> : vector<14x56xf32>
    %19 = tpu.matmul %16, %18, %cst_21 {dimension_numbers = #tpu.dot_dimension_numbers<[1], [0], [0], [1], [0, 0, 1, 1], [], []>} : vector<14x128xf32>, vector<128x56xf32>, vector<14x56xf32> -> vector<14x56xf32>
    %c2_22 = arith.constant 2 : index
    %c0_23 = arith.constant 0 : index
    %20 = vector.load %arg0[%c2_22, %c0_23] : memref<16x128xf32, #tpu.memory_space<vmem>>, vector<14x128xf32>
    %c1 = arith.constant 1 : index
    %c0_24 = arith.constant 0 : index
    %c0_25 = arith.constant 0 : index
    %21 = vector.load %arg1[%c1, %c0_24, %c0_25] : memref<2x128x56xf32, #tpu.memory_space<vmem>>, vector<1x128x56xf32>
    %22 = vector.shape_cast %21 : vector<1x128x56xf32> to vector<128x56xf32>
    %cst_26 = arith.constant dense<0.000000e+00> : vector<14x56xf32>
    %23 = tpu.matmul %20, %22, %cst_26 {dimension_numbers = #tpu.dot_dimension_numbers<[1], [0], [0], [1], [0, 0, 1, 1], [], []>} : vector<14x128xf32>, vector<128x56xf32>, vector<14x56xf32> -> vector<14x56xf32>
    %24 = arith.addf %19, %23 : vector<14x56xf32>
    %c0_27 = arith.constant 0 : index
    %c0_28 = arith.constant 0 : index
    %25 = vector.load %arg2[%c0_27, %c0_28] : memref<56x8xf32, #tpu.memory_space<vmem>>, vector<56x8xf32>
    %cst_29 = arith.constant dense<0.000000e+00> : vector<56xf32>
    %26 = vector.multi_reduction <add>, %24, %cst_29 [0] : vector<14x56xf32> to vector<56xf32>
    %27 = vector.shape_cast %26 : vector<56xf32> to vector<1x56xf32>
    %cst_30 = arith.constant dense<0.000000e+00> : vector<1x8xf32>
    %28 = tpu.matmul %27, %25, %cst_30 {dimension_numbers = #tpu.dot_dimension_numbers<[1], [0], [0], [1], [0, 0, 1, 1], [], []>} : vector<1x56xf32>, vector<56x8xf32>, vector<1x8xf32> -> vector<1x8xf32>
    %29 = arith.mulf %24, %24 : vector<14x56xf32>
    %cst_31 = arith.constant dense<0.000000e+00> : vector<56xf32>
    %30 = vector.multi_reduction <add>, %29, %cst_31 [0] : vector<14x56xf32> to vector<56xf32>
    %31 = vector.shape_cast %30 : vector<56xf32> to vector<1x56xf32>
    %cst_32 = arith.constant dense<0.000000e+00> : vector<1x8xf32>
    %32 = tpu.matmul %31, %25, %cst_32 {dimension_numbers = #tpu.dot_dimension_numbers<[1], [0], [0], [1], [0, 0, 1, 1], [], []>} : vector<1x56xf32>, vector<56x8xf32>, vector<1x8xf32> -> vector<1x8xf32>
    %cst_33 = arith.constant 9.800000e+01 : f32
    %33 = vector.broadcast %cst_33 : f32 to vector<1x8xf32>
    %34 = arith.divf %28, %33 : vector<1x8xf32>
    %cst_34 = arith.constant 9.800000e+01 : f32
    %35 = vector.broadcast %cst_34 : f32 to vector<1x8xf32>
    %36 = arith.divf %32, %35 : vector<1x8xf32>
    %37 = arith.mulf %34, %34 : vector<1x8xf32>
    %38 = arith.subf %36, %37 : vector<1x8xf32>
    %cst_35 = arith.constant 0.000000e+00 : f32
    %39 = vector.broadcast %cst_35 : f32 to vector<1x8xf32>
    %40 = arith.maximumf %38, %39 : vector<1x8xf32>
    %cst_36 = arith.constant 9.99999974E-6 : f32
    %41 = vector.broadcast %cst_36 : f32 to vector<1x8xf32>
    %42 = arith.addf %40, %41 : vector<1x8xf32>
    %43 = math.rsqrt %42 : vector<1x8xf32>
    %c0_37 = arith.constant 0 : index
    %c0_38 = arith.constant 0 : index
    %44 = vector.load %arg3[%c0_37, %c0_38] : memref<1x8xf32, #tpu.memory_space<vmem>>, vector<1x8xf32>
    %45 = arith.mulf %44, %43 : vector<1x8xf32>
    %c0_39 = arith.constant 0 : index
    %c0_40 = arith.constant 0 : index
    %46 = vector.load %arg4[%c0_39, %c0_40] : memref<1x8xf32, #tpu.memory_space<vmem>>, vector<1x8xf32>
    %47 = arith.mulf %34, %45 : vector<1x8xf32>
    %48 = arith.subf %46, %47 : vector<1x8xf32>
    %cst_41 = arith.constant dense<0.000000e+00> : vector<1x56xf32>
    %49 = tpu.matmul %45, %25, %cst_41 {dimension_numbers = #tpu.dot_dimension_numbers<[1], [1], [0], [0], [0, 0, 1, 0], [], []>} : vector<1x8xf32>, vector<56x8xf32>, vector<1x56xf32> -> vector<1x56xf32>
    %cst_42 = arith.constant dense<0.000000e+00> : vector<1x56xf32>
    %50 = tpu.matmul %48, %25, %cst_42 {dimension_numbers = #tpu.dot_dimension_numbers<[1], [1], [0], [0], [0, 0, 1, 0], [], []>} : vector<1x8xf32>, vector<56x8xf32>, vector<1x56xf32> -> vector<1x56xf32>
    %51 = vector.broadcast %49 : vector<1x56xf32> to vector<14x56xf32>
    %52 = arith.mulf %24, %51 : vector<14x56xf32>
    %53 = vector.broadcast %50 : vector<1x56xf32> to vector<14x56xf32>
    %54 = arith.addf %52, %53 : vector<14x56xf32>
    %cst_43 = arith.constant 0.000000e+00 : f32
    %55 = vector.broadcast %cst_43 : f32 to vector<14x56xf32>
    %56 = arith.maximumf %54, %55 : vector<14x56xf32>
    %c0_44 = arith.constant 0 : index
    %c0_45 = arith.constant 0 : index
    %57 = vector.load %arg22[%c0_44, %c0_45] : memref<14x56xf32, #tpu.memory_space<vmem>>, vector<14x56xf32>
    tpu.vector_store %arg22[%c0_44, %c0_45], %56 {strides = array<i32>} : memref<14x56xf32, #tpu.memory_space<vmem>>, vector<14x56xf32>,
    %c0_46 = arith.constant 0 : index
    %c0_47 = arith.constant 0 : index
    %58 = vector.load %arg22[%c0_46, %c0_47] : memref<14x56xf32, #tpu.memory_space<vmem>>, vector<10x56xf32>
    %c0_48 = arith.constant 0 : index
    %c0_49 = arith.constant 0 : index
    %c0_50 = arith.constant 0 : index
    %59 = vector.load %arg5[%c0_48, %c0_49, %c0_50] : memref<3x56x40xf32, #tpu.memory_space<vmem>>, vector<1x56x40xf32>
    %60 = vector.shape_cast %59 : vector<1x56x40xf32> to vector<56x40xf32>
    %cst_51 = arith.constant dense<0.000000e+00> : vector<10x40xf32>
    %61 = tpu.matmul %58, %60, %cst_51 {dimension_numbers = #tpu.dot_dimension_numbers<[1], [0], [0], [1], [0, 0, 1, 1], [], []>} : vector<10x56xf32>, vector<56x40xf32>, vector<10x40xf32> -> vector<10x40xf32>
    %c2_52 = arith.constant 2 : index
    %c0_53 = arith.constant 0 : index
    %62 = vector.load %arg22[%c2_52, %c0_53] : memref<14x56xf32, #tpu.memory_space<vmem>>, vector<10x56xf32>
    %c1_54 = arith.constant 1 : index
    %c0_55 = arith.constant 0 : index
    %c0_56 = arith.constant 0 : index
    %63 = vector.load %arg5[%c1_54, %c0_55, %c0_56] : memref<3x56x40xf32, #tpu.memory_space<vmem>>, vector<1x56x40xf32>
    %64 = vector.shape_cast %63 : vector<1x56x40xf32> to vector<56x40xf32>
    %cst_57 = arith.constant dense<0.000000e+00> : vector<10x40xf32>
    %65 = tpu.matmul %62, %64, %cst_57 {dimension_numbers = #tpu.dot_dimension_numbers<[1], [0], [0], [1], [0, 0, 1, 1], [], []>} : vector<10x56xf32>, vector<56x40xf32>, vector<10x40xf32> -> vector<10x40xf32>
    %66 = arith.addf %61, %65 : vector<10x40xf32>
    %c4_58 = arith.constant 4 : index
    %c0_59 = arith.constant 0 : index
    %67 = vector.load %arg22[%c4_58, %c0_59] : memref<14x56xf32, #tpu.memory_space<vmem>>, vector<10x56xf32>
    %c2_60 = arith.constant 2 : index
    %c0_61 = arith.constant 0 : index
    %c0_62 = arith.constant 0 : index
    %68 = vector.load %arg5[%c2_60, %c0_61, %c0_62] : memref<3x56x40xf32, #tpu.memory_space<vmem>>, vector<1x56x40xf32>
    %69 = vector.shape_cast %68 : vector<1x56x40xf32> to vector<56x40xf32>
    %cst_63 = arith.constant dense<0.000000e+00> : vector<10x40xf32>
    %70 = tpu.matmul %67, %69, %cst_63 {dimension_numbers = #tpu.dot_dimension_numbers<[1], [0], [0], [1], [0, 0, 1, 1], [], []>} : vector<10x56xf32>, vector<56x40xf32>, vector<10x40xf32> -> vector<10x40xf32>
    %71 = arith.addf %66, %70 : vector<10x40xf32>
    %c0_64 = arith.constant 0 : index
    %c0_65 = arith.constant 0 : index
    %72 = vector.load %arg6[%c0_64, %c0_65] : memref<40x8xf32, #tpu.memory_space<vmem>>, vector<40x8xf32>
    %cst_66 = arith.constant dense<0.000000e+00> : vector<40xf32>
    %73 = vector.multi_reduction <add>, %71, %cst_66 [0] : vector<10x40xf32> to vector<40xf32>
    %74 = vector.shape_cast %73 : vector<40xf32> to vector<1x40xf32>
    %cst_67 = arith.constant dense<0.000000e+00> : vector<1x8xf32>
    %75 = tpu.matmul %74, %72, %cst_67 {dimension_numbers = #tpu.dot_dimension_numbers<[1], [0], [0], [1], [0, 0, 1, 1], [], []>} : vector<1x40xf32>, vector<40x8xf32>, vector<1x8xf32> -> vector<1x8xf32>
    %76 = arith.mulf %71, %71 : vector<10x40xf32>
    %cst_68 = arith.constant dense<0.000000e+00> : vector<40xf32>
    %77 = vector.multi_reduction <add>, %76, %cst_68 [0] : vector<10x40xf32> to vector<40xf32>
    %78 = vector.shape_cast %77 : vector<40xf32> to vector<1x40xf32>
    %cst_69 = arith.constant dense<0.000000e+00> : vector<1x8xf32>
    %79 = tpu.matmul %78, %72, %cst_69 {dimension_numbers = #tpu.dot_dimension_numbers<[1], [0], [0], [1], [0, 0, 1, 1], [], []>} : vector<1x40xf32>, vector<40x8xf32>, vector<1x8xf32> -> vector<1x8xf32>
    %cst_70 = arith.constant 5.000000e+01 : f32
    %80 = vector.broadcast %cst_70 : f32 to vector<1x8xf32>
    %81 = arith.divf %75, %80 : vector<1x8xf32>
    %cst_71 = arith.constant 5.000000e+01 : f32
    %82 = vector.broadcast %cst_71 : f32 to vector<1x8xf32>
    %83 = arith.divf %79, %82 : vector<1x8xf32>
    %84 = arith.mulf %81, %81 : vector<1x8xf32>
    %85 = arith.subf %83, %84 : vector<1x8xf32>
    %cst_72 = arith.constant 0.000000e+00 : f32
    %86 = vector.broadcast %cst_72 : f32 to vector<1x8xf32>
    %87 = arith.maximumf %85, %86 : vector<1x8xf32>
    %cst_73 = arith.constant 9.99999974E-6 : f32
    %88 = vector.broadcast %cst_73 : f32 to vector<1x8xf32>
    %89 = arith.addf %87, %88 : vector<1x8xf32>
    %90 = math.rsqrt %89 : vector<1x8xf32>
    %c0_74 = arith.constant 0 : index
    %c0_75 = arith.constant 0 : index
    %91 = vector.load %arg7[%c0_74, %c0_75] : memref<1x8xf32, #tpu.memory_space<vmem>>, vector<1x8xf32>
    %92 = arith.mulf %91, %90 : vector<1x8xf32>
    %c0_76 = arith.constant 0 : index
    %c0_77 = arith.constant 0 : index
    %93 = vector.load %arg8[%c0_76, %c0_77] : memref<1x8xf32, #tpu.memory_space<vmem>>, vector<1x8xf32>
    %94 = arith.mulf %81, %92 : vector<1x8xf32>
    %95 = arith.subf %93, %94 : vector<1x8xf32>
    %cst_78 = arith.constant dense<0.000000e+00> : vector<1x40xf32>
    %96 = tpu.matmul %92, %72, %cst_78 {dimension_numbers = #tpu.dot_dimension_numbers<[1], [1], [0], [0], [0, 0, 1, 0], [], []>} : vector<1x8xf32>, vector<40x8xf32>, vector<1x40xf32> -> vector<1x40xf32>
    %cst_79 = arith.constant dense<0.000000e+00> : vector<1x40xf32>
    %97 = tpu.matmul %95, %72, %cst_79 {dimension_numbers = #tpu.dot_dimension_numbers<[1], [1], [0], [0], [0, 0, 1, 0], [], []>} : vector<1x8xf32>, vector<40x8xf32>, vector<1x40xf32> -> vector<1x40xf32>
    %98 = vector.broadcast %96 : vector<1x40xf32> to vector<10x40xf32>
    %99 = arith.mulf %71, %98 : vector<10x40xf32>
    %100 = vector.broadcast %97 : vector<1x40xf32> to vector<10x40xf32>
    %101 = arith.addf %99, %100 : vector<10x40xf32>
    %cst_80 = arith.constant 0.000000e+00 : f32
    %102 = vector.broadcast %cst_80 : f32 to vector<10x40xf32>
    %103 = arith.maximumf %101, %102 : vector<10x40xf32>
    %c4_81 = arith.constant 4 : index
    %c16_82 = arith.constant 16 : index
    %104 = vector.load %arg23[%c4_81, %c16_82] : memref<18x72xf32, #tpu.memory_space<vmem>>, vector<10x40xf32>
    tpu.vector_store %arg23[%c4_81, %c16_82], %103 {strides = array<i32>} : memref<18x72xf32, #tpu.memory_space<vmem>>, vector<10x40xf32>,
    %c0_83 = arith.constant 0 : index
    %c0_84 = arith.constant 0 : index
    %105 = vector.load %arg17[%c0_83, %c0_84] : memref<40x640xf32, #tpu.memory_space<vmem>>, vector<40x640xf32>
    %cst_85 = arith.constant dense<0.000000e+00> : vector<10x640xf32>
    %106 = tpu.matmul %103, %105, %cst_85 {dimension_numbers = #tpu.dot_dimension_numbers<[1], [0], [0], [1], [0, 0, 1, 1], [], []>} : vector<10x40xf32>, vector<40x640xf32>, vector<10x640xf32> -> vector<10x640xf32>
    %c0_86 = arith.constant 0 : index
    %c0_87 = arith.constant 0 : index
    %107 = vector.load %arg18[%c0_86, %c0_87] : memref<1x640xf32, #tpu.memory_space<vmem>>, vector<1x640xf32>
    %cst_88 = arith.constant 2.000000e+00 : f32
    %108 = vector.broadcast %cst_88 : f32 to vector<10x640xf32>
    %109 = arith.mulf %108, %106 : vector<10x640xf32>
    %110 = vector.broadcast %107 : vector<1x640xf32> to vector<10x640xf32>
    %111 = arith.subf %110, %109 : vector<10x640xf32>
    %112 = tpu.iota {dimensions = array<i32: 1>} : vector<10x5xi32>
    %c0_i32 = arith.constant 0 : i32
    %113 = vector.broadcast %c0_i32 : i32 to vector<10x5xi32>
    %114 = vector.extract_strided_slice %111 {offsets = [0, 0], sizes = [10, 128], strides = [1, 1]} : vector<10x640xf32> to vector<10x128xf32>
    %cst_89 = arith.constant dense<0x7F800000> : vector<10xf32>
    %115 = vector.multi_reduction <minimumf>, %114, %cst_89 [1] : vector<10x128xf32> to vector<10xf32>
    %116 = vector.shape_cast %115 : vector<10xf32> to vector<10x1xf32>
    %117 = tpu.iota {dimensions = array<i32: 1>} : vector<10x128xi32>
    %118 = vector.broadcast %116 : vector<10x1xf32> to vector<10x128xf32>
    %119 = arith.cmpf ole, %114, %118 : vector<10x128xf32>
    %c128_i32 = arith.constant 128 : i32
    %120 = vector.broadcast %c128_i32 : i32 to vector<10x128xi32>
    %121 = arith.select %119, %117, %120 : vector<10x128xi1>, vector<10x128xi32>
    %cst_90 = arith.constant dense<2147483647> : vector<10xi32>
    %122 = vector.multi_reduction <minsi>, %121, %cst_90 [1] : vector<10x128xi32> to vector<10xi32>
    %123 = vector.shape_cast %122 : vector<10xi32> to vector<10x1xi32>
    %c0_i32_91 = arith.constant 0 : i32
    %124 = vector.broadcast %c0_i32_91 : i32 to vector<10x5xi32>
    %125 = arith.cmpi eq, %112, %124 : vector<10x5xi32>
    %126 = vector.shape_cast %123 : vector<10x1xi32> to vector<10x1xi32>
    %127 = vector.broadcast %126 : vector<10x1xi32> to vector<10x5xi32>
    %128 = arith.select %125, %127, %113 : vector<10x5xi1>, vector<10x5xi32>
    %129 = vector.shape_cast %116 : vector<10x1xf32> to vector<1x10x1xf32>
    %cst_92 = arith.constant dense<0.000000e+00> : vector<1xf32>
    %130 = vector.multi_reduction <add>, %129, %cst_92 [1, 2] : vector<1x10x1xf32> to vector<1xf32>
    %131 = vector.shape_cast %130 : vector<1xf32> to vector<1x1x1xf32>
    %132 = vector.extract %131[0, 0, 0] : f32 from vector<1x1x1xf32>
    %cst_93 = arith.constant 0.000000e+00 : f32
    %133 = arith.addf %cst_93, %132 : f32
    %134 = vector.extract_strided_slice %111 {offsets = [0, 128], sizes = [10, 128], strides = [1, 1]} : vector<10x640xf32> to vector<10x128xf32>
    %cst_94 = arith.constant dense<0x7F800000> : vector<10xf32>
    %135 = vector.multi_reduction <minimumf>, %134, %cst_94 [1] : vector<10x128xf32> to vector<10xf32>
    %136 = vector.shape_cast %135 : vector<10xf32> to vector<10x1xf32>
    %137 = tpu.iota {dimensions = array<i32: 1>} : vector<10x128xi32>
    %138 = vector.broadcast %136 : vector<10x1xf32> to vector<10x128xf32>
    %139 = arith.cmpf ole, %134, %138 : vector<10x128xf32>
    %c128_i32_95 = arith.constant 128 : i32
    %140 = vector.broadcast %c128_i32_95 : i32 to vector<10x128xi32>
    %141 = arith.select %139, %137, %140 : vector<10x128xi1>, vector<10x128xi32>
    %cst_96 = arith.constant dense<2147483647> : vector<10xi32>
    %142 = vector.multi_reduction <minsi>, %141, %cst_96 [1] : vector<10x128xi32> to vector<10xi32>
    %143 = vector.shape_cast %142 : vector<10xi32> to vector<10x1xi32>
    %c1_i32 = arith.constant 1 : i32
    %144 = vector.broadcast %c1_i32 : i32 to vector<10x5xi32>
    %145 = arith.cmpi eq, %112, %144 : vector<10x5xi32>
    %146 = vector.shape_cast %143 : vector<10x1xi32> to vector<10x1xi32>
    %147 = vector.broadcast %146 : vector<10x1xi32> to vector<10x5xi32>
    %148 = arith.select %145, %147, %128 : vector<10x5xi1>, vector<10x5xi32>
    %149 = vector.shape_cast %136 : vector<10x1xf32> to vector<1x10x1xf32>
    %cst_97 = arith.constant dense<0.000000e+00> : vector<1xf32>
    %150 = vector.multi_reduction <add>, %149, %cst_97 [1, 2] : vector<1x10x1xf32> to vector<1xf32>
    %151 = vector.shape_cast %150 : vector<1xf32> to vector<1x1x1xf32>
    %152 = vector.extract %151[0, 0, 0] : f32 from vector<1x1x1xf32>
    %153 = arith.addf %133, %152 : f32
    %154 = vector.extract_strided_slice %111 {offsets = [0, 256], sizes = [10, 128], strides = [1, 1]} : vector<10x640xf32> to vector<10x128xf32>
    %cst_98 = arith.constant dense<0x7F800000> : vector<10xf32>
    %155 = vector.multi_reduction <minimumf>, %154, %cst_98 [1] : vector<10x128xf32> to vector<10xf32>
    %156 = vector.shape_cast %155 : vector<10xf32> to vector<10x1xf32>
    %157 = tpu.iota {dimensions = array<i32: 1>} : vector<10x128xi32>
    %158 = vector.broadcast %156 : vector<10x1xf32> to vector<10x128xf32>
    %159 = arith.cmpf ole, %154, %158 : vector<10x128xf32>
    %c128_i32_99 = arith.constant 128 : i32
    %160 = vector.broadcast %c128_i32_99 : i32 to vector<10x128xi32>
    %161 = arith.select %159, %157, %160 : vector<10x128xi1>, vector<10x128xi32>
    %cst_100 = arith.constant dense<2147483647> : vector<10xi32>
    %162 = vector.multi_reduction <minsi>, %161, %cst_100 [1] : vector<10x128xi32> to vector<10xi32>
    %163 = vector.shape_cast %162 : vector<10xi32> to vector<10x1xi32>
    %c2_i32 = arith.constant 2 : i32
    %164 = vector.broadcast %c2_i32 : i32 to vector<10x5xi32>
    %165 = arith.cmpi eq, %112, %164 : vector<10x5xi32>
    %166 = vector.shape_cast %163 : vector<10x1xi32> to vector<10x1xi32>
    %167 = vector.broadcast %166 : vector<10x1xi32> to vector<10x5xi32>
    %168 = arith.select %165, %167, %148 : vector<10x5xi1>, vector<10x5xi32>
    %169 = vector.shape_cast %156 : vector<10x1xf32> to vector<1x10x1xf32>
    %cst_101 = arith.constant dense<0.000000e+00> : vector<1xf32>
    %170 = vector.multi_reduction <add>, %169, %cst_101 [1, 2] : vector<1x10x1xf32> to vector<1xf32>
    %171 = vector.shape_cast %170 : vector<1xf32> to vector<1x1x1xf32>
    %172 = vector.extract %171[0, 0, 0] : f32 from vector<1x1x1xf32>
    %173 = arith.addf %153, %172 : f32
    %174 = vector.extract_strided_slice %111 {offsets = [0, 384], sizes = [10, 128], strides = [1, 1]} : vector<10x640xf32> to vector<10x128xf32>
    %cst_102 = arith.constant dense<0x7F800000> : vector<10xf32>
    %175 = vector.multi_reduction <minimumf>, %174, %cst_102 [1] : vector<10x128xf32> to vector<10xf32>
    %176 = vector.shape_cast %175 : vector<10xf32> to vector<10x1xf32>
    %177 = tpu.iota {dimensions = array<i32: 1>} : vector<10x128xi32>
    %178 = vector.broadcast %176 : vector<10x1xf32> to vector<10x128xf32>
    %179 = arith.cmpf ole, %174, %178 : vector<10x128xf32>
    %c128_i32_103 = arith.constant 128 : i32
    %180 = vector.broadcast %c128_i32_103 : i32 to vector<10x128xi32>
    %181 = arith.select %179, %177, %180 : vector<10x128xi1>, vector<10x128xi32>
    %cst_104 = arith.constant dense<2147483647> : vector<10xi32>
    %182 = vector.multi_reduction <minsi>, %181, %cst_104 [1] : vector<10x128xi32> to vector<10xi32>
    %183 = vector.shape_cast %182 : vector<10xi32> to vector<10x1xi32>
    %c3_i32 = arith.constant 3 : i32
    %184 = vector.broadcast %c3_i32 : i32 to vector<10x5xi32>
    %185 = arith.cmpi eq, %112, %184 : vector<10x5xi32>
    %186 = vector.shape_cast %183 : vector<10x1xi32> to vector<10x1xi32>
    %187 = vector.broadcast %186 : vector<10x1xi32> to vector<10x5xi32>
    %188 = arith.select %185, %187, %168 : vector<10x5xi1>, vector<10x5xi32>
    %189 = vector.shape_cast %176 : vector<10x1xf32> to vector<1x10x1xf32>
    %cst_105 = arith.constant dense<0.000000e+00> : vector<1xf32>
    %190 = vector.multi_reduction <add>, %189, %cst_105 [1, 2] : vector<1x10x1xf32> to vector<1xf32>
    %191 = vector.shape_cast %190 : vector<1xf32> to vector<1x1x1xf32>
    %192 = vector.extract %191[0, 0, 0] : f32 from vector<1x1x1xf32>
    %193 = arith.addf %173, %192 : f32
    %194 = vector.extract_strided_slice %111 {offsets = [0, 512], sizes = [10, 128], strides = [1, 1]} : vector<10x640xf32> to vector<10x128xf32>
    %cst_106 = arith.constant dense<0x7F800000> : vector<10xf32>
    %195 = vector.multi_reduction <minimumf>, %194, %cst_106 [1] : vector<10x128xf32> to vector<10xf32>
    %196 = vector.shape_cast %195 : vector<10xf32> to vector<10x1xf32>
    %197 = tpu.iota {dimensions = array<i32: 1>} : vector<10x128xi32>
    %198 = vector.broadcast %196 : vector<10x1xf32> to vector<10x128xf32>
    %199 = arith.cmpf ole, %194, %198 : vector<10x128xf32>
    %c128_i32_107 = arith.constant 128 : i32
    %200 = vector.broadcast %c128_i32_107 : i32 to vector<10x128xi32>
    %201 = arith.select %199, %197, %200 : vector<10x128xi1>, vector<10x128xi32>
    %cst_108 = arith.constant dense<2147483647> : vector<10xi32>
    %202 = vector.multi_reduction <minsi>, %201, %cst_108 [1] : vector<10x128xi32> to vector<10xi32>
    %203 = vector.shape_cast %202 : vector<10xi32> to vector<10x1xi32>
    %c4_i32 = arith.constant 4 : i32
    %204 = vector.broadcast %c4_i32 : i32 to vector<10x5xi32>
    %205 = arith.cmpi eq, %112, %204 : vector<10x5xi32>
    %206 = vector.shape_cast %203 : vector<10x1xi32> to vector<10x1xi32>
    %207 = vector.broadcast %206 : vector<10x1xi32> to vector<10x5xi32>
    %208 = arith.select %205, %207, %188 : vector<10x5xi1>, vector<10x5xi32>
    %209 = vector.shape_cast %196 : vector<10x1xf32> to vector<1x10x1xf32>
    %cst_109 = arith.constant dense<0.000000e+00> : vector<1xf32>
    %210 = vector.multi_reduction <add>, %209, %cst_109 [1, 2] : vector<1x10x1xf32> to vector<1xf32>
    %211 = vector.shape_cast %210 : vector<1xf32> to vector<1x1x1xf32>
    %212 = vector.extract %211[0, 0, 0] : f32 from vector<1x1x1xf32>
    %213 = arith.addf %193, %212 : f32
    %c0_110 = arith.constant 0 : index
    %c0_111 = arith.constant 0 : index
    %214 = vector.load %arg20[%c0_110, %c0_111] : memref<10x5xi32, #tpu.memory_space<vmem>>, vector<10x5xi32>
    tpu.vector_store %arg20[%c0_110, %c0_111], %208 {strides = array<i32>} : memref<10x5xi32, #tpu.memory_space<vmem>>, vector<10x5xi32>,
    %215 = arith.mulf %103, %103 : vector<10x40xf32>
    %216 = vector.shape_cast %215 : vector<10x40xf32> to vector<1x10x40xf32>
    %cst_112 = arith.constant dense<0.000000e+00> : vector<1xf32>
    %217 = vector.multi_reduction <add>, %216, %cst_112 [1, 2] : vector<1x10x40xf32> to vector<1xf32>
    %218 = vector.shape_cast %217 : vector<1xf32> to vector<1x1x1xf32>
    %219 = vector.extract %218[0, 0, 0] : f32 from vector<1x1x1xf32>
    %220 = arith.addf %219, %213 : f32
    %cst_113 = arith.constant 0.000000e+00 : f32
    %221 = arith.maximumf %220, %cst_113 : f32
    %cst_114 = arith.constant 4.000000e+02 : f32
    %222 = arith.divf %221, %cst_114 : f32
    %c0_115 = arith.constant 0 : index
    %223 = memref.load %arg21[%c0_115] : memref<1xf32, #tpu.memory_space<smem>>
    memref.store %222, %arg21[%c0_115] : memref<1xf32, #tpu.memory_space<smem>>
    %c0_116 = arith.constant 0 : index
    %c0_117 = arith.constant 0 : index
    %224 = vector.load %arg23[%c0_116, %c0_117] : memref<18x72xf32, #tpu.memory_space<vmem>>, vector<14x72xf32>
    %c0_118 = arith.constant 0 : index
    %c0_119 = arith.constant 0 : index
    %c0_120 = arith.constant 0 : index
    %225 = vector.load %arg9[%c0_118, %c0_119, %c0_120] : memref<3x72x56xf32, #tpu.memory_space<vmem>>, vector<1x72x56xf32>
    %226 = vector.shape_cast %225 : vector<1x72x56xf32> to vector<72x56xf32>
    %cst_121 = arith.constant dense<0.000000e+00> : vector<14x56xf32>
    %227 = tpu.matmul %224, %226, %cst_121 {dimension_numbers = #tpu.dot_dimension_numbers<[1], [0], [0], [1], [0, 0, 1, 1], [], []>} : vector<14x72xf32>, vector<72x56xf32>, vector<14x56xf32> -> vector<14x56xf32>
    %c2_122 = arith.constant 2 : index
    %c0_123 = arith.constant 0 : index
    %228 = vector.load %arg23[%c2_122, %c0_123] : memref<18x72xf32, #tpu.memory_space<vmem>>, vector<14x72xf32>
    %c1_124 = arith.constant 1 : index
    %c0_125 = arith.constant 0 : index
    %c0_126 = arith.constant 0 : index
    %229 = vector.load %arg9[%c1_124, %c0_125, %c0_126] : memref<3x72x56xf32, #tpu.memory_space<vmem>>, vector<1x72x56xf32>
    %230 = vector.shape_cast %229 : vector<1x72x56xf32> to vector<72x56xf32>
    %cst_127 = arith.constant dense<0.000000e+00> : vector<14x56xf32>
    %231 = tpu.matmul %228, %230, %cst_127 {dimension_numbers = #tpu.dot_dimension_numbers<[1], [0], [0], [1], [0, 0, 1, 1], [], []>} : vector<14x72xf32>, vector<72x56xf32>, vector<14x56xf32> -> vector<14x56xf32>
    %232 = arith.addf %227, %231 : vector<14x56xf32>
    %c4_128 = arith.constant 4 : index
    %c0_129 = arith.constant 0 : index
    %233 = vector.load %arg23[%c4_128, %c0_129] : memref<18x72xf32, #tpu.memory_space<vmem>>, vector<14x72xf32>
    %c2_130 = arith.constant 2 : index
    %c0_131 = arith.constant 0 : index
    %c0_132 = arith.constant 0 : index
    %234 = vector.load %arg9[%c2_130, %c0_131, %c0_132] : memref<3x72x56xf32, #tpu.memory_space<vmem>>, vector<1x72x56xf32>
    %235 = vector.shape_cast %234 : vector<1x72x56xf32> to vector<72x56xf32>
    %cst_133 = arith.constant dense<0.000000e+00> : vector<14x56xf32>
    %236 = tpu.matmul %233, %235, %cst_133 {dimension_numbers = #tpu.dot_dimension_numbers<[1], [0], [0], [1], [0, 0, 1, 1], [], []>} : vector<14x72xf32>, vector<72x56xf32>, vector<14x56xf32> -> vector<14x56xf32>
    %237 = arith.addf %232, %236 : vector<14x56xf32>
    %c0_134 = arith.constant 0 : index
    %c0_135 = arith.constant 0 : index
    %238 = vector.load %arg10[%c0_134, %c0_135] : memref<56x8xf32, #tpu.memory_space<vmem>>, vector<56x8xf32>
    %cst_136 = arith.constant dense<0.000000e+00> : vector<56xf32>
    %239 = vector.multi_reduction <add>, %237, %cst_136 [0] : vector<14x56xf32> to vector<56xf32>
    %240 = vector.shape_cast %239 : vector<56xf32> to vector<1x56xf32>
    %cst_137 = arith.constant dense<0.000000e+00> : vector<1x8xf32>
    %241 = tpu.matmul %240, %238, %cst_137 {dimension_numbers = #tpu.dot_dimension_numbers<[1], [0], [0], [1], [0, 0, 1, 1], [], []>} : vector<1x56xf32>, vector<56x8xf32>, vector<1x8xf32> -> vector<1x8xf32>
    %242 = arith.mulf %237, %237 : vector<14x56xf32>
    %cst_138 = arith.constant dense<0.000000e+00> : vector<56xf32>
    %243 = vector.multi_reduction <add>, %242, %cst_138 [0] : vector<14x56xf32> to vector<56xf32>
    %244 = vector.shape_cast %243 : vector<56xf32> to vector<1x56xf32>
    %cst_139 = arith.constant dense<0.000000e+00> : vector<1x8xf32>
    %245 = tpu.matmul %244, %238, %cst_139 {dimension_numbers = #tpu.dot_dimension_numbers<[1], [0], [0], [1], [0, 0, 1, 1], [], []>} : vector<1x56xf32>, vector<56x8xf32>, vector<1x8xf32> -> vector<1x8xf32>
    %cst_140 = arith.constant 9.800000e+01 : f32
    %246 = vector.broadcast %cst_140 : f32 to vector<1x8xf32>
    %247 = arith.divf %241, %246 : vector<1x8xf32>
    %cst_141 = arith.constant 9.800000e+01 : f32
    %248 = vector.broadcast %cst_141 : f32 to vector<1x8xf32>
    %249 = arith.divf %245, %248 : vector<1x8xf32>
    %250 = arith.mulf %247, %247 : vector<1x8xf32>
    %251 = arith.subf %249, %250 : vector<1x8xf32>
    %cst_142 = arith.constant 0.000000e+00 : f32
    %252 = vector.broadcast %cst_142 : f32 to vector<1x8xf32>
    %253 = arith.maximumf %251, %252 : vector<1x8xf32>
    %cst_143 = arith.constant 9.99999974E-6 : f32
    %254 = vector.broadcast %cst_143 : f32 to vector<1x8xf32>
    %255 = arith.addf %253, %254 : vector<1x8xf32>
    %256 = math.rsqrt %255 : vector<1x8xf32>
    %c0_144 = arith.constant 0 : index
    %c0_145 = arith.constant 0 : index
    %257 = vector.load %arg11[%c0_144, %c0_145] : memref<1x8xf32, #tpu.memory_space<vmem>>, vector<1x8xf32>
    %258 = arith.mulf %257, %256 : vector<1x8xf32>
    %c0_146 = arith.constant 0 : index
    %c0_147 = arith.constant 0 : index
    %259 = vector.load %arg12[%c0_146, %c0_147] : memref<1x8xf32, #tpu.memory_space<vmem>>, vector<1x8xf32>
    %260 = arith.mulf %247, %258 : vector<1x8xf32>
    %261 = arith.subf %259, %260 : vector<1x8xf32>
    %cst_148 = arith.constant dense<0.000000e+00> : vector<1x56xf32>
    %262 = tpu.matmul %258, %238, %cst_148 {dimension_numbers = #tpu.dot_dimension_numbers<[1], [1], [0], [0], [0, 0, 1, 0], [], []>} : vector<1x8xf32>, vector<56x8xf32>, vector<1x56xf32> -> vector<1x56xf32>
    %cst_149 = arith.constant dense<0.000000e+00> : vector<1x56xf32>
    %263 = tpu.matmul %261, %238, %cst_149 {dimension_numbers = #tpu.dot_dimension_numbers<[1], [1], [0], [0], [0, 0, 1, 0], [], []>} : vector<1x8xf32>, vector<56x8xf32>, vector<1x56xf32> -> vector<1x56xf32>
    %264 = vector.broadcast %262 : vector<1x56xf32> to vector<14x56xf32>
    %265 = arith.mulf %237, %264 : vector<14x56xf32>
    %266 = vector.broadcast %263 : vector<1x56xf32> to vector<14x56xf32>
    %267 = arith.addf %265, %266 : vector<14x56xf32>
    %cst_150 = arith.constant 0.000000e+00 : f32
    %268 = vector.broadcast %cst_150 : f32 to vector<14x56xf32>
    %269 = arith.maximumf %267, %268 : vector<14x56xf32>
    %c2_151 = arith.constant 2 : index
    %c8 = arith.constant 8 : index
    %270 = vector.load %arg24[%c2_151, %c8] : memref<18x72xf32, #tpu.memory_space<vmem>>, vector<14x56xf32>
    tpu.vector_store %arg24[%c2_151, %c8], %269 {strides = array<i32>} : memref<18x72xf32, #tpu.memory_space<vmem>>, vector<14x56xf32>,
    %c0_152 = arith.constant 0 : index
    %c0_153 = arith.constant 0 : index
    %271 = vector.load %arg24[%c0_152, %c0_153] : memref<18x72xf32, #tpu.memory_space<vmem>>, vector<16x72xf32>
    %c0_154 = arith.constant 0 : index
    %c0_155 = arith.constant 0 : index
    %c0_156 = arith.constant 0 : index
    %272 = vector.load %arg13[%c0_154, %c0_155, %c0_156] : memref<2x72x128xf32, #tpu.memory_space<vmem>>, vector<1x72x128xf32>
    %273 = vector.shape_cast %272 : vector<1x72x128xf32> to vector<72x128xf32>
    %cst_157 = arith.constant dense<0.000000e+00> : vector<16x128xf32>
    %274 = tpu.matmul %271, %273, %cst_157 {dimension_numbers = #tpu.dot_dimension_numbers<[1], [0], [0], [1], [0, 0, 1, 1], [], []>} : vector<16x72xf32>, vector<72x128xf32>, vector<16x128xf32> -> vector<16x128xf32>
    %c2_158 = arith.constant 2 : index
    %c0_159 = arith.constant 0 : index
    %275 = vector.load %arg24[%c2_158, %c0_159] : memref<18x72xf32, #tpu.memory_space<vmem>>, vector<16x72xf32>
    %c1_160 = arith.constant 1 : index
    %c0_161 = arith.constant 0 : index
    %c0_162 = arith.constant 0 : index
    %276 = vector.load %arg13[%c1_160, %c0_161, %c0_162] : memref<2x72x128xf32, #tpu.memory_space<vmem>>, vector<1x72x128xf32>
    %277 = vector.shape_cast %276 : vector<1x72x128xf32> to vector<72x128xf32>
    %cst_163 = arith.constant dense<0.000000e+00> : vector<16x128xf32>
    %278 = tpu.matmul %275, %277, %cst_163 {dimension_numbers = #tpu.dot_dimension_numbers<[1], [0], [0], [1], [0, 0, 1, 1], [], []>} : vector<16x72xf32>, vector<72x128xf32>, vector<16x128xf32> -> vector<16x128xf32>
    %279 = arith.addf %274, %278 : vector<16x128xf32>
    %c0_164 = arith.constant 0 : index
    %c0_165 = arith.constant 0 : index
    %280 = vector.load %arg14[%c0_164, %c0_165] : memref<128x4xf32, #tpu.memory_space<vmem>>, vector<128x4xf32>
    %cst_166 = arith.constant dense<0.000000e+00> : vector<128xf32>
    %281 = vector.multi_reduction <add>, %279, %cst_166 [0] : vector<16x128xf32> to vector<128xf32>
    %282 = vector.shape_cast %281 : vector<128xf32> to vector<1x128xf32>
    %cst_167 = arith.constant dense<0.000000e+00> : vector<1x4xf32>
    %283 = tpu.matmul %282, %280, %cst_167 {dimension_numbers = #tpu.dot_dimension_numbers<[1], [0], [0], [1], [0, 0, 1, 1], [], []>} : vector<1x128xf32>, vector<128x4xf32>, vector<1x4xf32> -> vector<1x4xf32>
    %284 = arith.mulf %279, %279 : vector<16x128xf32>
    %cst_168 = arith.constant dense<0.000000e+00> : vector<128xf32>
    %285 = vector.multi_reduction <add>, %284, %cst_168 [0] : vector<16x128xf32> to vector<128xf32>
    %286 = vector.shape_cast %285 : vector<128xf32> to vector<1x128xf32>
    %cst_169 = arith.constant dense<0.000000e+00> : vector<1x4xf32>
    %287 = tpu.matmul %286, %280, %cst_169 {dimension_numbers = #tpu.dot_dimension_numbers<[1], [0], [0], [1], [0, 0, 1, 1], [], []>} : vector<1x128xf32>, vector<128x4xf32>, vector<1x4xf32> -> vector<1x4xf32>
    %cst_170 = arith.constant 5.120000e+02 : f32
    %288 = vector.broadcast %cst_170 : f32 to vector<1x4xf32>
    %289 = arith.divf %283, %288 : vector<1x4xf32>
    %cst_171 = arith.constant 5.120000e+02 : f32
    %290 = vector.broadcast %cst_171 : f32 to vector<1x4xf32>
    %291 = arith.divf %287, %290 : vector<1x4xf32>
    %292 = arith.mulf %289, %289 : vector<1x4xf32>
    %293 = arith.subf %291, %292 : vector<1x4xf32>
    %cst_172 = arith.constant 0.000000e+00 : f32
    %294 = vector.broadcast %cst_172 : f32 to vector<1x4xf32>
    %295 = arith.maximumf %293, %294 : vector<1x4xf32>
    %cst_173 = arith.constant 9.99999974E-6 : f32
    %296 = vector.broadcast %cst_173 : f32 to vector<1x4xf32>
    %297 = arith.addf %295, %296 : vector<1x4xf32>
    %298 = math.rsqrt %297 : vector<1x4xf32>
    %c0_174 = arith.constant 0 : index
    %c0_175 = arith.constant 0 : index
    %299 = vector.load %arg15[%c0_174, %c0_175] : memref<1x4xf32, #tpu.memory_space<vmem>>, vector<1x4xf32>
    %300 = arith.mulf %299, %298 : vector<1x4xf32>
    %c0_176 = arith.constant 0 : index
    %c0_177 = arith.constant 0 : index
    %301 = vector.load %arg16[%c0_176, %c0_177] : memref<1x4xf32, #tpu.memory_space<vmem>>, vector<1x4xf32>
    %302 = arith.mulf %289, %300 : vector<1x4xf32>
    %303 = arith.subf %301, %302 : vector<1x4xf32>
    %cst_178 = arith.constant dense<0.000000e+00> : vector<1x128xf32>
    %304 = tpu.matmul %300, %280, %cst_178 {dimension_numbers = #tpu.dot_dimension_numbers<[1], [1], [0], [0], [0, 0, 1, 0], [], []>} : vector<1x4xf32>, vector<128x4xf32>, vector<1x128xf32> -> vector<1x128xf32>
    %cst_179 = arith.constant dense<0.000000e+00> : vector<1x128xf32>
    %305 = tpu.matmul %303, %280, %cst_179 {dimension_numbers = #tpu.dot_dimension_numbers<[1], [1], [0], [0], [0, 0, 1, 0], [], []>} : vector<1x4xf32>, vector<128x4xf32>, vector<1x128xf32> -> vector<1x128xf32>
    %306 = vector.broadcast %304 : vector<1x128xf32> to vector<16x128xf32>
    %307 = arith.mulf %279, %306 : vector<16x128xf32>
    %308 = vector.broadcast %305 : vector<1x128xf32> to vector<16x128xf32>
    %309 = arith.addf %307, %308 : vector<16x128xf32>
    %cst_180 = arith.constant 0.000000e+00 : f32
    %310 = vector.broadcast %cst_180 : f32 to vector<16x128xf32>
    %311 = arith.maximumf %309, %310 : vector<16x128xf32>
    %c0_181 = arith.constant 0 : index
    %c0_182 = arith.constant 0 : index
    %312 = vector.load %arg19[%c0_181, %c0_182] : memref<16x128xf32, #tpu.memory_space<vmem>>, vector<16x128xf32>
    tpu.vector_store %arg19[%c0_181, %c0_182], %311 {strides = array<i32>} : memref<16x128xf32, #tpu.memory_space<vmem>>, vector<16x128xf32>,
    return
  }
}

</mosaic_0001>

<llo_original>
// kernel: vqvae_forward.1
$region0: #{vqvae_forward.1}
  #allocation0 [shape = 'u32[]', space=smem, size = 0x4, offset = 0x4, fixed_abs, tag = 'smem constant byte address 0x4 - core index']
  #allocation1 [shape = 'u32[144,128]{1,0:T(1,128)}', space=vmem, size = 0x12000, scoped, tag = 'internal scratch']
  #allocation2 [shape = 'f32[14,56]{1,0:T(8,128)}', space=vmem, size = 0x2000, scoped, tag = 'scratch operand']
  #allocation3 [shape = 'f32[18,72]{1,0:T(8,128)}', space=vmem, size = 0x3000, scoped, tag = 'scratch operand']
  #allocation4 [shape = 'f32[18,72]{1,0:T(8,128)}', space=vmem, size = 0x3000, scoped, tag = 'scratch operand']
  %s0 = inlined_call_operand.vmem [shape: f32[16,128], index: 0, kind: input, shape index: {}]
  %s1 = inlined_call_operand.vmem [shape: f32[2,128,56], index: 1, kind: input, shape index: {}]
  %s2 = inlined_call_operand.vmem [shape: f32[56,8], index: 2, kind: input, shape index: {}, may-alias: {2,10}]
  %s3 = inlined_call_operand.vmem [shape: f32[1,8], index: 3, kind: input, shape index: {}]
  %s4 = inlined_call_operand.vmem [shape: f32[1,8], index: 4, kind: input, shape index: {}]
  %s5 = inlined_call_operand.vmem [shape: f32[3,56,40], index: 5, kind: input, shape index: {}]
  %s6 = inlined_call_operand.vmem [shape: f32[40,8], index: 6, kind: input, shape index: {}]
  %s7 = inlined_call_operand.vmem [shape: f32[1,8], index: 7, kind: input, shape index: {}]
  %s8 = inlined_call_operand.vmem [shape: f32[1,8], index: 8, kind: input, shape index: {}]
  %s9 = inlined_call_operand.vmem [shape: f32[3,72,56], index: 9, kind: input, shape index: {}]
  %s10 = inlined_call_operand.vmem [shape: f32[56,8], index: 10, kind: input, shape index: {}, may-alias: {2,10}]
  %s11 = inlined_call_operand.vmem [shape: f32[1,8], index: 11, kind: input, shape index: {}]
  %s12 = inlined_call_operand.vmem [shape: f32[1,8], index: 12, kind: input, shape index: {}]
  %s13 = inlined_call_operand.vmem [shape: f32[2,72,128], index: 13, kind: input, shape index: {}]
  %s14 = inlined_call_operand.vmem [shape: f32[128,4], index: 14, kind: input, shape index: {}]
  %s15 = inlined_call_operand.vmem [shape: f32[1,4], index: 15, kind: input, shape index: {}]
  %s16 = inlined_call_operand.vmem [shape: f32[1,4], index: 16, kind: input, shape index: {}]
  %s17 = inlined_call_operand.vmem [shape: f32[40,640], index: 17, kind: input, shape index: {}]
  %s18 = inlined_call_operand.vmem [shape: f32[1,640], index: 18, kind: input, shape index: {}]
  %s19 = inlined_call_operand.vmem [shape: f32[16,128], index: 19, kind: output, shape index: {0}]
  %s20 = inlined_call_operand.vmem [shape: s32[10,5], index: 20, kind: output, shape index: {1}]
  %s21 = inlined_call_operand.hbm [shape: f32[1], index: 21, kind: output, shape index: {2}]
  %22 = xla_tuple %s19, %s20, %s21
  %s23 = sld [smem:[#allocation0]]
  $region102: #{vqvae_forward.1} parent=0
    _
  %s25 = ssub.s32 1, %s23
  %s26 = scalar_select 0, %s25, %s23
  $region1: #{vqvae_forward.1} parent=0
    #allocation5 [shape = 'u8[512]{0}', space=smem, size = 0x200, scoped, tag = 'output window, operand 2, single buffered']
    #allocation6 [shape = 's32[1]{0}', space=sflag, size = 0x4, scoped, tag = 'scoped memory for vqvae_forward.1']
    %27 = vsyncpa [#allocation6], 0
    // Predicated region
    $region2: #{vqvae_forward.1} parent=1 // pred_check
      _
    $region3: #{vqvae_forward.1} parent=1 // pred_check_branch
      %29 = sbr.rel (0) target = $region5
    $region4: #{vqvae_forward.1} parent=1 // pred_region
      _
    $region5: #{vqvae_forward.1} parent=1 // pred_fallthru
      _
    // Predicated region
    $region6: #{vqvae_forward.1} parent=1 // pred_check
      _
    $region7: #{vqvae_forward.1} parent=1 // pred_check_branch
      %31 = sbr.rel (0) target = $region9
    $region8: #{vqvae_forward.1} parent=1 // pred_region
      _
    $region9: #{vqvae_forward.1} parent=1 // pred_fallthru
      _
    // Predicated region
    $region10: #{vqvae_forward.1} parent=1 // pred_check
      _
    $region11: #{vqvae_forward.1} parent=1 // pred_check_branch
      %33 = sbr.rel (0) target = $region13
    $region12: #{vqvae_forward.1} parent=1 // pred_region
      _
    $region13: #{vqvae_forward.1} parent=1 // pred_fallthru
      _
    // Predicated region
    $region14: #{vqvae_forward.1} parent=1 // pred_check
      _
    $region15: #{vqvae_forward.1} parent=1 // pred_check_branch
      %35 = sbr.rel (0) target = $region17
    $region16: #{vqvae_forward.1} parent=1 // pred_region
      _
    $region17: #{vqvae_forward.1} parent=1 // pred_fallthru
      _
    // Predicated region
    $region18: #{vqvae_forward.1} parent=1 // pred_check
      _
    $region19: #{vqvae_forward.1} parent=1 // pred_check_branch
      %37 = sbr.rel (0) target = $region21
    $region20: #{vqvae_forward.1} parent=1 // pred_region
      _
    $region21: #{vqvae_forward.1} parent=1 // pred_fallthru
      _
    // Predicated region
    $region22: #{vqvae_forward.1} parent=1 // pred_check
      _
    $region23: #{vqvae_forward.1} parent=1 // pred_check_branch
      %39 = sbr.rel (0) target = $region25
    $region24: #{vqvae_forward.1} parent=1 // pred_region
      _
    $region25: #{vqvae_forward.1} parent=1 // pred_fallthru
      _
    // Predicated region
    $region26: #{vqvae_forward.1} parent=1 // pred_check
      _
    $region27: #{vqvae_forward.1} parent=1 // pred_check_branch
      %41 = sbr.rel (0) target = $region29
    $region28: #{vqvae_forward.1} parent=1 // pred_region
      _
    $region29: #{vqvae_forward.1} parent=1 // pred_fallthru
      _
    // Predicated region
    $region30: #{vqvae_forward.1} parent=1 // pred_check
      _
    $region31: #{vqvae_forward.1} parent=1 // pred_check_branch
      %43 = sbr.rel (0) target = $region33
    $region32: #{vqvae_forward.1} parent=1 // pred_region
      _
    $region33: #{vqvae_forward.1} parent=1 // pred_fallthru
      _
    // Predicated region
    $region34: #{vqvae_forward.1} parent=1 // pred_check
      _
    $region35: #{vqvae_forward.1} parent=1 // pred_check_branch
      %45 = sbr.rel (0) target = $region37
    $region36: #{vqvae_forward.1} parent=1 // pred_region
      _
    $region37: #{vqvae_forward.1} parent=1 // pred_fallthru
      _
    // Predicated region
    $region38: #{vqvae_forward.1} parent=1 // pred_check
      _
    $region39: #{vqvae_forward.1} parent=1 // pred_check_branch
      %47 = sbr.rel (0) target = $region41
    $region40: #{vqvae_forward.1} parent=1 // pred_region
      _
    $region41: #{vqvae_forward.1} parent=1 // pred_fallthru
      _
    // Predicated region
    $region42: #{vqvae_forward.1} parent=1 // pred_check
      _
    $region43: #{vqvae_forward.1} parent=1 // pred_check_branch
      %49 = sbr.rel (0) target = $region45
    $region44: #{vqvae_forward.1} parent=1 // pred_region
      _
    $region45: #{vqvae_forward.1} parent=1 // pred_fallthru
      _
    // Predicated region
    $region46: #{vqvae_forward.1} parent=1 // pred_check
      _
    $region47: #{vqvae_forward.1} parent=1 // pred_check_branch
      %51 = sbr.rel (0) target = $region49
    $region48: #{vqvae_forward.1} parent=1 // pred_region
      _
    $region49: #{vqvae_forward.1} parent=1 // pred_fallthru
      _
    // Predicated region
    $region50: #{vqvae_forward.1} parent=1 // pred_check
      _
    $region51: #{vqvae_forward.1} parent=1 // pred_check_branch
      %53 = sbr.rel (0) target = $region53
    $region52: #{vqvae_forward.1} parent=1 // pred_region
      _
    $region53: #{vqvae_forward.1} parent=1 // pred_fallthru
      _
    // Predicated region
    $region54: #{vqvae_forward.1} parent=1 // pred_check
      _
    $region55: #{vqvae_forward.1} parent=1 // pred_check_branch
      %55 = sbr.rel (0) target = $region57
    $region56: #{vqvae_forward.1} parent=1 // pred_region
      _
    $region57: #{vqvae_forward.1} parent=1 // pred_fallthru
      _
    // Predicated region
    $region58: #{vqvae_forward.1} parent=1 // pred_check
      _
    $region59: #{vqvae_forward.1} parent=1 // pred_check_branch
      %57 = sbr.rel (0) target = $region61
    $region60: #{vqvae_forward.1} parent=1 // pred_region
      _
    $region61: #{vqvae_forward.1} parent=1 // pred_fallthru
      _
    // Predicated region
    $region62: #{vqvae_forward.1} parent=1 // pred_check
      _
    $region63: #{vqvae_forward.1} parent=1 // pred_check_branch
      %59 = sbr.rel (0) target = $region65
    $region64: #{vqvae_forward.1} parent=1 // pred_region
      _
    $region65: #{vqvae_forward.1} parent=1 // pred_fallthru
      _
    // Predicated region
    $region66: #{vqvae_forward.1} parent=1 // pred_check
      _
    $region67: #{vqvae_forward.1} parent=1 // pred_check_branch
      %61 = sbr.rel (0) target = $region69
    $region68: #{vqvae_forward.1} parent=1 // pred_region
      _
    $region69: #{vqvae_forward.1} parent=1 // pred_fallthru
      _
    // Predicated region
    $region70: #{vqvae_forward.1} parent=1 // pred_check
      _
    $region71: #{vqvae_forward.1} parent=1 // pred_check_branch
      %63 = sbr.rel (0) target = $region73
    $region72: #{vqvae_forward.1} parent=1 // pred_region
      _
    $region73: #{vqvae_forward.1} parent=1 // pred_fallthru
      _
    // Predicated region
    $region74: #{vqvae_forward.1} parent=1 // pred_check
      _
    $region75: #{vqvae_forward.1} parent=1 // pred_check_branch
      %65 = sbr.rel (0) target = $region77
    $region76: #{vqvae_forward.1} parent=1 // pred_region
      _
    $region77: #{vqvae_forward.1} parent=1 // pred_fallthru
      _
    %vm66 = vcmask 584704
    %67 = vst.msk [vmem:[#allocation3] sm:$0xf] %vm66, 0.0
    %68 = vst.msk [vmem:[#allocation3 + $0xe] sm:$0xf] %vm66, 0.0
    %vm69 = vcmask 130048
    %70 = vst.msk [vmem:[#allocation3 + $0x4] sm:$0xff] %vm69, 0.0
    %vm71 = vcmask 123904
    %72 = vst.msk [vmem:[#allocation3 + $0xc] sm:$0x3] %vm71, 0.0
    %vm73 = vcmask 589248
    %74 = vst.msk [vmem:[#allocation3 + $0x4] sm:$0xff] %vm73, 0.0
    %vm75 = vcmask 583104
    %76 = vst.msk [vmem:[#allocation3 + $0xc] sm:$0x3] %vm75, 0.0
    %vm77 = vcmask 582656
    %78 = vst.msk [vmem:[#allocation4] sm:$0x3] %vm77, 0.0
    %79 = vst.msk [vmem:[#allocation4 + $0x10] sm:$0x3] %vm77, 0.0
    %vm80 = vcmask 64512
    %81 = vst.msk [vmem:[#allocation4 + $0x2] sm:$0xff] %vm80, 0.0
    %vm82 = vcmask 62464
    %83 = vst.msk [vmem:[#allocation4 + $0xa] sm:$0x3f] %vm82, 0.0
    %vm84 = vcmask 589312
    %85 = vst.msk [vmem:[#allocation4 + $0x2] sm:$0xff] %vm84, 0.0
    %vm86 = vcmask 587264
    %87 = vst.msk [vmem:[#allocation4 + $0xa] sm:$0x3f] %vm86, 0.0
    %v88 = vld [vmem:[%s0] sm:$0xff]
    %v89 = vld [vmem:[%s0 + $0x8] sm:$0x3f]
    %v90 = vld [vmem:[%s1] sm:$0xff]
    %v91 = vld [vmem:[%s1 + $0x8] sm:$0xff]
    %v92 = vld [vmem:[%s1 + $0x10] sm:$0xff]
    %v93 = vld [vmem:[%s1 + $0x18] sm:$0xff]
    %v94 = vld [vmem:[%s1 + $0x20] sm:$0xff]
    %v95 = vld [vmem:[%s1 + $0x28] sm:$0xff]
    %v96 = vld [vmem:[%s1 + $0x30] sm:$0xff]
    %v97 = vld [vmem:[%s1 + $0x38] sm:$0xff]
    %v98 = vld [vmem:[%s1 + $0x40] sm:$0xff]
    %v99 = vld [vmem:[%s1 + $0x48] sm:$0xff]
    %v100 = vld [vmem:[%s1 + $0x50] sm:$0xff]
    %v101 = vld [vmem:[%s1 + $0x58] sm:$0xff]
    %v102 = vld [vmem:[%s1 + $0x60] sm:$0xff]
    %v103 = vld [vmem:[%s1 + $0x68] sm:$0xff]
    %v104 = vld [vmem:[%s1 + $0x70] sm:$0xff]
    %v105 = vld [vmem:[%s1 + $0x78] sm:$0xff]
    %v106 = vld [vmem:[%s0 + $0x2] sm:$0xff]
    %v107 = vld [vmem:[%s0 + $0xa] sm:$0x3f]
    %s108 = scalar_lea.vmem %s1, 128
    %v109 = vld [vmem:[%s108] sm:$0xff]
    %v110 = vld [vmem:[%s108 + $0x8] sm:$0xff]
    %v111 = vld [vmem:[%s108 + $0x10] sm:$0xff]
    %v112 = vld [vmem:[%s108 + $0x18] sm:$0xff]
    %v113 = vld [vmem:[%s108 + $0x20] sm:$0xff]
    %v114 = vld [vmem:[%s108 + $0x28] sm:$0xff]
    %v115 = vld [vmem:[%s108 + $0x30] sm:$0xff]
    %v116 = vld [vmem:[%s108 + $0x38] sm:$0xff]
    %v117 = vld [vmem:[%s108 + $0x40] sm:$0xff]
    %v118 = vld [vmem:[%s108 + $0x48] sm:$0xff]
    %v119 = vld [vmem:[%s108 + $0x50] sm:$0xff]
    %v120 = vld [vmem:[%s108 + $0x58] sm:$0xff]
    %v121 = vld [vmem:[%s108 + $0x60] sm:$0xff]
    %v122 = vld [vmem:[%s108 + $0x68] sm:$0xff]
    %v123 = vld [vmem:[%s108 + $0x70] sm:$0xff]
    %v124 = vld [vmem:[%s108 + $0x78] sm:$0xff]
    %125 = vmatprep.subr.mxu0 0.0
    %126 = vmatpush1.msra.mxu0 %v109
    %127 = vmatprep.subr.mxu0 0.0
    %128 = vmatpush1.msra.mxu0 %v110
    %129 = vmatprep.subr.mxu0 0.0
    %130 = vmatpush1.msra.mxu0 %v111
    %131 = vmatprep.subr.mxu0 0.0
    %132 = vmatpush1.msra.mxu0 %v112
    %133 = vmatprep.subr.mxu0 0.0
    %134 = vmatpush1.msra.mxu0 %v113
    %135 = vmatprep.subr.mxu0 0.0
    %136 = vmatpush1.msra.mxu0 %v114
    %137 = vmatprep.subr.mxu0 0.0
    %138 = vmatpush1.msra.mxu0 %v115
    %139 = vmatprep.subr.mxu0 0.0
    %140 = vmatpush1.msra.mxu0 %v116
    %141 = vmatprep.subr.mxu0 0.0
    %142 = vmatpush1.msra.mxu0 %v117
    %143 = vmatprep.subr.mxu0 0.0
    %144 = vmatpush1.msra.mxu0 %v118
    %145 = vmatprep.subr.mxu0 0.0
    %146 = vmatpush1.msra.mxu0 %v119
    %147 = vmatprep.subr.mxu0 0.0
    %148 = vmatpush1.msra.mxu0 %v120
    %149 = vmatprep.subr.mxu0 0.0
    %150 = vmatpush1.msra.mxu0 %v121
    %151 = vmatprep.subr.mxu0 0.0
    %152 = vmatpush1.msra.mxu0 %v122
    %153 = vmatprep.subr.mxu0 0.0
    %154 = vmatpush1.msra.mxu0 %v123
    %155 = vmatprep.subr.mxu0 0.0
    %156 = vmatpush1.msra.mxu0 %v124
    %157 = vmatprep.subr.mxu0 0.0
    %158 = vmatpush1.msra.mxu0 0.0
    %159 = vmatprep.subr.mxu0 0.0
    %160 = vmatpush1.msra.mxu0 0.0
    %161 = vmatprep.subr.mxu0 0.0
    %162 = vmatpush1.msra.mxu0 0.0
    %163 = vmatprep.subr.mxu0 0.0
    %164 = vmatpush1.msra.mxu0 0.0
    %165 = vmatprep.subr.mxu0 0.0
    %166 = vmatpush1.msra.mxu0 0.0
    %167 = vmatprep.subr.mxu0 0.0
    %168 = vmatpush1.msra.mxu0 0.0
    %169 = vmatprep.subr.mxu0 0.0
    %170 = vmatpush1.msra.mxu0 0.0
    %171 = vmatprep.subr.mxu0 0.0
    %172 = vmatpush1.msra.mxu0 0.0
    %173 = vmatprep.subr.mxu0 0.0
    %174 = vmatpush1.msra.mxu0 0.0
    %175 = vmatprep.subr.mxu0 0.0
    %176 = vmatpush1.msra.mxu0 0.0
    %177 = vmatprep.subr.mxu0 0.0
    %178 = vmatpush1.msra.mxu0 0.0
    %179 = vmatprep.subr.mxu0 0.0
    %180 = vmatpush1.msra.mxu0 0.0
    %181 = vmatprep.subr.mxu0 0.0
    %182 = vmatpush1.msra.mxu0 0.0
    %183 = vmatprep.subr.mxu0 0.0
    %184 = vmatpush1.msra.mxu0 0.0
    %185 = vmatprep.subr.mxu0 0.0
    %186 = vmatpush1.msra.mxu0 0.0
    %187 = vmatprep.subr.mxu0 0.0
    %188 = vmatpush1.msra.mxu0 0.0
    %189 = vmatprep.mubr.f32.mxu0 0.0
    %190 = vmatmul.mubr.f32.gmra.mrb[0].mxu0 %v106
    %v191 = vpop.f32.mrb[0].mxu0
    %v192 = vadd.f32 0.0, %v191
    %v193 = vpop.f32.mrb[0].mxu0
    %194 = vmatprep.mubr.f32.mxu0 0.0
    %195 = vmatmul.mubr.f32.gmra.mrb[0].mxu0 %v107
    %v196 = vpop.f32.mrb[0].mxu0
    %v197 = vadd.f32 0.0, %v196
    %v198 = vpop.f32.mrb[0].mxu0
    %199 = vdwg.mxu0
    %200 = vmatprep.subr.mxu0 0.0
    %201 = vmatpush1.msra.mxu0 %v90
    %202 = vmatprep.subr.mxu0 0.0
    %203 = vmatpush1.msra.mxu0 %v91
    %204 = vmatprep.subr.mxu0 0.0
    %205 = vmatpush1.msra.mxu0 %v92
    %206 = vmatprep.subr.mxu0 0.0
    %207 = vmatpush1.msra.mxu0 %v93
    %208 = vmatprep.subr.mxu0 0.0
    %209 = vmatpush1.msra.mxu0 %v94
    %210 = vmatprep.subr.mxu0 0.0
    %211 = vmatpush1.msra.mxu0 %v95
    %212 = vmatprep.subr.mxu0 0.0
    %213 = vmatpush1.msra.mxu0 %v96
    %214 = vmatprep.subr.mxu0 0.0
    %215 = vmatpush1.msra.mxu0 %v97
    %216 = vmatprep.subr.mxu0 0.0
    %217 = vmatpush1.msra.mxu0 %v98
    %218 = vmatprep.subr.mxu0 0.0
    %219 = vmatpush1.msra.mxu0 %v99
    %220 = vmatprep.subr.mxu0 0.0
    %221 = vmatpush1.msra.mxu0 %v100
    %222 = vmatprep.subr.mxu0 0.0
    %223 = vmatpush1.msra.mxu0 %v101
    %224 = vmatprep.subr.mxu0 0.0
    %225 = vmatpush1.msra.mxu0 %v102
    %226 = vmatprep.subr.mxu0 0.0
    %227 = vmatpush1.msra.mxu0 %v103
    %228 = vmatprep.subr.mxu0 0.0
    %229 = vmatpush1.msra.mxu0 %v104
    %230 = vmatprep.subr.mxu0 0.0
    %231 = vmatpush1.msra.mxu0 %v105
    %232 = vmatprep.subr.mxu0 0.0
    %233 = vmatpush1.msra.mxu0 0.0
    %234 = vmatprep.subr.mxu0 0.0
    %235 = vmatpush1.msra.mxu0 0.0
    %236 = vmatprep.subr.mxu0 0.0
    %237 = vmatpush1.msra.mxu0 0.0
    %238 = vmatprep.subr.mxu0 0.0
    %239 = vmatpush1.msra.mxu0 0.0
    %240 = vmatprep.subr.mxu0 0.0
    %241 = vmatpush1.msra.mxu0 0.0
    %242 = vmatprep.subr.mxu0 0.0
    %243 = vmatpush1.msra.mxu0 0.0
    %244 = vmatprep.subr.mxu0 0.0
    %245 = vmatpush1.msra.mxu0 0.0
    %246 = vmatprep.subr.mxu0 0.0
    %247 = vmatpush1.msra.mxu0 0.0
    %248 = vmatprep.subr.mxu0 0.0
    %249 = vmatpush1.msra.mxu0 0.0
    %250 = vmatprep.subr.mxu0 0.0
    %251 = vmatpush1.msra.mxu0 0.0
    %252 = vmatprep.subr.mxu0 0.0
    %253 = vmatpush1.msra.mxu0 0.0
    %254 = vmatprep.subr.mxu0 0.0
    %255 = vmatpush1.msra.mxu0 0.0
    %256 = vmatprep.subr.mxu0 0.0
    %257 = vmatpush1.msra.mxu0 0.0
    %258 = vmatprep.subr.mxu0 0.0
    %259 = vmatpush1.msra.mxu0 0.0
    %260 = vmatprep.subr.mxu0 0.0
    %261 = vmatpush1.msra.mxu0 0.0
    %262 = vmatprep.subr.mxu0 0.0
    %263 = vmatpush1.msra.mxu0 0.0
    %264 = vmatprep.mubr.f32.mxu0 0.0
    %265 = vmatmul.mubr.f32.gmra.mrb[0].mxu0 %v88
    %v266 = vpop.f32.mrb[0].mxu0
    %v267 = vadd.f32 %v192, %v266
    %v268 = vpop.f32.mrb[0].mxu0
    %269 = vmatprep.mubr.f32.mxu0 0.0
    %270 = vmatmul.mubr.f32.gmra.mrb[0].mxu0 %v89
    %v271 = vpop.f32.mrb[0].mxu0
    %v272 = vadd.f32 %v197, %v271
    %v273 = vpop.f32.mrb[0].mxu0
    %274 = vdwg.mxu0
    %v275 = vld [vmem:[%s2] sm:$0xff]
    %v276 = vld [vmem:[%s2 + $0x8] sm:$0xff]
    %v277 = vld [vmem:[%s2 + $0x10] sm:$0xff]
    %v278 = vld [vmem:[%s2 + $0x18] sm:$0xff]
    %v279 = vld [vmem:[%s2 + $0x20] sm:$0xff]
    %v280 = vld [vmem:[%s2 + $0x28] sm:$0xff]
    %v281 = vld [vmem:[%s2 + $0x30] sm:$0xff]
    %vm282 = vcmask 457728
    %v283 = vsel %vm282, %v267, 0.0
    %vm284 = vcmask 455680
    %v285 = vsel %vm284, %v272, 0.0
    %v286 = vadd.f32 %v283, %v285
    %v287 = vrot.slane %v286, 4
    %v288 = vadd.f32 %v286, %v287
    %v289 = vrot.slane %v288, 2
    %v290 = vadd.f32 %v288, %v289
    %v291 = vrot.slane %v290, 1
    %v292 = vadd.f32 %v290, %v291
    %v294 = vsel %vm282, %v292, 0
    %296 = vmatprep.subr.mxu0 0.0
    %297 = vmatpush1.msra.mxu0 %v275
    %298 = vmatprep.subr.mxu0 0.0
    %299 = vmatpush1.msra.mxu0 %v276
    %300 = vmatprep.subr.mxu0 0.0
    %301 = vmatpush1.msra.mxu0 %v277
    %302 = vmatprep.subr.mxu0 0.0
    %303 = vmatpush1.msra.mxu0 %v278
    %304 = vmatprep.subr.mxu0 0.0
    %305 = vmatpush1.msra.mxu0 %v279
    %306 = vmatprep.subr.mxu0 0.0
    %307 = vmatpush1.msra.mxu0 %v280
    %308 = vmatprep.subr.mxu0 0.0
    %309 = vmatpush1.msra.mxu0 %v281
    %310 = vmatprep.subr.mxu0 0.0
    %311 = vmatpush1.msra.mxu0 0.0
    %312 = vmatprep.subr.mxu0 0.0
    %313 = vmatpush1.msra.mxu0 0.0
    %314 = vmatprep.subr.mxu0 0.0
    %315 = vmatpush1.msra.mxu0 0.0
    %316 = vmatprep.subr.mxu0 0.0
    %317 = vmatpush1.msra.mxu0 0.0
    %318 = vmatprep.subr.mxu0 0.0
    %319 = vmatpush1.msra.mxu0 0.0
    %320 = vmatprep.subr.mxu0 0.0
    %321 = vmatpush1.msra.mxu0 0.0
    %322 = vmatprep.subr.mxu0 0.0
    %323 = vmatpush1.msra.mxu0 0.0
    %324 = vmatprep.subr.mxu0 0.0
    %325 = vmatpush1.msra.mxu0 0.0
    %326 = vmatprep.subr.mxu0 0.0
    %327 = vmatpush1.msra.mxu0 0.0
    %328 = vmatprep.subr.mxu0 0.0
    %329 = vmatpush1.msra.mxu0 0.0
    %330 = vmatprep.subr.mxu0 0.0
    %331 = vmatpush1.msra.mxu0 0.0
    %332 = vmatprep.subr.mxu0 0.0
    %333 = vmatpush1.msra.mxu0 0.0
    %334 = vmatprep.subr.mxu0 0.0
    %335 = vmatpush1.msra.mxu0 0.0
    %336 = vmatprep.subr.mxu0 0.0
    %337 = vmatpush1.msra.mxu0 0.0
    %338 = vmatprep.subr.mxu0 0.0
    %339 = vmatpush1.msra.mxu0 0.0
    %340 = vmatprep.subr.mxu0 0.0
    %341 = vmatpush1.msra.mxu0 0.0
    %342 = vmatprep.subr.mxu0 0.0
    %343 = vmatpush1.msra.mxu0 0.0
    %344 = vmatprep.subr.mxu0 0.0
    %345 = vmatpush1.msra.mxu0 0.0
    %346 = vmatprep.subr.mxu0 0.0
    %347 = vmatpush1.msra.mxu0 0.0
    %348 = vmatprep.subr.mxu0 0.0
    %349 = vmatpush1.msra.mxu0 0.0
    %350 = vmatprep.subr.mxu0 0.0
    %351 = vmatpush1.msra.mxu0 0.0
    %352 = vmatprep.subr.mxu0 0.0
    %353 = vmatpush1.msra.mxu0 0.0
    %354 = vmatprep.subr.mxu0 0.0
    %355 = vmatpush1.msra.mxu0 0.0
    %356 = vmatprep.subr.mxu0 0.0
    %357 = vmatpush1.msra.mxu0 0.0
    %358 = vmatprep.subr.mxu0 0.0
    %359 = vmatpush1.msra.mxu0 0.0
    %360 = vmatprep.mubr.f32.mxu0 0.0
    %361 = vmatmul.mubr.f32.gmra.mrb[0].mxu0 %v294
    %v362 = vpop.f32.mrb[0].mxu0
    %v363 = vadd.f32 0.0, %v362
    %v364 = vpop.f32.mrb[0].mxu0
    %365 = vdwg.mxu0
    %v366 = vmul.f32 %v267, %v267
    %v367 = vmul.f32 %v272, %v272
    %v368 = vsel %vm282, %v366, 0.0
    %v369 = vsel %vm284, %v367, 0.0
    %v370 = vadd.f32 %v368, %v369
    %v371 = vrot.slane %v370, 4
    %v372 = vadd.f32 %v370, %v371
    %v373 = vrot.slane %v372, 2
    %v374 = vadd.f32 %v372, %v373
    %v375 = vrot.slane %v374, 1
    %v376 = vadd.f32 %v374, %v375
    %v378 = vsel %vm282, %v376, 0
    %380 = vmatprep.subr.mxu0 0.0
    %381 = vmatpush1.msra.mxu0 %v275
    %382 = vmatprep.subr.mxu0 0.0
    %383 = vmatpush1.msra.mxu0 %v276
    %384 = vmatprep.subr.mxu0 0.0
    %385 = vmatpush1.msra.mxu0 %v277
    %386 = vmatprep.subr.mxu0 0.0
    %387 = vmatpush1.msra.mxu0 %v278
    %388 = vmatprep.subr.mxu0 0.0
    %389 = vmatpush1.msra.mxu0 %v279
    %390 = vmatprep.subr.mxu0 0.0
    %391 = vmatpush1.msra.mxu0 %v280
    %392 = vmatprep.subr.mxu0 0.0
    %393 = vmatpush1.msra.mxu0 %v281
    %394 = vmatprep.subr.mxu0 0.0
    %395 = vmatpush1.msra.mxu0 0.0
    %396 = vmatprep.subr.mxu0 0.0
    %397 = vmatpush1.msra.mxu0 0.0
    %398 = vmatprep.subr.mxu0 0.0
    %399 = vmatpush1.msra.mxu0 0.0
    %400 = vmatprep.subr.mxu0 0.0
    %401 = vmatpush1.msra.mxu0 0.0
    %402 = vmatprep.subr.mxu0 0.0
    %403 = vmatpush1.msra.mxu0 0.0
    %404 = vmatprep.subr.mxu0 0.0
    %405 = vmatpush1.msra.mxu0 0.0
    %406 = vmatprep.subr.mxu0 0.0
    %407 = vmatpush1.msra.mxu0 0.0
    %408 = vmatprep.subr.mxu0 0.0
    %409 = vmatpush1.msra.mxu0 0.0
    %410 = vmatprep.subr.mxu0 0.0
    %411 = vmatpush1.msra.mxu0 0.0
    %412 = vmatprep.subr.mxu0 0.0
    %413 = vmatpush1.msra.mxu0 0.0
    %414 = vmatprep.subr.mxu0 0.0
    %415 = vmatpush1.msra.mxu0 0.0
    %416 = vmatprep.subr.mxu0 0.0
    %417 = vmatpush1.msra.mxu0 0.0
    %418 = vmatprep.subr.mxu0 0.0
    %419 = vmatpush1.msra.mxu0 0.0
    %420 = vmatprep.subr.mxu0 0.0
    %421 = vmatpush1.msra.mxu0 0.0
    %422 = vmatprep.subr.mxu0 0.0
    %423 = vmatpush1.msra.mxu0 0.0
    %424 = vmatprep.subr.mxu0 0.0
    %425 = vmatpush1.msra.mxu0 0.0
    %426 = vmatprep.subr.mxu0 0.0
    %427 = vmatpush1.msra.mxu0 0.0
    %428 = vmatprep.subr.mxu0 0.0
    %429 = vmatpush1.msra.mxu0 0.0
    %430 = vmatprep.subr.mxu0 0.0
    %431 = vmatpush1.msra.mxu0 0.0
    %432 = vmatprep.subr.mxu0 0.0
    %433 = vmatpush1.msra.mxu0 0.0
    %434 = vmatprep.subr.mxu0 0.0
    %435 = vmatpush1.msra.mxu0 0.0
    %436 = vmatprep.subr.mxu0 0.0
    %437 = vmatpush1.msra.mxu0 0.0
    %438 = vmatprep.subr.mxu0 0.0
    %439 = vmatpush1.msra.mxu0 0.0
    %440 = vmatprep.subr.mxu0 0.0
    %441 = vmatpush1.msra.mxu0 0.0
    %442 = vmatprep.subr.mxu0 0.0
    %443 = vmatpush1.msra.mxu0 0.0
    %444 = vmatprep.mubr.f32.mxu0 0.0
    %445 = vmatmul.mubr.f32.gmra.mrb[0].mxu0 %v378
    %v446 = vpop.f32.mrb[0].mxu0
    %v447 = vadd.f32 0.0, %v446
    %v448 = vpop.f32.mrb[0].mxu0
    %449 = vdwg.mxu0
    %v450 = vrcp.pop 98.0
    %v451 = vmul.f32 %v363, %v450
    %v452 = vmul.f32 %v447, %v450
    %v453 = vmul.f32 %v451, %v451
    %v454 = vsub.f32 %v452, %v453
    %v455 = vmax.f32 %v454, 0.0
    %v456 = vadd.f32 %v455, 1e-05
    %v457 = vrsqrt.pop %v456
    %v458 = vld [vmem:[%s3] sm:$0x1]
    %v459 = vmul.f32 %v458, %v457
    %v460 = vld [vmem:[%s4] sm:$0x1]
    %v461 = vmul.f32 %v451, %v459
    %v462 = vsub.f32 %v460, %v461
    %v464 = vsel %vm80, %v459, 0
    %v467 = vsel %vm80, %v275, 0
    %v470 = vsel %vm80, %v276, 0
    %v473 = vsel %vm80, %v277, 0
    %v476 = vsel %vm80, %v278, 0
    %v479 = vsel %vm80, %v279, 0
    %v482 = vsel %vm80, %v280, 0
    %v485 = vsel %vm80, %v281, 0
    %487 = vmatprep.subr.mxu0 0.0
    %488 = vmatpush1.xpose.msra.mxu0 %v467
    %489 = vmatprep.subr.mxu0 0.0
    %490 = vmatpush1.xpose.msra.mxu0 %v470
    %491 = vmatprep.subr.mxu0 0.0
    %492 = vmatpush1.xpose.msra.mxu0 %v473
    %493 = vmatprep.subr.mxu0 0.0
    %494 = vmatpush1.xpose.msra.mxu0 %v476
    %495 = vmatprep.subr.mxu0 0.0
    %496 = vmatpush1.xpose.msra.mxu0 %v479
    %497 = vmatprep.subr.mxu0 0.0
    %498 = vmatpush1.xpose.msra.mxu0 %v482
    %499 = vmatprep.subr.mxu0 0.0
    %500 = vmatpush1.xpose.msra.mxu0 %v485
    %501 = vmatprep.subr.mxu0 0.0
    %502 = vmatpush1.xpose.msra.mxu0 0.0
    %503 = vmatprep.subr.mxu0 0.0
    %504 = vmatpush1.xpose.msra.mxu0 0.0
    %505 = vmatprep.subr.mxu0 0.0
    %506 = vmatpush1.xpose.msra.mxu0 0.0
    %507 = vmatprep.subr.mxu0 0.0
    %508 = vmatpush1.xpose.msra.mxu0 0.0
    %509 = vmatprep.subr.mxu0 0.0
    %510 = vmatpush1.xpose.msra.mxu0 0.0
    %511 = vmatprep.subr.mxu0 0.0
    %512 = vmatpush1.xpose.msra.mxu0 0.0
    %513 = vmatprep.subr.mxu0 0.0
    %514 = vmatpush1.xpose.msra.mxu0 0.0
    %515 = vmatprep.subr.mxu0 0.0
    %516 = vmatpush1.xpose.msra.mxu0 0.0
    %517 = vmatprep.subr.mxu0 0.0
    %518 = vmatpush1.xpose.msra.mxu0 0.0
    %519 = vmatprep.subr.mxu0 0.0
    %520 = vmatpush1.xpose.msra.mxu0 0.0
    %521 = vmatprep.subr.mxu0 0.0
    %522 = vmatpush1.xpose.msra.mxu0 0.0
    %523 = vmatprep.subr.mxu0 0.0
    %524 = vmatpush1.xpose.msra.mxu0 0.0
    %525 = vmatprep.subr.mxu0 0.0
    %526 = vmatpush1.xpose.msra.mxu0 0.0
    %527 = vmatprep.subr.mxu0 0.0
    %528 = vmatpush1.xpose.msra.mxu0 0.0
    %529 = vmatprep.subr.mxu0 0.0
    %530 = vmatpush1.xpose.msra.mxu0 0.0
    %531 = vmatprep.subr.mxu0 0.0
    %532 = vmatpush1.xpose.msra.mxu0 0.0
    %533 = vmatprep.subr.mxu0 0.0
    %534 = vmatpush1.xpose.msra.mxu0 0.0
    %535 = vmatprep.subr.mxu0 0.0
    %536 = vmatpush1.xpose.msra.mxu0 0.0
    %537 = vmatprep.subr.mxu0 0.0
    %538 = vmatpush1.xpose.msra.mxu0 0.0
    %539 = vmatprep.subr.mxu0 0.0
    %540 = vmatpush1.xpose.msra.mxu0 0.0
    %541 = vmatprep.subr.mxu0 0.0
    %542 = vmatpush1.xpose.msra.mxu0 0.0
    %543 = vmatprep.subr.mxu0 0.0
    %544 = vmatpush1.xpose.msra.mxu0 0.0
    %545 = vmatprep.subr.mxu0 0.0
    %546 = vmatpush1.xpose.msra.mxu0 0.0
    %547 = vmatprep.subr.mxu0 0.0
    %548 = vmatpush1.xpose.msra.mxu0 0.0
    %549 = vmatprep.subr.mxu0 0.0
    %550 = vmatpush1.xpose.msra.mxu0 0.0
    %551 = vmatprep.mubr.f32.mxu0 0.0
    %552 = vmatmul.mubr.f32.gmra.mrb[0].mxu0 %v464
    %v553 = vpop.f32.mrb[0].mxu0
    %v554 = vadd.f32 0.0, %v553
    %v555 = vpop.f32.mrb[0].mxu0
    %556 = vdwg.mxu0
    %v558 = vsel %vm80, %v462, 0
    %560 = vmatprep.subr.mxu0 0.0
    %561 = vmatpush1.xpose.msra.mxu0 %v467
    %562 = vmatprep.subr.mxu0 0.0
    %563 = vmatpush1.xpose.msra.mxu0 %v470
    %564 = vmatprep.subr.mxu0 0.0
    %565 = vmatpush1.xpose.msra.mxu0 %v473
    %566 = vmatprep.subr.mxu0 0.0
    %567 = vmatpush1.xpose.msra.mxu0 %v476
    %568 = vmatprep.subr.mxu0 0.0
    %569 = vmatpush1.xpose.msra.mxu0 %v479
    %570 = vmatprep.subr.mxu0 0.0
    %571 = vmatpush1.xpose.msra.mxu0 %v482
    %572 = vmatprep.subr.mxu0 0.0
    %573 = vmatpush1.xpose.msra.mxu0 %v485
    %574 = vmatprep.subr.mxu0 0.0
    %575 = vmatpush1.xpose.msra.mxu0 0.0
    %576 = vmatprep.subr.mxu0 0.0
    %577 = vmatpush1.xpose.msra.mxu0 0.0
    %578 = vmatprep.subr.mxu0 0.0
    %579 = vmatpush1.xpose.msra.mxu0 0.0
    %580 = vmatprep.subr.mxu0 0.0
    %581 = vmatpush1.xpose.msra.mxu0 0.0
    %582 = vmatprep.subr.mxu0 0.0
    %583 = vmatpush1.xpose.msra.mxu0 0.0
    %584 = vmatprep.subr.mxu0 0.0
    %585 = vmatpush1.xpose.msra.mxu0 0.0
    %586 = vmatprep.subr.mxu0 0.0
    %587 = vmatpush1.xpose.msra.mxu0 0.0
    %588 = vmatprep.subr.mxu0 0.0
    %589 = vmatpush1.xpose.msra.mxu0 0.0
    %590 = vmatprep.subr.mxu0 0.0
    %591 = vmatpush1.xpose.msra.mxu0 0.0
    %592 = vmatprep.subr.mxu0 0.0
    %593 = vmatpush1.xpose.msra.mxu0 0.0
    %594 = vmatprep.subr.mxu0 0.0
    %595 = vmatpush1.xpose.msra.mxu0 0.0
    %596 = vmatprep.subr.mxu0 0.0
    %597 = vmatpush1.xpose.msra.mxu0 0.0
    %598 = vmatprep.subr.mxu0 0.0
    %599 = vmatpush1.xpose.msra.mxu0 0.0
    %600 = vmatprep.subr.mxu0 0.0
    %601 = vmatpush1.xpose.msra.mxu0 0.0
    %602 = vmatprep.subr.mxu0 0.0
    %603 = vmatpush1.xpose.msra.mxu0 0.0
    %604 = vmatprep.subr.mxu0 0.0
    %605 = vmatpush1.xpose.msra.mxu0 0.0
    %606 = vmatprep.subr.mxu0 0.0
    %607 = vmatpush1.xpose.msra.mxu0 0.0
    %608 = vmatprep.subr.mxu0 0.0
    %609 = vmatpush1.xpose.msra.mxu0 0.0
    %610 = vmatprep.subr.mxu0 0.0
    %611 = vmatpush1.xpose.msra.mxu0 0.0
    %612 = vmatprep.subr.mxu0 0.0
    %613 = vmatpush1.xpose.msra.mxu0 0.0
    %614 = vmatprep.subr.mxu0 0.0
    %615 = vmatpush1.xpose.msra.mxu0 0.0
    %616 = vmatprep.subr.mxu0 0.0
    %617 = vmatpush1.xpose.msra.mxu0 0.0
    %618 = vmatprep.subr.mxu0 0.0
    %619 = vmatpush1.xpose.msra.mxu0 0.0
    %620 = vmatprep.subr.mxu0 0.0
    %621 = vmatpush1.xpose.msra.mxu0 0.0
    %622 = vmatprep.subr.mxu0 0.0
    %623 = vmatpush1.xpose.msra.mxu0 0.0
    %624 = vmatprep.mubr.f32.mxu0 0.0
    %625 = vmatmul.mubr.f32.gmra.mrb[0].mxu0 %v558
    %v626 = vpop.f32.mrb[0].mxu0
    %v627 = vadd.f32 0.0, %v626
    %v628 = vpop.f32.mrb[0].mxu0
    %629 = vdwg.mxu0
    %v630 = vlaneseq
    %v631 = vshrl.u32 %v630, 7
    %v632 = vsub.s32 0, %v631
    %v633 = vrot.slane %v554, %v632
    %v634 = vmul.f32 %v267, %v633
    %v635 = vmul.f32 %v272, %v633
    %v636 = vlaneseq
    %v637 = vshrl.u32 %v636, 7
    %v638 = vsub.s32 0, %v637
    %v639 = vrot.slane %v627, %v638
    %v640 = vadd.f32 %v634, %v639
    %v641 = vadd.f32 %v635, %v639
    %v642 = vmax.f32 %v640, 0.0
    %v643 = vmax.f32 %v641, 0.0
    %644 = vst.msk [vmem:[#allocation2] sm:$0xff] %vm282, %v642
    %645 = vst.msk [vmem:[#allocation2 + $0x8] sm:$0x3f] %vm284, %v643
    %v646 = vld [vmem:[#allocation2] sm:$0xff]
    %v647 = vld [vmem:[#allocation2 + $0x8] sm:$0x3]
    %v648 = vld [vmem:[%s5] sm:$0xff]
    %v649 = vld [vmem:[%s5 + $0x8] sm:$0xff]
    %v650 = vld [vmem:[%s5 + $0x10] sm:$0xff]
    %v651 = vld [vmem:[%s5 + $0x18] sm:$0xff]
    %v652 = vld [vmem:[%s5 + $0x20] sm:$0xff]
    %v653 = vld [vmem:[%s5 + $0x28] sm:$0xff]
    %v654 = vld [vmem:[%s5 + $0x30] sm:$0xff]
    %v655 = vld [vmem:[#allocation2 + $0x2] sm:$0xff]
    %v656 = vld [vmem:[#allocation2 + $0xa] sm:$0x3]
    %s657 = scalar_lea.vmem %s5, 56
    %v658 = vld [vmem:[%s657] sm:$0xff]
    %v659 = vld [vmem:[%s657 + $0x8] sm:$0xff]
    %v660 = vld [vmem:[%s657 + $0x10] sm:$0xff]
    %v661 = vld [vmem:[%s657 + $0x18] sm:$0xff]
    %v662 = vld [vmem:[%s657 + $0x20] sm:$0xff]
    %v663 = vld [vmem:[%s657 + $0x28] sm:$0xff]
    %v664 = vld [vmem:[%s657 + $0x30] sm:$0xff]
    %v666 = vsel %vm282, %v655, 0
    %v669 = vsel %vm282, %v656, 0
    %671 = vmatprep.subr.mxu0 0.0
    %672 = vmatpush1.msra.mxu0 %v658
    %673 = vmatprep.subr.mxu0 0.0
    %674 = vmatpush1.msra.mxu0 %v659
    %675 = vmatprep.subr.mxu0 0.0
    %676 = vmatpush1.msra.mxu0 %v660
    %677 = vmatprep.subr.mxu0 0.0
    %678 = vmatpush1.msra.mxu0 %v661
    %679 = vmatprep.subr.mxu0 0.0
    %680 = vmatpush1.msra.mxu0 %v662
    %681 = vmatprep.subr.mxu0 0.0
    %682 = vmatpush1.msra.mxu0 %v663
    %683 = vmatprep.subr.mxu0 0.0
    %684 = vmatpush1.msra.mxu0 %v664
    %685 = vmatprep.subr.mxu0 0.0
    %686 = vmatpush1.msra.mxu0 0.0
    %687 = vmatprep.subr.mxu0 0.0
    %688 = vmatpush1.msra.mxu0 0.0
    %689 = vmatprep.subr.mxu0 0.0
    %690 = vmatpush1.msra.mxu0 0.0
    %691 = vmatprep.subr.mxu0 0.0
    %692 = vmatpush1.msra.mxu0 0.0
    %693 = vmatprep.subr.mxu0 0.0
    %694 = vmatpush1.msra.mxu0 0.0
    %695 = vmatprep.subr.mxu0 0.0
    %696 = vmatpush1.msra.mxu0 0.0
    %697 = vmatprep.subr.mxu0 0.0
    %698 = vmatpush1.msra.mxu0 0.0
    %699 = vmatprep.subr.mxu0 0.0
    %700 = vmatpush1.msra.mxu0 0.0
    %701 = vmatprep.subr.mxu0 0.0
    %702 = vmatpush1.msra.mxu0 0.0
    %703 = vmatprep.subr.mxu0 0.0
    %704 = vmatpush1.msra.mxu0 0.0
    %705 = vmatprep.subr.mxu0 0.0
    %706 = vmatpush1.msra.mxu0 0.0
    %707 = vmatprep.subr.mxu0 0.0
    %708 = vmatpush1.msra.mxu0 0.0
    %709 = vmatprep.subr.mxu0 0.0
    %710 = vmatpush1.msra.mxu0 0.0
    %711 = vmatprep.subr.mxu0 0.0
    %712 = vmatpush1.msra.mxu0 0.0
    %713 = vmatprep.subr.mxu0 0.0
    %714 = vmatpush1.msra.mxu0 0.0
    %715 = vmatprep.subr.mxu0 0.0
    %716 = vmatpush1.msra.mxu0 0.0
    %717 = vmatprep.subr.mxu0 0.0
    %718 = vmatpush1.msra.mxu0 0.0
    %719 = vmatprep.subr.mxu0 0.0
    %720 = vmatpush1.msra.mxu0 0.0
    %721 = vmatprep.subr.mxu0 0.0
    %722 = vmatpush1.msra.mxu0 0.0
    %723 = vmatprep.subr.mxu0 0.0
    %724 = vmatpush1.msra.mxu0 0.0
    %725 = vmatprep.subr.mxu0 0.0
    %726 = vmatpush1.msra.mxu0 0.0
    %727 = vmatprep.subr.mxu0 0.0
    %728 = vmatpush1.msra.mxu0 0.0
    %729 = vmatprep.subr.mxu0 0.0
    %730 = vmatpush1.msra.mxu0 0.0
    %731 = vmatprep.subr.mxu0 0.0
    %732 = vmatpush1.msra.mxu0 0.0
    %733 = vmatprep.subr.mxu0 0.0
    %734 = vmatpush1.msra.mxu0 0.0
    %735 = vmatprep.mubr.f32.mxu0 0.0
    %736 = vmatmul.mubr.f32.gmra.mrb[0].mxu0 %v666
    %v737 = vpop.f32.mrb[0].mxu0
    %v738 = vadd.f32 0.0, %v737
    %v739 = vpop.f32.mrb[0].mxu0
    %740 = vmatprep.mubr.f32.mxu0 0.0
    %741 = vmatmul.mubr.f32.gmra.mrb[0].mxu0 %v669
    %v742 = vpop.f32.mrb[0].mxu0
    %v743 = vadd.f32 0.0, %v742
    %v744 = vpop.f32.mrb[0].mxu0
    %745 = vdwg.mxu0
    %v747 = vsel %vm282, %v646, 0
    %v750 = vsel %vm282, %v647, 0
    %752 = vmatprep.subr.mxu0 0.0
    %753 = vmatpush1.msra.mxu0 %v648
    %754 = vmatprep.subr.mxu0 0.0
    %755 = vmatpush1.msra.mxu0 %v649
    %756 = vmatprep.subr.mxu0 0.0
    %757 = vmatpush1.msra.mxu0 %v650
    %758 = vmatprep.subr.mxu0 0.0
    %759 = vmatpush1.msra.mxu0 %v651
    %760 = vmatprep.subr.mxu0 0.0
    %761 = vmatpush1.msra.mxu0 %v652
    %762 = vmatprep.subr.mxu0 0.0
    %763 = vmatpush1.msra.mxu0 %v653
    %764 = vmatprep.subr.mxu0 0.0
    %765 = vmatpush1.msra.mxu0 %v654
    %766 = vmatprep.subr.mxu0 0.0
    %767 = vmatpush1.msra.mxu0 0.0
    %768 = vmatprep.subr.mxu0 0.0
    %769 = vmatpush1.msra.mxu0 0.0
    %770 = vmatprep.subr.mxu0 0.0
    %771 = vmatpush1.msra.mxu0 0.0
    %772 = vmatprep.subr.mxu0 0.0
    %773 = vmatpush1.msra.mxu0 0.0
    %774 = vmatprep.subr.mxu0 0.0
    %775 = vmatpush1.msra.mxu0 0.0
    %776 = vmatprep.subr.mxu0 0.0
    %777 = vmatpush1.msra.mxu0 0.0
    %778 = vmatprep.subr.mxu0 0.0
    %779 = vmatpush1.msra.mxu0 0.0
    %780 = vmatprep.subr.mxu0 0.0
    %781 = vmatpush1.msra.mxu0 0.0
    %782 = vmatprep.subr.mxu0 0.0
    %783 = vmatpush1.msra.mxu0 0.0
    %784 = vmatprep.subr.mxu0 0.0
    %785 = vmatpush1.msra.mxu0 0.0
    %786 = vmatprep.subr.mxu0 0.0
    %787 = vmatpush1.msra.mxu0 0.0
    %788 = vmatprep.subr.mxu0 0.0
    %789 = vmatpush1.msra.mxu0 0.0
    %790 = vmatprep.subr.mxu0 0.0
    %791 = vmatpush1.msra.mxu0 0.0
    %792 = vmatprep.subr.mxu0 0.0
    %793 = vmatpush1.msra.mxu0 0.0
    %794 = vmatprep.subr.mxu0 0.0
    %795 = vmatpush1.msra.mxu0 0.0
    %796 = vmatprep.subr.mxu0 0.0
    %797 = vmatpush1.msra.mxu0 0.0
    %798 = vmatprep.subr.mxu0 0.0
    %799 = vmatpush1.msra.mxu0 0.0
    %800 = vmatprep.subr.mxu0 0.0
    %801 = vmatpush1.msra.mxu0 0.0
    %802 = vmatprep.subr.mxu0 0.0
    %803 = vmatpush1.msra.mxu0 0.0
    %804 = vmatprep.subr.mxu0 0.0
    %805 = vmatpush1.msra.mxu0 0.0
    %806 = vmatprep.subr.mxu0 0.0
    %807 = vmatpush1.msra.mxu0 0.0
    %808 = vmatprep.subr.mxu0 0.0
    %809 = vmatpush1.msra.mxu0 0.0
    %810 = vmatprep.subr.mxu0 0.0
    %811 = vmatpush1.msra.mxu0 0.0
    %812 = vmatprep.subr.mxu0 0.0
    %813 = vmatpush1.msra.mxu0 0.0
    %814 = vmatprep.subr.mxu0 0.0
    %815 = vmatpush1.msra.mxu0 0.0
    %816 = vmatprep.mubr.f32.mxu0 0.0
    %817 = vmatmul.mubr.f32.gmra.mrb[0].mxu0 %v747
    %v818 = vpop.f32.mrb[0].mxu0
    %v819 = vadd.f32 %v738, %v818
    %v820 = vpop.f32.mrb[0].mxu0
    %821 = vmatprep.mubr.f32.mxu0 0.0
    %822 = vmatmul.mubr.f32.gmra.mrb[0].mxu0 %v750
    %v823 = vpop.f32.mrb[0].mxu0
    %v824 = vadd.f32 %v743, %v823
    %v825 = vpop.f32.mrb[0].mxu0
    %826 = vdwg.mxu0
    %v827 = vld [vmem:[#allocation2 + $0x4] sm:$0xff]
    %v828 = vld [vmem:[#allocation2 + $0xc] sm:$0x3]
    %s829 = scalar_lea.vmem %s5, 112
    %v830 = vld [vmem:[%s829] sm:$0xff]
    %v831 = vld [vmem:[%s829 + $0x8] sm:$0xff]
    %v832 = vld [vmem:[%s829 + $0x10] sm:$0xff]
    %v833 = vld [vmem:[%s829 + $0x18] sm:$0xff]
    %v834 = vld [vmem:[%s829 + $0x20] sm:$0xff]
    %v835 = vld [vmem:[%s829 + $0x28] sm:$0xff]
    %v836 = vld [vmem:[%s829 + $0x30] sm:$0xff]
    %v838 = vsel %vm282, %v827, 0
    %v841 = vsel %vm282, %v828, 0
    %843 = vmatprep.subr.mxu0 0.0
    %844 = vmatpush1.msra.mxu0 %v830
    %845 = vmatprep.subr.mxu0 0.0
    %846 = vmatpush1.msra.mxu0 %v831
    %847 = vmatprep.subr.mxu0 0.0
    %848 = vmatpush1.msra.mxu0 %v832
    %849 = vmatprep.subr.mxu0 0.0
    %850 = vmatpush1.msra.mxu0 %v833
    %851 = vmatprep.subr.mxu0 0.0
    %852 = vmatpush1.msra.mxu0 %v834
    %853 = vmatprep.subr.mxu0 0.0
    %854 = vmatpush1.msra.mxu0 %v835
    %855 = vmatprep.subr.mxu0 0.0
    %856 = vmatpush1.msra.mxu0 %v836
    %857 = vmatprep.subr.mxu0 0.0
    %858 = vmatpush1.msra.mxu0 0.0
    %859 = vmatprep.subr.mxu0 0.0
    %860 = vmatpush1.msra.mxu0 0.0
    %861 = vmatprep.subr.mxu0 0.0
    %862 = vmatpush1.msra.mxu0 0.0
    %863 = vmatprep.subr.mxu0 0.0
    %864 = vmatpush1.msra.mxu0 0.0
    %865 = vmatprep.subr.mxu0 0.0
    %866 = vmatpush1.msra.mxu0 0.0
    %867 = vmatprep.subr.mxu0 0.0
    %868 = vmatpush1.msra.mxu0 0.0
    %869 = vmatprep.subr.mxu0 0.0
    %870 = vmatpush1.msra.mxu0 0.0
    %871 = vmatprep.subr.mxu0 0.0
    %872 = vmatpush1.msra.mxu0 0.0
    %873 = vmatprep.subr.mxu0 0.0
    %874 = vmatpush1.msra.mxu0 0.0
    %875 = vmatprep.subr.mxu0 0.0
    %876 = vmatpush1.msra.mxu0 0.0
    %877 = vmatprep.subr.mxu0 0.0
    %878 = vmatpush1.msra.mxu0 0.0
    %879 = vmatprep.subr.mxu0 0.0
    %880 = vmatpush1.msra.mxu0 0.0
    %881 = vmatprep.subr.mxu0 0.0
    %882 = vmatpush1.msra.mxu0 0.0
    %883 = vmatprep.subr.mxu0 0.0
    %884 = vmatpush1.msra.mxu0 0.0
    %885 = vmatprep.subr.mxu0 0.0
    %886 = vmatpush1.msra.mxu0 0.0
    %887 = vmatprep.subr.mxu0 0.0
    %888 = vmatpush1.msra.mxu0 0.0
    %889 = vmatprep.subr.mxu0 0.0
    %890 = vmatpush1.msra.mxu0 0.0
    %891 = vmatprep.subr.mxu0 0.0
    %892 = vmatpush1.msra.mxu0 0.0
    %893 = vmatprep.subr.mxu0 0.0
    %894 = vmatpush1.msra.mxu0 0.0
    %895 = vmatprep.subr.mxu0 0.0
    %896 = vmatpush1.msra.mxu0 0.0
    %897 = vmatprep.subr.mxu0 0.0
    %898 = vmatpush1.msra.mxu0 0.0
    %899 = vmatprep.subr.mxu0 0.0
    %900 = vmatpush1.msra.mxu0 0.0
    %901 = vmatprep.subr.mxu0 0.0
    %902 = vmatpush1.msra.mxu0 0.0
    %903 = vmatprep.subr.mxu0 0.0
    %904 = vmatpush1.msra.mxu0 0.0
    %905 = vmatprep.subr.mxu0 0.0
    %906 = vmatpush1.msra.mxu0 0.0
    %907 = vmatprep.mubr.f32.mxu0 0.0
    %908 = vmatmul.mubr.f32.gmra.mrb[0].mxu0 %v838
    %v909 = vpop.f32.mrb[0].mxu0
    %v910 = vadd.f32 0.0, %v909
    %v911 = vpop.f32.mrb[0].mxu0
    %912 = vmatprep.mubr.f32.mxu0 0.0
    %913 = vmatmul.mubr.f32.gmra.mrb[0].mxu0 %v841
    %v914 = vpop.f32.mrb[0].mxu0
    %v915 = vadd.f32 0.0, %v914
    %v916 = vpop.f32.mrb[0].mxu0
    %917 = vdwg.mxu0
    %v918 = vadd.f32 %v819, %v910
    %v919 = vadd.f32 %v824, %v915
    %v920 = vld [vmem:[%s6] sm:$0xff]
    %v921 = vld [vmem:[%s6 + $0x8] sm:$0xff]
    %v922 = vld [vmem:[%s6 + $0x10] sm:$0xff]
    %v923 = vld [vmem:[%s6 + $0x18] sm:$0xff]
    %v924 = vld [vmem:[%s6 + $0x20] sm:$0xff]
    %vm925 = vcmask 326656
    %v926 = vsel %vm925, %v918, 0.0
    %vm927 = vcmask 320512
    %v928 = vsel %vm927, %v919, 0.0
    %v929 = vadd.f32 %v926, %v928
    %v930 = vrot.slane %v929, 4
    %v931 = vadd.f32 %v929, %v930
    %v932 = vrot.slane %v931, 2
    %v933 = vadd.f32 %v931, %v932
    %v934 = vrot.slane %v933, 1
    %v935 = vadd.f32 %v933, %v934
    %v937 = vsel %vm925, %v935, 0
    %939 = vmatprep.subr.mxu0 0.0
    %940 = vmatpush1.msra.mxu0 %v920
    %941 = vmatprep.subr.mxu0 0.0
    %942 = vmatpush1.msra.mxu0 %v921
    %943 = vmatprep.subr.mxu0 0.0
    %944 = vmatpush1.msra.mxu0 %v922
    %945 = vmatprep.subr.mxu0 0.0
    %946 = vmatpush1.msra.mxu0 %v923
    %947 = vmatprep.subr.mxu0 0.0
    %948 = vmatpush1.msra.mxu0 %v924
    %949 = vmatprep.subr.mxu0 0.0
    %950 = vmatpush1.msra.mxu0 0.0
    %951 = vmatprep.subr.mxu0 0.0
    %952 = vmatpush1.msra.mxu0 0.0
    %953 = vmatprep.subr.mxu0 0.0
    %954 = vmatpush1.msra.mxu0 0.0
    %955 = vmatprep.subr.mxu0 0.0
    %956 = vmatpush1.msra.mxu0 0.0
    %957 = vmatprep.subr.mxu0 0.0
    %958 = vmatpush1.msra.mxu0 0.0
    %959 = vmatprep.subr.mxu0 0.0
    %960 = vmatpush1.msra.mxu0 0.0
    %961 = vmatprep.subr.mxu0 0.0
    %962 = vmatpush1.msra.mxu0 0.0
    %963 = vmatprep.subr.mxu0 0.0
    %964 = vmatpush1.msra.mxu0 0.0
    %965 = vmatprep.subr.mxu0 0.0
    %966 = vmatpush1.msra.mxu0 0.0
    %967 = vmatprep.subr.mxu0 0.0
    %968 = vmatpush1.msra.mxu0 0.0
    %969 = vmatprep.subr.mxu0 0.0
    %970 = vmatpush1.msra.mxu0 0.0
    %971 = vmatprep.subr.mxu0 0.0
    %972 = vmatpush1.msra.mxu0 0.0
    %973 = vmatprep.subr.mxu0 0.0
    %974 = vmatpush1.msra.mxu0 0.0
    %975 = vmatprep.subr.mxu0 0.0
    %976 = vmatpush1.msra.mxu0 0.0
    %977 = vmatprep.subr.mxu0 0.0
    %978 = vmatpush1.msra.mxu0 0.0
    %979 = vmatprep.subr.mxu0 0.0
    %980 = vmatpush1.msra.mxu0 0.0
    %981 = vmatprep.subr.mxu0 0.0
    %982 = vmatpush1.msra.mxu0 0.0
    %983 = vmatprep.subr.mxu0 0.0
    %984 = vmatpush1.msra.mxu0 0.0
    %985 = vmatprep.subr.mxu0 0.0
    %986 = vmatpush1.msra.mxu0 0.0
    %987 = vmatprep.subr.mxu0 0.0
    %988 = vmatpush1.msra.mxu0 0.0
    %989 = vmatprep.subr.mxu0 0.0
    %990 = vmatpush1.msra.mxu0 0.0
    %991 = vmatprep.subr.mxu0 0.0
    %992 = vmatpush1.msra.mxu0 0.0
    %993 = vmatprep.subr.mxu0 0.0
    %994 = vmatpush1.msra.mxu0 0.0
    %995 = vmatprep.subr.mxu0 0.0
    %996 = vmatpush1.msra.mxu0 0.0
    %997 = vmatprep.subr.mxu0 0.0
    %998 = vmatpush1.msra.mxu0 0.0
    %999 = vmatprep.subr.mxu0 0.0
    %1000 = vmatpush1.msra.mxu0 0.0
    %1001 = vmatprep.subr.mxu0 0.0
    %1002 = vmatpush1.msra.mxu0 0.0
    %1003 = vmatprep.mubr.f32.mxu0 0.0
    %1004 = vmatmul.mubr.f32.gmra.mrb[0].mxu0 %v937
    %v1005 = vpop.f32.mrb[0].mxu0
    %v1006 = vadd.f32 0.0, %v1005
    %v1007 = vpop.f32.mrb[0].mxu0
    %1008 = vdwg.mxu0
    %v1009 = vmul.f32 %v918, %v918
    %v1010 = vmul.f32 %v919, %v919
    %v1011 = vsel %vm925, %v1009, 0.0
    %v1012 = vsel %vm927, %v1010, 0.0
    %v1013 = vadd.f32 %v1011, %v1012
    %v1014 = vrot.slane %v1013, 4
    %v1015 = vadd.f32 %v1013, %v1014
    %v1016 = vrot.slane %v1015, 2
    %v1017 = vadd.f32 %v1015, %v1016
    %v1018 = vrot.slane %v1017, 1
    %v1019 = vadd.f32 %v1017, %v1018
    %v1021 = vsel %vm925, %v1019, 0
    %1023 = vmatprep.subr.mxu0 0.0
    %1024 = vmatpush1.msra.mxu0 %v920
    %1025 = vmatprep.subr.mxu0 0.0
    %1026 = vmatpush1.msra.mxu0 %v921
    %1027 = vmatprep.subr.mxu0 0.0
    %1028 = vmatpush1.msra.mxu0 %v922
    %1029 = vmatprep.subr.mxu0 0.0
    %1030 = vmatpush1.msra.mxu0 %v923
    %1031 = vmatprep.subr.mxu0 0.0
    %1032 = vmatpush1.msra.mxu0 %v924
    %1033 = vmatprep.subr.mxu0 0.0
    %1034 = vmatpush1.msra.mxu0 0.0
    %1035 = vmatprep.subr.mxu0 0.0
    %1036 = vmatpush1.msra.mxu0 0.0
    %1037 = vmatprep.subr.mxu0 0.0
    %1038 = vmatpush1.msra.mxu0 0.0
    %1039 = vmatprep.subr.mxu0 0.0
    %1040 = vmatpush1.msra.mxu0 0.0
    %1041 = vmatprep.subr.mxu0 0.0
    %1042 = vmatpush1.msra.mxu0 0.0
    %1043 = vmatprep.subr.mxu0 0.0
    %1044 = vmatpush1.msra.mxu0 0.0
    %1045 = vmatprep.subr.mxu0 0.0
    %1046 = vmatpush1.msra.mxu0 0.0
    %1047 = vmatprep.subr.mxu0 0.0
    %1048 = vmatpush1.msra.mxu0 0.0
    %1049 = vmatprep.subr.mxu0 0.0
    %1050 = vmatpush1.msra.mxu0 0.0
    %1051 = vmatprep.subr.mxu0 0.0
    %1052 = vmatpush1.msra.mxu0 0.0
    %1053 = vmatprep.subr.mxu0 0.0
    %1054 = vmatpush1.msra.mxu0 0.0
    %1055 = vmatprep.subr.mxu0 0.0
    %1056 = vmatpush1.msra.mxu0 0.0
    %1057 = vmatprep.subr.mxu0 0.0
    %1058 = vmatpush1.msra.mxu0 0.0
    %1059 = vmatprep.subr.mxu0 0.0
    %1060 = vmatpush1.msra.mxu0 0.0
    %1061 = vmatprep.subr.mxu0 0.0
    %1062 = vmatpush1.msra.mxu0 0.0
    %1063 = vmatprep.subr.mxu0 0.0
    %1064 = vmatpush1.msra.mxu0 0.0
    %1065 = vmatprep.subr.mxu0 0.0
    %1066 = vmatpush1.msra.mxu0 0.0
    %1067 = vmatprep.subr.mxu0 0.0
    %1068 = vmatpush1.msra.mxu0 0.0
    %1069 = vmatprep.subr.mxu0 0.0
    %1070 = vmatpush1.msra.mxu0 0.0
    %1071 = vmatprep.subr.mxu0 0.0
    %1072 = vmatpush1.msra.mxu0 0.0
    %1073 = vmatprep.subr.mxu0 0.0
    %1074 = vmatpush1.msra.mxu0 0.0
    %1075 = vmatprep.subr.mxu0 0.0
    %1076 = vmatpush1.msra.mxu0 0.0
    %1077 = vmatprep.subr.mxu0 0.0
    %1078 = vmatpush1.msra.mxu0 0.0
    %1079 = vmatprep.subr.mxu0 0.0
    %1080 = vmatpush1.msra.mxu0 0.0
    %1081 = vmatprep.subr.mxu0 0.0
    %1082 = vmatpush1.msra.mxu0 0.0
    %1083 = vmatprep.subr.mxu0 0.0
    %1084 = vmatpush1.msra.mxu0 0.0
    %1085 = vmatprep.subr.mxu0 0.0
    %1086 = vmatpush1.msra.mxu0 0.0
    %1087 = vmatprep.mubr.f32.mxu0 0.0
    %1088 = vmatmul.mubr.f32.gmra.mrb[0].mxu0 %v1021
    %v1089 = vpop.f32.mrb[0].mxu0
    %v1090 = vadd.f32 0.0, %v1089
    %v1091 = vpop.f32.mrb[0].mxu0
    %1092 = vdwg.mxu0
    %v1093 = vrcp.pop 50.0
    %v1094 = vmul.f32 %v1006, %v1093
    %v1095 = vmul.f32 %v1090, %v1093
    %v1096 = vmul.f32 %v1094, %v1094
    %v1097 = vsub.f32 %v1095, %v1096
    %v1098 = vmax.f32 %v1097, 0.0
    %v1099 = vadd.f32 %v1098, 1e-05
    %v1100 = vrsqrt.pop %v1099
    %v1101 = vld [vmem:[%s7] sm:$0x1]
    %v1102 = vmul.f32 %v1101, %v1100
    %v1103 = vld [vmem:[%s8] sm:$0x1]
    %v1104 = vmul.f32 %v1094, %v1102
    %v1105 = vsub.f32 %v1103, %v1104
    %v1107 = vsel %vm80, %v1102, 0
    %v1110 = vsel %vm80, %v920, 0
    %v1113 = vsel %vm80, %v921, 0
    %v1116 = vsel %vm80, %v922, 0
    %v1119 = vsel %vm80, %v923, 0
    %v1122 = vsel %vm80, %v924, 0
    %1124 = vmatprep.subr.mxu0 0.0
    %1125 = vmatpush1.xpose.msra.mxu0 %v1110
    %1126 = vmatprep.subr.mxu0 0.0
    %1127 = vmatpush1.xpose.msra.mxu0 %v1113
    %1128 = vmatprep.subr.mxu0 0.0
    %1129 = vmatpush1.xpose.msra.mxu0 %v1116
    %1130 = vmatprep.subr.mxu0 0.0
    %1131 = vmatpush1.xpose.msra.mxu0 %v1119
    %1132 = vmatprep.subr.mxu0 0.0
    %1133 = vmatpush1.xpose.msra.mxu0 %v1122
    %1134 = vmatprep.subr.mxu0 0.0
    %1135 = vmatpush1.xpose.msra.mxu0 0.0
    %1136 = vmatprep.subr.mxu0 0.0
    %1137 = vmatpush1.xpose.msra.mxu0 0.0
    %1138 = vmatprep.subr.mxu0 0.0
    %1139 = vmatpush1.xpose.msra.mxu0 0.0
    %1140 = vmatprep.subr.mxu0 0.0
    %1141 = vmatpush1.xpose.msra.mxu0 0.0
    %1142 = vmatprep.subr.mxu0 0.0
    %1143 = vmatpush1.xpose.msra.mxu0 0.0
    %1144 = vmatprep.subr.mxu0 0.0
    %1145 = vmatpush1.xpose.msra.mxu0 0.0
    %1146 = vmatprep.subr.mxu0 0.0
    %1147 = vmatpush1.xpose.msra.mxu0 0.0
    %1148 = vmatprep.subr.mxu0 0.0
    %1149 = vmatpush1.xpose.msra.mxu0 0.0
    %1150 = vmatprep.subr.mxu0 0.0
    %1151 = vmatpush1.xpose.msra.mxu0 0.0
    %1152 = vmatprep.subr.mxu0 0.0
    %1153 = vmatpush1.xpose.msra.mxu0 0.0
    %1154 = vmatprep.subr.mxu0 0.0
    %1155 = vmatpush1.xpose.msra.mxu0 0.0
    %1156 = vmatprep.subr.mxu0 0.0
    %1157 = vmatpush1.xpose.msra.mxu0 0.0
    %1158 = vmatprep.subr.mxu0 0.0
    %1159 = vmatpush1.xpose.msra.mxu0 0.0
    %1160 = vmatprep.subr.mxu0 0.0
    %1161 = vmatpush1.xpose.msra.mxu0 0.0
    %1162 = vmatprep.subr.mxu0 0.0
    %1163 = vmatpush1.xpose.msra.mxu0 0.0
    %1164 = vmatprep.subr.mxu0 0.0
    %1165 = vmatpush1.xpose.msra.mxu0 0.0
    %1166 = vmatprep.subr.mxu0 0.0
    %1167 = vmatpush1.xpose.msra.mxu0 0.0
    %1168 = vmatprep.subr.mxu0 0.0
    %1169 = vmatpush1.xpose.msra.mxu0 0.0
    %1170 = vmatprep.subr.mxu0 0.0
    %1171 = vmatpush1.xpose.msra.mxu0 0.0
    %1172 = vmatprep.subr.mxu0 0.0
    %1173 = vmatpush1.xpose.msra.mxu0 0.0
    %1174 = vmatprep.subr.mxu0 0.0
    %1175 = vmatpush1.xpose.msra.mxu0 0.0
    %1176 = vmatprep.subr.mxu0 0.0
    %1177 = vmatpush1.xpose.msra.mxu0 0.0
    %1178 = vmatprep.subr.mxu0 0.0
    %1179 = vmatpush1.xpose.msra.mxu0 0.0
    %1180 = vmatprep.subr.mxu0 0.0
    %1181 = vmatpush1.xpose.msra.mxu0 0.0
    %1182 = vmatprep.subr.mxu0 0.0
    %1183 = vmatpush1.xpose.msra.mxu0 0.0
    %1184 = vmatprep.subr.mxu0 0.0
    %1185 = vmatpush1.xpose.msra.mxu0 0.0
    %1186 = vmatprep.subr.mxu0 0.0
    %1187 = vmatpush1.xpose.msra.mxu0 0.0
    %1188 = vmatprep.mubr.f32.mxu0 0.0
    %1189 = vmatmul.mubr.f32.gmra.mrb[0].mxu0 %v1107
    %v1190 = vpop.f32.mrb[0].mxu0
    %v1191 = vadd.f32 0.0, %v1190
    %v1192 = vpop.f32.mrb[0].mxu0
    %1193 = vdwg.mxu0
    %v1195 = vsel %vm80, %v1105, 0
    %1197 = vmatprep.subr.mxu0 0.0
    %1198 = vmatpush1.xpose.msra.mxu0 %v1110
    %1199 = vmatprep.subr.mxu0 0.0
    %1200 = vmatpush1.xpose.msra.mxu0 %v1113
    %1201 = vmatprep.subr.mxu0 0.0
    %1202 = vmatpush1.xpose.msra.mxu0 %v1116
    %1203 = vmatprep.subr.mxu0 0.0
    %1204 = vmatpush1.xpose.msra.mxu0 %v1119
    %1205 = vmatprep.subr.mxu0 0.0
    %1206 = vmatpush1.xpose.msra.mxu0 %v1122
    %1207 = vmatprep.subr.mxu0 0.0
    %1208 = vmatpush1.xpose.msra.mxu0 0.0
    %1209 = vmatprep.subr.mxu0 0.0
    %1210 = vmatpush1.xpose.msra.mxu0 0.0
    %1211 = vmatprep.subr.mxu0 0.0
    %1212 = vmatpush1.xpose.msra.mxu0 0.0
    %1213 = vmatprep.subr.mxu0 0.0
    %1214 = vmatpush1.xpose.msra.mxu0 0.0
    %1215 = vmatprep.subr.mxu0 0.0
    %1216 = vmatpush1.xpose.msra.mxu0 0.0
    %1217 = vmatprep.subr.mxu0 0.0
    %1218 = vmatpush1.xpose.msra.mxu0 0.0
    %1219 = vmatprep.subr.mxu0 0.0
    %1220 = vmatpush1.xpose.msra.mxu0 0.0
    %1221 = vmatprep.subr.mxu0 0.0
    %1222 = vmatpush1.xpose.msra.mxu0 0.0
    %1223 = vmatprep.subr.mxu0 0.0
    %1224 = vmatpush1.xpose.msra.mxu0 0.0
    %1225 = vmatprep.subr.mxu0 0.0
    %1226 = vmatpush1.xpose.msra.mxu0 0.0
    %1227 = vmatprep.subr.mxu0 0.0
    %1228 = vmatpush1.xpose.msra.mxu0 0.0
    %1229 = vmatprep.subr.mxu0 0.0
    %1230 = vmatpush1.xpose.msra.mxu0 0.0
    %1231 = vmatprep.subr.mxu0 0.0
    %1232 = vmatpush1.xpose.msra.mxu0 0.0
    %1233 = vmatprep.subr.mxu0 0.0
    %1234 = vmatpush1.xpose.msra.mxu0 0.0
    %1235 = vmatprep.subr.mxu0 0.0
    %1236 = vmatpush1.xpose.msra.mxu0 0.0
    %1237 = vmatprep.subr.mxu0 0.0
    %1238 = vmatpush1.xpose.msra.mxu0 0.0
    %1239 = vmatprep.subr.mxu0 0.0
    %1240 = vmatpush1.xpose.msra.mxu0 0.0
    %1241 = vmatprep.subr.mxu0 0.0
    %1242 = vmatpush1.xpose.msra.mxu0 0.0
    %1243 = vmatprep.subr.mxu0 0.0
    %1244 = vmatpush1.xpose.msra.mxu0 0.0
    %1245 = vmatprep.subr.mxu0 0.0
    %1246 = vmatpush1.xpose.msra.mxu0 0.0
    %1247 = vmatprep.subr.mxu0 0.0
    %1248 = vmatpush1.xpose.msra.mxu0 0.0
    %1249 = vmatprep.subr.mxu0 0.0
    %1250 = vmatpush1.xpose.msra.mxu0 0.0
    %1251 = vmatprep.subr.mxu0 0.0
    %1252 = vmatpush1.xpose.msra.mxu0 0.0
    %1253 = vmatprep.subr.mxu0 0.0
    %1254 = vmatpush1.xpose.msra.mxu0 0.0
    %1255 = vmatprep.subr.mxu0 0.0
    %1256 = vmatpush1.xpose.msra.mxu0 0.0
    %1257 = vmatprep.subr.mxu0 0.0
    %1258 = vmatpush1.xpose.msra.mxu0 0.0
    %1259 = vmatprep.subr.mxu0 0.0
    %1260 = vmatpush1.xpose.msra.mxu0 0.0
    %1261 = vmatprep.mubr.f32.mxu0 0.0
    %1262 = vmatmul.mubr.f32.gmra.mrb[0].mxu0 %v1195
    %v1263 = vpop.f32.mrb[0].mxu0
    %v1264 = vadd.f32 0.0, %v1263
    %v1265 = vpop.f32.mrb[0].mxu0
    %1266 = vdwg.mxu0
    %v1267 = vlaneseq
    %v1268 = vshrl.u32 %v1267, 7
    %v1269 = vsub.s32 0, %v1268
    %v1270 = vrot.slane %v1191, %v1269
    %v1271 = vmul.f32 %v918, %v1270
    %v1272 = vmul.f32 %v919, %v1270
    %v1273 = vlaneseq
    %v1274 = vshrl.u32 %v1273, 7
    %v1275 = vsub.s32 0, %v1274
    %v1276 = vrot.slane %v1264, %v1275
    %v1277 = vadd.f32 %v1271, %v1276
    %v1278 = vadd.f32 %v1272, %v1276
    %v1279 = vmax.f32 %v1277, 0.0
    %v1280 = vmax.f32 %v1278, 0.0
    %1283 = vrot.lane.b32.xlu0 %v1279, 16
    %v1284 = vpop.permute.xlu0 %1283
    %1285 = vrot.lane.b32.xlu0 %v1280, 16
    %v1286 = vpop.permute.xlu0 %1285
    %vm1289 = vcmask 457856
    %1290 = vst.msk [vmem:[#allocation3 + $0x4] sm:$0xff] %vm1289, %v1284
    %vm1291 = vcmask 451712
    %1292 = vst.msk [vmem:[#allocation3 + $0xc] sm:$0x3] %vm1291, %v1286
    %v1293 = vld [vmem:[%s17] sm:$0xff]
    %v1294 = vld [vmem:[%s17 + $0x8] sm:$0xff]
    %v1295 = vld [vmem:[%s17 + $0x10] sm:$0xff]
    %v1296 = vld [vmem:[%s17 + $0x18] sm:$0xff]
    %v1297 = vld [vmem:[%s17 + $0x20] sm:$0xff]
    %v1298 = vld [vmem:[%s17 + $0x28] sm:$0xff]
    %v1299 = vld [vmem:[%s17 + $0x30] sm:$0xff]
    %v1300 = vld [vmem:[%s17 + $0x38] sm:$0xff]
    %v1301 = vld [vmem:[%s17 + $0x40] sm:$0xff]
    %v1302 = vld [vmem:[%s17 + $0x48] sm:$0xff]
    %v1303 = vld [vmem:[%s17 + $0x50] sm:$0xff]
    %v1304 = vld [vmem:[%s17 + $0x58] sm:$0xff]
    %v1305 = vld [vmem:[%s17 + $0x60] sm:$0xff]
    %v1306 = vld [vmem:[%s17 + $0x68] sm:$0xff]
    %v1307 = vld [vmem:[%s17 + $0x70] sm:$0xff]
    %v1308 = vld [vmem:[%s17 + $0x78] sm:$0xff]
    %v1309 = vld [vmem:[%s17 + $0x80] sm:$0xff]
    %v1310 = vld [vmem:[%s17 + $0x88] sm:$0xff]
    %v1311 = vld [vmem:[%s17 + $0x90] sm:$0xff]
    %v1312 = vld [vmem:[%s17 + $0x98] sm:$0xff]
    %v1313 = vld [vmem:[%s17 + $0xa0] sm:$0xff]
    %v1314 = vld [vmem:[%s17 + $0xa8] sm:$0xff]
    %v1315 = vld [vmem:[%s17 + $0xb0] sm:$0xff]
    %v1316 = vld [vmem:[%s17 + $0xb8] sm:$0xff]
    %v1317 = vld [vmem:[%s17 + $0xc0] sm:$0xff]
    %v1318 = vsel %vm925, %v1279, 0
    %v1320 = vsel %vm925, %v1280, 0
    %1322 = vmatprep.subr.mxu0 %v1294
    %1323 = vmatpush1.msra.mxu0 %v1293
    %1324 = vmatprep.subr.mxu0 %v1299
    %1325 = vmatpush1.msra.mxu0 %v1298
    %1326 = vmatprep.subr.mxu0 %v1304
    %1327 = vmatpush1.msra.mxu0 %v1303
    %1328 = vmatprep.subr.mxu0 %v1309
    %1329 = vmatpush1.msra.mxu0 %v1308
    %1330 = vmatprep.subr.mxu0 %v1314
    %1331 = vmatpush1.msra.mxu0 %v1313
    %1332 = vmatprep.subr.mxu0 0.0
    %1333 = vmatpush1.msra.mxu0 0.0
    %1334 = vmatprep.subr.mxu0 0.0
    %1335 = vmatpush1.msra.mxu0 0.0
    %1336 = vmatprep.subr.mxu0 0.0
    %1337 = vmatpush1.msra.mxu0 0.0
    %1338 = vmatprep.subr.mxu0 0.0
    %1339 = vmatpush1.msra.mxu0 0.0
    %1340 = vmatprep.subr.mxu0 0.0
    %1341 = vmatpush1.msra.mxu0 0.0
    %1342 = vmatprep.subr.mxu0 0.0
    %1343 = vmatpush1.msra.mxu0 0.0
    %1344 = vmatprep.subr.mxu0 0.0
    %1345 = vmatpush1.msra.mxu0 0.0
    %1346 = vmatprep.subr.mxu0 0.0
    %1347 = vmatpush1.msra.mxu0 0.0
    %1348 = vmatprep.subr.mxu0 0.0
    %1349 = vmatpush1.msra.mxu0 0.0
    %1350 = vmatprep.subr.mxu0 0.0
    %1351 = vmatpush1.msra.mxu0 0.0
    %1352 = vmatprep.subr.mxu0 0.0
    %1353 = vmatpush1.msra.mxu0 0.0
    %1354 = vmatprep.subr.mxu0 0.0
    %1355 = vmatpush1.msra.mxu0 0.0
    %1356 = vmatprep.subr.mxu0 0.0
    %1357 = vmatpush1.msra.mxu0 0.0
    %1358 = vmatprep.subr.mxu0 0.0
    %1359 = vmatpush1.msra.mxu0 0.0
    %1360 = vmatprep.subr.mxu0 0.0
    %1361 = vmatpush1.msra.mxu0 0.0
    %1362 = vmatprep.subr.mxu0 0.0
    %1363 = vmatpush1.msra.mxu0 0.0
    %1364 = vmatprep.subr.mxu0 0.0
    %1365 = vmatpush1.msra.mxu0 0.0
    %1366 = vmatprep.subr.mxu0 0.0
    %1367 = vmatpush1.msra.mxu0 0.0
    %1368 = vmatprep.subr.mxu0 0.0
    %1369 = vmatpush1.msra.mxu0 0.0
    %1370 = vmatprep.subr.mxu0 0.0
    %1371 = vmatpush1.msra.mxu0 0.0
    %1372 = vmatprep.subr.mxu0 0.0
    %1373 = vmatpush1.msra.mxu0 0.0
    %1374 = vmatprep.subr.mxu0 0.0
    %1375 = vmatpush1.msra.mxu0 0.0
    %1376 = vmatprep.subr.mxu0 0.0
    %1377 = vmatpush1.msra.mxu0 0.0
    %1378 = vmatprep.subr.mxu0 0.0
    %1379 = vmatpush1.msra.mxu0 0.0
    %1380 = vmatprep.subr.mxu0 0.0
    %1381 = vmatpush1.msra.mxu0 0.0
    %1382 = vmatprep.subr.mxu0 0.0
    %1383 = vmatpush1.msra.mxu0 0.0
    %1384 = vmatprep.subr.mxu0 0.0
    %1385 = vmatpush1.msra.mxu0 0.0
    %1386 = vmatprep.mubr.f32.mxu0 0.0
    %1387 = vmatmul.mubr.f32.gmra.mrb[0].mxu0 %v1318
    %v1388 = vpop.f32.mrb[0].mxu0
    %v1389 = vadd.f32 0.0, %v1388
    %v1390 = vpop.f32.mrb[0].mxu0
    %v1391 = vadd.f32 0.0, %v1390
    %1392 = vmatprep.mubr.f32.mxu0 0.0
    %1393 = vmatmul.mubr.f32.gmra.mrb[0].mxu0 %v1320
    %v1394 = vpop.f32.mrb[0].mxu0
    %v1395 = vadd.f32 0.0, %v1394
    %v1396 = vpop.f32.mrb[0].mxu0
    %v1397 = vadd.f32 0.0, %v1396
    %1398 = vdwg.mxu0
    %1399 = vmatprep.subr.mxu0 %v1296
    %1400 = vmatpush1.msra.mxu0 %v1295
    %1401 = vmatprep.subr.mxu0 %v1301
    %1402 = vmatpush1.msra.mxu0 %v1300
    %1403 = vmatprep.subr.mxu0 %v1306
    %1404 = vmatpush1.msra.mxu0 %v1305
    %1405 = vmatprep.subr.mxu0 %v1311
    %1406 = vmatpush1.msra.mxu0 %v1310
    %1407 = vmatprep.subr.mxu0 %v1316
    %1408 = vmatpush1.msra.mxu0 %v1315
    %1409 = vmatprep.subr.mxu0 0.0
    %1410 = vmatpush1.msra.mxu0 0.0
    %1411 = vmatprep.subr.mxu0 0.0
    %1412 = vmatpush1.msra.mxu0 0.0
    %1413 = vmatprep.subr.mxu0 0.0
    %1414 = vmatpush1.msra.mxu0 0.0
    %1415 = vmatprep.subr.mxu0 0.0
    %1416 = vmatpush1.msra.mxu0 0.0
    %1417 = vmatprep.subr.mxu0 0.0
    %1418 = vmatpush1.msra.mxu0 0.0
    %1419 = vmatprep.subr.mxu0 0.0
    %1420 = vmatpush1.msra.mxu0 0.0
    %1421 = vmatprep.subr.mxu0 0.0
    %1422 = vmatpush1.msra.mxu0 0.0
    %1423 = vmatprep.subr.mxu0 0.0
    %1424 = vmatpush1.msra.mxu0 0.0
    %1425 = vmatprep.subr.mxu0 0.0
    %1426 = vmatpush1.msra.mxu0 0.0
    %1427 = vmatprep.subr.mxu0 0.0
    %1428 = vmatpush1.msra.mxu0 0.0
    %1429 = vmatprep.subr.mxu0 0.0
    %1430 = vmatpush1.msra.mxu0 0.0
    %1431 = vmatprep.subr.mxu0 0.0
    %1432 = vmatpush1.msra.mxu0 0.0
    %1433 = vmatprep.subr.mxu0 0.0
    %1434 = vmatpush1.msra.mxu0 0.0
    %1435 = vmatprep.subr.mxu0 0.0
    %1436 = vmatpush1.msra.mxu0 0.0
    %1437 = vmatprep.subr.mxu0 0.0
    %1438 = vmatpush1.msra.mxu0 0.0
    %1439 = vmatprep.subr.mxu0 0.0
    %1440 = vmatpush1.msra.mxu0 0.0
    %1441 = vmatprep.subr.mxu0 0.0
    %1442 = vmatpush1.msra.mxu0 0.0
    %1443 = vmatprep.subr.mxu0 0.0
    %1444 = vmatpush1.msra.mxu0 0.0
    %1445 = vmatprep.subr.mxu0 0.0
    %1446 = vmatpush1.msra.mxu0 0.0
    %1447 = vmatprep.subr.mxu0 0.0
    %1448 = vmatpush1.msra.mxu0 0.0
    %1449 = vmatprep.subr.mxu0 0.0
    %1450 = vmatpush1.msra.mxu0 0.0
    %1451 = vmatprep.subr.mxu0 0.0
    %1452 = vmatpush1.msra.mxu0 0.0
    %1453 = vmatprep.subr.mxu0 0.0
    %1454 = vmatpush1.msra.mxu0 0.0
    %1455 = vmatprep.subr.mxu0 0.0
    %1456 = vmatpush1.msra.mxu0 0.0
    %1457 = vmatprep.subr.mxu0 0.0
    %1458 = vmatpush1.msra.mxu0 0.0
    %1459 = vmatprep.subr.mxu0 0.0
    %1460 = vmatpush1.msra.mxu0 0.0
    %1461 = vmatprep.subr.mxu0 0.0
    %1462 = vmatpush1.msra.mxu0 0.0
    %1463 = vmatprep.mubr.f32.mxu0 0.0
    %1464 = vmatmul.mubr.f32.gmra.mrb[0].mxu0 %v1318
    %v1465 = vpop.f32.mrb[0].mxu0
    %v1466 = vadd.f32 0.0, %v1465
    %v1467 = vpop.f32.mrb[0].mxu0
    %v1468 = vadd.f32 0.0, %v1467
    %1469 = vmatprep.mubr.f32.mxu0 0.0
    %1470 = vmatmul.mubr.f32.gmra.mrb[0].mxu0 %v1320
    %v1471 = vpop.f32.mrb[0].mxu0
    %v1472 = vadd.f32 0.0, %v1471
    %v1473 = vpop.f32.mrb[0].mxu0
    %v1474 = vadd.f32 0.0, %v1473
    %1475 = vdwg.mxu0
    %1476 = vmatprep.subr.mxu0 0.0
    %1477 = vmatpush1.msra.mxu0 %v1297
    %1478 = vmatprep.subr.mxu0 0.0
    %1479 = vmatpush1.msra.mxu0 %v1302
    %1480 = vmatprep.subr.mxu0 0.0
    %1481 = vmatpush1.msra.mxu0 %v1307
    %1482 = vmatprep.subr.mxu0 0.0
    %1483 = vmatpush1.msra.mxu0 %v1312
    %1484 = vmatprep.subr.mxu0 0.0
    %1485 = vmatpush1.msra.mxu0 %v1317
    %1486 = vmatprep.subr.mxu0 0.0
    %1487 = vmatpush1.msra.mxu0 0.0
    %1488 = vmatprep.subr.mxu0 0.0
    %1489 = vmatpush1.msra.mxu0 0.0
    %1490 = vmatprep.subr.mxu0 0.0
    %1491 = vmatpush1.msra.mxu0 0.0
    %1492 = vmatprep.subr.mxu0 0.0
    %1493 = vmatpush1.msra.mxu0 0.0
    %1494 = vmatprep.subr.mxu0 0.0
    %1495 = vmatpush1.msra.mxu0 0.0
    %1496 = vmatprep.subr.mxu0 0.0
    %1497 = vmatpush1.msra.mxu0 0.0
    %1498 = vmatprep.subr.mxu0 0.0
    %1499 = vmatpush1.msra.mxu0 0.0
    %1500 = vmatprep.subr.mxu0 0.0
    %1501 = vmatpush1.msra.mxu0 0.0
    %1502 = vmatprep.subr.mxu0 0.0
    %1503 = vmatpush1.msra.mxu0 0.0
    %1504 = vmatprep.subr.mxu0 0.0
    %1505 = vmatpush1.msra.mxu0 0.0
    %1506 = vmatprep.subr.mxu0 0.0
    %1507 = vmatpush1.msra.mxu0 0.0
    %1508 = vmatprep.subr.mxu0 0.0
    %1509 = vmatpush1.msra.mxu0 0.0
    %1510 = vmatprep.subr.mxu0 0.0
    %1511 = vmatpush1.msra.mxu0 0.0
    %1512 = vmatprep.subr.mxu0 0.0
    %1513 = vmatpush1.msra.mxu0 0.0
    %1514 = vmatprep.subr.mxu0 0.0
    %1515 = vmatpush1.msra.mxu0 0.0
    %1516 = vmatprep.subr.mxu0 0.0
    %1517 = vmatpush1.msra.mxu0 0.0
    %1518 = vmatprep.subr.mxu0 0.0
    %1519 = vmatpush1.msra.mxu0 0.0
    %1520 = vmatprep.subr.mxu0 0.0
    %1521 = vmatpush1.msra.mxu0 0.0
    %1522 = vmatprep.subr.mxu0 0.0
    %1523 = vmatpush1.msra.mxu0 0.0
    %1524 = vmatprep.subr.mxu0 0.0
    %1525 = vmatpush1.msra.mxu0 0.0
    %1526 = vmatprep.subr.mxu0 0.0
    %1527 = vmatpush1.msra.mxu0 0.0
    %1528 = vmatprep.subr.mxu0 0.0
    %1529 = vmatpush1.msra.mxu0 0.0
    %1530 = vmatprep.subr.mxu0 0.0
    %1531 = vmatpush1.msra.mxu0 0.0
    %1532 = vmatprep.subr.mxu0 0.0
    %1533 = vmatpush1.msra.mxu0 0.0
    %1534 = vmatprep.subr.mxu0 0.0
    %1535 = vmatpush1.msra.mxu0 0.0
    %1536 = vmatprep.subr.mxu0 0.0
    %1537 = vmatpush1.msra.mxu0 0.0
    %1538 = vmatprep.subr.mxu0 0.0
    %1539 = vmatpush1.msra.mxu0 0.0
    %1540 = vmatprep.mubr.f32.mxu0 0.0
    %1541 = vmatmul.mubr.f32.gmra.mrb[0].mxu0 %v1318
    %v1542 = vpop.f32.mrb[0].mxu0
    %v1543 = vadd.f32 0.0, %v1542
    %v1544 = vpop.f32.mrb[0].mxu0
    %1545 = vmatprep.mubr.f32.mxu0 0.0
    %1546 = vmatmul.mubr.f32.gmra.mrb[0].mxu0 %v1320
    %v1547 = vpop.f32.mrb[0].mxu0
    %v1548 = vadd.f32 0.0, %v1547
    %v1549 = vpop.f32.mrb[0].mxu0
    %1550 = vdwg.mxu0
    %v1551 = vld [vmem:[%s18] sm:$0x1f]
    %v1552 = vmul.f32 %v1389, 2.0
    %v1553 = vmul.f32 %v1391, 2.0
    %v1554 = vmul.f32 %v1466, 2.0
    %v1555 = vmul.f32 %v1468, 2.0
    %v1556 = vmul.f32 %v1543, 2.0
    %v1557 = vmul.f32 %v1395, 2.0
    %v1558 = vmul.f32 %v1397, 2.0
    %v1559 = vmul.f32 %v1472, 2.0
    %v1560 = vmul.f32 %v1474, 2.0
    %v1561 = vmul.f32 %v1548, 2.0
    %v1563 = vlaneseq
    %v1564 = vshrl.u32 %v1563, 7
    %v1565 = vsub.s32 0, %v1564
    %v1566 = vrot.slane %v1551, %v1565
    %v1567 = vlaneseq
    %v1568 = vshrl.u32 %v1567, 7
    %v1569 = vsub.s32 1, %v1568
    %v1570 = vrot.slane %v1551, %v1569
    %v1571 = vlaneseq
    %v1572 = vshrl.u32 %v1571, 7
    %v1573 = vsub.s32 2, %v1572
    %v1574 = vrot.slane %v1551, %v1573
    %v1575 = vlaneseq
    %v1576 = vshrl.u32 %v1575, 7
    %v1577 = vsub.s32 3, %v1576
    %v1578 = vrot.slane %v1551, %v1577
    %v1579 = vlaneseq
    %v1580 = vshrl.u32 %v1579, 7
    %v1581 = vsub.s32 4, %v1580
    %v1582 = vrot.slane %v1551, %v1581
    %v1588 = vsub.f32 %v1566, %v1552
    %v1589 = vsub.f32 %v1570, %v1553
    %v1590 = vsub.f32 %v1574, %v1554
    %v1591 = vsub.f32 %v1578, %v1555
    %v1592 = vsub.f32 %v1582, %v1556
    %v1593 = vsub.f32 %v1566, %v1557
    %v1594 = vsub.f32 %v1570, %v1558
    %v1595 = vsub.f32 %v1574, %v1559
    %v1596 = vsub.f32 %v1578, %v1560
    %v1597 = vsub.f32 %v1582, %v1561
    %v1598 = vlaneseq
    %v1599 = vand.u32 %v1598, 127
    %1600 = vmin.xlane.f32.xlu0 %v1588
    %v1601 = vpop.xlane.xlu0 %1600
    %vm1602 = vcmask 1041408
    %v1603 = vsel %vm1602, %v1593, inf
    %1604 = vmin.xlane.f32.xlu0 %v1603
    %v1605 = vpop.xlane.xlu0 %1604
    %vm1606 = vcmp.le.f32.partialorder %v1588, %v1601
    %vm1607 = vcmp.le.f32.partialorder %v1593, %v1605
    %v1608 = vsel %vm1606, %v1599, 128
    %v1609 = vsel %vm1607, %v1599, 128
    %v1610 = vand.u32 %v1608, 65535
    %v1611 = vshra.s32 %v1608, 16
    %v1612 = vcvt.s32.f32 %v1610
    %v1613 = vcvt.s32.f32 %v1611
    %1614 = vmin.xlane.f32.xlu0 %v1613
    %v1615 = vpop.xlane.xlu0 %1614
    %vm1616 = vcmp.eq.f32.partialorder %v1613, %v1615
    %v1617 = vsel %vm1616, %v1612, inf
    %1618 = vmin.xlane.f32.xlu0 %v1617
    %v1619 = vpop.xlane.xlu0 %1618
    %v1620 = vcvt.f32.s32 %v1619
    %v1621 = vcvt.f32.s32 %v1615
    %v1622 = vshll.u32 %v1621, 16
    %v1623 = vadd.s32 %v1622, %v1620
    %v1624 = vsel %vm1602, %v1609, 2147483647
    %v1625 = vand.u32 %v1624, 65535
    %v1626 = vshra.s32 %v1624, 16
    %v1627 = vcvt.s32.f32 %v1625
    %v1628 = vcvt.s32.f32 %v1626
    %1629 = vmin.xlane.f32.xlu0 %v1628
    %v1630 = vpop.xlane.xlu0 %1629
    %vm1631 = vcmp.eq.f32.partialorder %v1628, %v1630
    %v1632 = vsel %vm1631, %v1627, inf
    %1633 = vmin.xlane.f32.xlu0 %v1632
    %v1634 = vpop.xlane.xlu0 %1633
    %v1635 = vcvt.f32.s32 %v1634
    %v1636 = vcvt.f32.s32 %v1630
    %v1637 = vshll.u32 %v1636, 16
    %v1638 = vadd.s32 %v1637, %v1635
    %vm1639 = vcmp.eq.s32.totalorder %v1599, 0
    %v1640 = vsel %vm1639, %v1623, 0
    %v1641 = vsel %vm1639, %v1638, 0
    %vm1642 = vcmask 7168
    %v1643 = vsel %vm1642, %v1601, 0.0
    %vm1644 = vcmask 1024
    %v1645 = vsel %vm1644, %v1605, 0.0
    %v1646 = vadd.f32 %v1643, %v1645
    %1647 = vadd.xlane.f32.xlu0 %v1646
    %v1648 = vpop.xlane.xlu0 %1647
    %v1649 = vrot.slane %v1648, 4
    %v1650 = vadd.f32 %v1648, %v1649
    %v1651 = vrot.slane %v1650, 2
    %v1652 = vadd.f32 %v1650, %v1651
    %v1653 = vrot.slane %v1652, 1
    %v1654 = vadd.f32 %v1652, %v1653
    %s1655 = vtos %v1654
    %s1656 = sadd.f32 %s1655, 0.0
    %1657 = vmin.xlane.f32.xlu0 %v1589
    %v1658 = vpop.xlane.xlu0 %1657
    %v1659 = vsel %vm1602, %v1594, inf
    %1660 = vmin.xlane.f32.xlu0 %v1659
    %v1661 = vpop.xlane.xlu0 %1660
    %vm1662 = vcmp.le.f32.partialorder %v1589, %v1658
    %vm1663 = vcmp.le.f32.partialorder %v1594, %v1661
    %v1664 = vsel %vm1662, %v1599, 128
    %v1665 = vsel %vm1663, %v1599, 128
    %v1666 = vand.u32 %v1664, 65535
    %v1667 = vshra.s32 %v1664, 16
    %v1668 = vcvt.s32.f32 %v1666
    %v1669 = vcvt.s32.f32 %v1667
    %1670 = vmin.xlane.f32.xlu0 %v1669
    %v1671 = vpop.xlane.xlu0 %1670
    %vm1672 = vcmp.eq.f32.partialorder %v1669, %v1671
    %v1673 = vsel %vm1672, %v1668, inf
    %1674 = vmin.xlane.f32.xlu0 %v1673
    %v1675 = vpop.xlane.xlu0 %1674
    %v1676 = vcvt.f32.s32 %v1675
    %v1677 = vcvt.f32.s32 %v1671
    %v1678 = vshll.u32 %v1677, 16
    %v1679 = vadd.s32 %v1678, %v1676
    %v1680 = vsel %vm1602, %v1665, 2147483647
    %v1681 = vand.u32 %v1680, 65535
    %v1682 = vshra.s32 %v1680, 16
    %v1683 = vcvt.s32.f32 %v1681
    %v1684 = vcvt.s32.f32 %v1682
    %1685 = vmin.xlane.f32.xlu0 %v1684
    %v1686 = vpop.xlane.xlu0 %1685
    %vm1687 = vcmp.eq.f32.partialorder %v1684, %v1686
    %v1688 = vsel %vm1687, %v1683, inf
    %1689 = vmin.xlane.f32.xlu0 %v1688
    %v1690 = vpop.xlane.xlu0 %1689
    %v1691 = vcvt.f32.s32 %v1690
    %v1692 = vcvt.f32.s32 %v1686
    %v1693 = vshll.u32 %v1692, 16
    %v1694 = vadd.s32 %v1693, %v1691
    %vm1695 = vcmp.eq.s32.totalorder %v1599, 1
    %v1696 = vsel %vm1695, %v1679, %v1640
    %v1697 = vsel %vm1695, %v1694, %v1641
    %v1698 = vsel %vm1642, %v1658, 0.0
    %v1699 = vsel %vm1644, %v1661, 0.0
    %v1700 = vadd.f32 %v1698, %v1699
    %1701 = vadd.xlane.f32.xlu0 %v1700
    %v1702 = vpop.xlane.xlu0 %1701
    %v1703 = vrot.slane %v1702, 4
    %v1704 = vadd.f32 %v1702, %v1703
    %v1705 = vrot.slane %v1704, 2
    %v1706 = vadd.f32 %v1704, %v1705
    %v1707 = vrot.slane %v1706, 1
    %v1708 = vadd.f32 %v1706, %v1707
    %s1709 = vtos %v1708
    %s1710 = sadd.f32 %s1656, %s1709
    %1711 = vmin.xlane.f32.xlu0 %v1590
    %v1712 = vpop.xlane.xlu0 %1711
    %v1713 = vsel %vm1602, %v1595, inf
    %1714 = vmin.xlane.f32.xlu0 %v1713
    %v1715 = vpop.xlane.xlu0 %1714
    %vm1716 = vcmp.le.f32.partialorder %v1590, %v1712
    %vm1717 = vcmp.le.f32.partialorder %v1595, %v1715
    %v1718 = vsel %vm1716, %v1599, 128
    %v1719 = vsel %vm1717, %v1599, 128
    %v1720 = vand.u32 %v1718, 65535
    %v1721 = vshra.s32 %v1718, 16
    %v1722 = vcvt.s32.f32 %v1720
    %v1723 = vcvt.s32.f32 %v1721
    %1724 = vmin.xlane.f32.xlu0 %v1723
    %v1725 = vpop.xlane.xlu0 %1724
    %vm1726 = vcmp.eq.f32.partialorder %v1723, %v1725
    %v1727 = vsel %vm1726, %v1722, inf
    %1728 = vmin.xlane.f32.xlu0 %v1727
    %v1729 = vpop.xlane.xlu0 %1728
    %v1730 = vcvt.f32.s32 %v1729
    %v1731 = vcvt.f32.s32 %v1725
    %v1732 = vshll.u32 %v1731, 16
    %v1733 = vadd.s32 %v1732, %v1730
    %v1734 = vsel %vm1602, %v1719, 2147483647
    %v1735 = vand.u32 %v1734, 65535
    %v1736 = vshra.s32 %v1734, 16
    %v1737 = vcvt.s32.f32 %v1735
    %v1738 = vcvt.s32.f32 %v1736
    %1739 = vmin.xlane.f32.xlu0 %v1738
    %v1740 = vpop.xlane.xlu0 %1739
    %vm1741 = vcmp.eq.f32.partialorder %v1738, %v1740
    %v1742 = vsel %vm1741, %v1737, inf
    %1743 = vmin.xlane.f32.xlu0 %v1742
    %v1744 = vpop.xlane.xlu0 %1743
    %v1745 = vcvt.f32.s32 %v1744
    %v1746 = vcvt.f32.s32 %v1740
    %v1747 = vshll.u32 %v1746, 16
    %v1748 = vadd.s32 %v1747, %v1745
    %vm1749 = vcmp.eq.s32.totalorder %v1599, 2
    %v1750 = vsel %vm1749, %v1733, %v1696
    %v1751 = vsel %vm1749, %v1748, %v1697
    %v1752 = vsel %vm1642, %v1712, 0.0
    %v1753 = vsel %vm1644, %v1715, 0.0
    %v1754 = vadd.f32 %v1752, %v1753
    %1755 = vadd.xlane.f32.xlu0 %v1754
    %v1756 = vpop.xlane.xlu0 %1755
    %v1757 = vrot.slane %v1756, 4
    %v1758 = vadd.f32 %v1756, %v1757
    %v1759 = vrot.slane %v1758, 2
    %v1760 = vadd.f32 %v1758, %v1759
    %v1761 = vrot.slane %v1760, 1
    %v1762 = vadd.f32 %v1760, %v1761
    %s1763 = vtos %v1762
    %s1764 = sadd.f32 %s1710, %s1763
    %1765 = vmin.xlane.f32.xlu0 %v1591
    %v1766 = vpop.xlane.xlu0 %1765
    %v1767 = vsel %vm1602, %v1596, inf
    %1768 = vmin.xlane.f32.xlu0 %v1767
    %v1769 = vpop.xlane.xlu0 %1768
    %vm1770 = vcmp.le.f32.partialorder %v1591, %v1766
    %vm1771 = vcmp.le.f32.partialorder %v1596, %v1769
    %v1772 = vsel %vm1770, %v1599, 128
    %v1773 = vsel %vm1771, %v1599, 128
    %v1774 = vand.u32 %v1772, 65535
    %v1775 = vshra.s32 %v1772, 16
    %v1776 = vcvt.s32.f32 %v1774
    %v1777 = vcvt.s32.f32 %v1775
    %1778 = vmin.xlane.f32.xlu0 %v1777
    %v1779 = vpop.xlane.xlu0 %1778
    %vm1780 = vcmp.eq.f32.partialorder %v1777, %v1779
    %v1781 = vsel %vm1780, %v1776, inf
    %1782 = vmin.xlane.f32.xlu0 %v1781
    %v1783 = vpop.xlane.xlu0 %1782
    %v1784 = vcvt.f32.s32 %v1783
    %v1785 = vcvt.f32.s32 %v1779
    %v1786 = vshll.u32 %v1785, 16
    %v1787 = vadd.s32 %v1786, %v1784
    %v1788 = vsel %vm1602, %v1773, 2147483647
    %v1789 = vand.u32 %v1788, 65535
    %v1790 = vshra.s32 %v1788, 16
    %v1791 = vcvt.s32.f32 %v1789
    %v1792 = vcvt.s32.f32 %v1790
    %1793 = vmin.xlane.f32.xlu0 %v1792
    %v1794 = vpop.xlane.xlu0 %1793
    %vm1795 = vcmp.eq.f32.partialorder %v1792, %v1794
    %v1796 = vsel %vm1795, %v1791, inf
    %1797 = vmin.xlane.f32.xlu0 %v1796
    %v1798 = vpop.xlane.xlu0 %1797
    %v1799 = vcvt.f32.s32 %v1798
    %v1800 = vcvt.f32.s32 %v1794
    %v1801 = vshll.u32 %v1800, 16
    %v1802 = vadd.s32 %v1801, %v1799
    %vm1803 = vcmp.eq.s32.totalorder %v1599, 3
    %v1804 = vsel %vm1803, %v1787, %v1750
    %v1805 = vsel %vm1803, %v1802, %v1751
    %v1806 = vsel %vm1642, %v1766, 0.0
    %v1807 = vsel %vm1644, %v1769, 0.0
    %v1808 = vadd.f32 %v1806, %v1807
    %1809 = vadd.xlane.f32.xlu0 %v1808
    %v1810 = vpop.xlane.xlu0 %1809
    %v1811 = vrot.slane %v1810, 4
    %v1812 = vadd.f32 %v1810, %v1811
    %v1813 = vrot.slane %v1812, 2
    %v1814 = vadd.f32 %v1812, %v1813
    %v1815 = vrot.slane %v1814, 1
    %v1816 = vadd.f32 %v1814, %v1815
    %s1817 = vtos %v1816
    %s1818 = sadd.f32 %s1764, %s1817
    %1819 = vmin.xlane.f32.xlu0 %v1592
    %v1820 = vpop.xlane.xlu0 %1819
    %v1821 = vsel %vm1602, %v1597, inf
    %1822 = vmin.xlane.f32.xlu0 %v1821
    %v1823 = vpop.xlane.xlu0 %1822
    %vm1824 = vcmp.le.f32.partialorder %v1592, %v1820
    %vm1825 = vcmp.le.f32.partialorder %v1597, %v1823
    %v1826 = vsel %vm1824, %v1599, 128
    %v1827 = vsel %vm1825, %v1599, 128
    %v1828 = vand.u32 %v1826, 65535
    %v1829 = vshra.s32 %v1826, 16
    %v1830 = vcvt.s32.f32 %v1828
    %v1831 = vcvt.s32.f32 %v1829
    %1832 = vmin.xlane.f32.xlu0 %v1831
    %v1833 = vpop.xlane.xlu0 %1832
    %vm1834 = vcmp.eq.f32.partialorder %v1831, %v1833
    %v1835 = vsel %vm1834, %v1830, inf
    %1836 = vmin.xlane.f32.xlu0 %v1835
    %v1837 = vpop.xlane.xlu0 %1836
    %v1838 = vcvt.f32.s32 %v1837
    %v1839 = vcvt.f32.s32 %v1833
    %v1840 = vshll.u32 %v1839, 16
    %v1841 = vadd.s32 %v1840, %v1838
    %v1842 = vsel %vm1602, %v1827, 2147483647
    %v1843 = vand.u32 %v1842, 65535
    %v1844 = vshra.s32 %v1842, 16
    %v1845 = vcvt.s32.f32 %v1843
    %v1846 = vcvt.s32.f32 %v1844
    %1847 = vmin.xlane.f32.xlu0 %v1846
    %v1848 = vpop.xlane.xlu0 %1847
    %vm1849 = vcmp.eq.f32.partialorder %v1846, %v1848
    %v1850 = vsel %vm1849, %v1845, inf
    %1851 = vmin.xlane.f32.xlu0 %v1850
    %v1852 = vpop.xlane.xlu0 %1851
    %v1853 = vcvt.f32.s32 %v1852
    %v1854 = vcvt.f32.s32 %v1848
    %v1855 = vshll.u32 %v1854, 16
    %v1856 = vadd.s32 %v1855, %v1853
    %vm1857 = vcmp.eq.s32.totalorder %v1599, 4
    %v1858 = vsel %vm1857, %v1841, %v1804
    %v1859 = vsel %vm1857, %v1856, %v1805
    %v1860 = vsel %vm1642, %v1820, 0.0
    %v1861 = vsel %vm1644, %v1823, 0.0
    %v1862 = vadd.f32 %v1860, %v1861
    %1863 = vadd.xlane.f32.xlu0 %v1862
    %v1864 = vpop.xlane.xlu0 %1863
    %v1865 = vrot.slane %v1864, 4
    %v1866 = vadd.f32 %v1864, %v1865
    %v1867 = vrot.slane %v1866, 2
    %v1868 = vadd.f32 %v1866, %v1867
    %v1869 = vrot.slane %v1868, 1
    %v1870 = vadd.f32 %v1868, %v1869
    %s1871 = vtos %v1870
    %s1872 = sadd.f32 %s1818, %s1871
    %vm1873 = vcmask 39936
    %1874 = vst.msk [vmem:[%s20] sm:$0xff] %vm1873, %v1858
    %vm1875 = vcmask 33792
    %1876 = vst.msk [vmem:[%s20 + $0x8] sm:$0x3] %vm1875, %v1859
    %v1877 = vmul.f32 %v1279, %v1279
    %v1878 = vmul.f32 %v1280, %v1280
    %v1879 = vsel %vm925, %v1877, 0.0
    %v1880 = vsel %vm927, %v1878, 0.0
    %v1881 = vadd.f32 %v1879, %v1880
    %1882 = vadd.xlane.f32.xlu0 %v1881
    %v1883 = vpop.xlane.xlu0 %1882
    %v1884 = vrot.slane %v1883, 4
    %v1885 = vadd.f32 %v1883, %v1884
    %v1886 = vrot.slane %v1885, 2
    %v1887 = vadd.f32 %v1885, %v1886
    %v1888 = vrot.slane %v1887, 1
    %v1889 = vadd.f32 %v1887, %v1888
    %s1890 = vtos %v1889
    %s1891 = sadd.f32 %s1890, %s1872
    %s1892 = smax.f32 %s1891, 0.0
    %v1893 = vrcp.pop 400.0
    %s1894 = vtos %v1893
    %s1895 = smul.f32 %s1892, %s1894
    %s1896 = scalar_lea.smem [#allocation5], 0
    %1897 = sst [smem:[%s1896]] %s1895
    %v1898 = vld [vmem:[#allocation3] sm:$0xff]
    %v1899 = vld [vmem:[#allocation3 + $0x8] sm:$0x3f]
    %v1900 = vld [vmem:[%s9] sm:$0xff]
    %v1901 = vld [vmem:[%s9 + $0x8] sm:$0xff]
    %v1902 = vld [vmem:[%s9 + $0x10] sm:$0xff]
    %v1903 = vld [vmem:[%s9 + $0x18] sm:$0xff]
    %v1904 = vld [vmem:[%s9 + $0x20] sm:$0xff]
    %v1905 = vld [vmem:[%s9 + $0x28] sm:$0xff]
    %v1906 = vld [vmem:[%s9 + $0x30] sm:$0xff]
    %v1907 = vld [vmem:[%s9 + $0x38] sm:$0xff]
    %v1908 = vld [vmem:[%s9 + $0x40] sm:$0xff]
    %v1909 = vld [vmem:[#allocation3 + $0x2] sm:$0xff]
    %v1910 = vld [vmem:[#allocation3 + $0xa] sm:$0x3f]
    %s1911 = scalar_lea.vmem %s9, 72
    %v1912 = vld [vmem:[%s1911] sm:$0xff]
    %v1913 = vld [vmem:[%s1911 + $0x8] sm:$0xff]
    %v1914 = vld [vmem:[%s1911 + $0x10] sm:$0xff]
    %v1915 = vld [vmem:[%s1911 + $0x18] sm:$0xff]
    %v1916 = vld [vmem:[%s1911 + $0x20] sm:$0xff]
    %v1917 = vld [vmem:[%s1911 + $0x28] sm:$0xff]
    %v1918 = vld [vmem:[%s1911 + $0x30] sm:$0xff]
    %v1919 = vld [vmem:[%s1911 + $0x38] sm:$0xff]
    %v1920 = vld [vmem:[%s1911 + $0x40] sm:$0xff]
    %vm1921 = vcmask 588800
    %v1923 = vsel %vm1921, %v1909, 0
    %v1926 = vsel %vm1921, %v1910, 0
    %1928 = vmatprep.subr.mxu0 0.0
    %1929 = vmatpush1.msra.mxu0 %v1912
    %1930 = vmatprep.subr.mxu0 0.0
    %1931 = vmatpush1.msra.mxu0 %v1913
    %1932 = vmatprep.subr.mxu0 0.0
    %1933 = vmatpush1.msra.mxu0 %v1914
    %1934 = vmatprep.subr.mxu0 0.0
    %1935 = vmatpush1.msra.mxu0 %v1915
    %1936 = vmatprep.subr.mxu0 0.0
    %1937 = vmatpush1.msra.mxu0 %v1916
    %1938 = vmatprep.subr.mxu0 0.0
    %1939 = vmatpush1.msra.mxu0 %v1917
    %1940 = vmatprep.subr.mxu0 0.0
    %1941 = vmatpush1.msra.mxu0 %v1918
    %1942 = vmatprep.subr.mxu0 0.0
    %1943 = vmatpush1.msra.mxu0 %v1919
    %1944 = vmatprep.subr.mxu0 0.0
    %1945 = vmatpush1.msra.mxu0 %v1920
    %1946 = vmatprep.subr.mxu0 0.0
    %1947 = vmatpush1.msra.mxu0 0.0
    %1948 = vmatprep.subr.mxu0 0.0
    %1949 = vmatpush1.msra.mxu0 0.0
    %1950 = vmatprep.subr.mxu0 0.0
    %1951 = vmatpush1.msra.mxu0 0.0
    %1952 = vmatprep.subr.mxu0 0.0
    %1953 = vmatpush1.msra.mxu0 0.0
    %1954 = vmatprep.subr.mxu0 0.0
    %1955 = vmatpush1.msra.mxu0 0.0
    %1956 = vmatprep.subr.mxu0 0.0
    %1957 = vmatpush1.msra.mxu0 0.0
    %1958 = vmatprep.subr.mxu0 0.0
    %1959 = vmatpush1.msra.mxu0 0.0
    %1960 = vmatprep.subr.mxu0 0.0
    %1961 = vmatpush1.msra.mxu0 0.0
    %1962 = vmatprep.subr.mxu0 0.0
    %1963 = vmatpush1.msra.mxu0 0.0
    %1964 = vmatprep.subr.mxu0 0.0
    %1965 = vmatpush1.msra.mxu0 0.0
    %1966 = vmatprep.subr.mxu0 0.0
    %1967 = vmatpush1.msra.mxu0 0.0
    %1968 = vmatprep.subr.mxu0 0.0
    %1969 = vmatpush1.msra.mxu0 0.0
    %1970 = vmatprep.subr.mxu0 0.0
    %1971 = vmatpush1.msra.mxu0 0.0
    %1972 = vmatprep.subr.mxu0 0.0
    %1973 = vmatpush1.msra.mxu0 0.0
    %1974 = vmatprep.subr.mxu0 0.0
    %1975 = vmatpush1.msra.mxu0 0.0
    %1976 = vmatprep.subr.mxu0 0.0
    %1977 = vmatpush1.msra.mxu0 0.0
    %1978 = vmatprep.subr.mxu0 0.0
    %1979 = vmatpush1.msra.mxu0 0.0
    %1980 = vmatprep.subr.mxu0 0.0
    %1981 = vmatpush1.msra.mxu0 0.0
    %1982 = vmatprep.subr.mxu0 0.0
    %1983 = vmatpush1.msra.mxu0 0.0
    %1984 = vmatprep.subr.mxu0 0.0
    %1985 = vmatpush1.msra.mxu0 0.0
    %1986 = vmatprep.subr.mxu0 0.0
    %1987 = vmatpush1.msra.mxu0 0.0
    %1988 = vmatprep.subr.mxu0 0.0
    %1989 = vmatpush1.msra.mxu0 0.0
    %1990 = vmatprep.subr.mxu0 0.0
    %1991 = vmatpush1.msra.mxu0 0.0
    %1992 = vmatprep.mubr.f32.mxu0 0.0
    %1993 = vmatmul.mubr.f32.gmra.mrb[0].mxu0 %v1923
    %v1994 = vpop.f32.mrb[0].mxu0
    %v1995 = vadd.f32 0.0, %v1994
    %v1996 = vpop.f32.mrb[0].mxu0
    %1997 = vmatprep.mubr.f32.mxu0 0.0
    %1998 = vmatmul.mubr.f32.gmra.mrb[0].mxu0 %v1926
    %v1999 = vpop.f32.mrb[0].mxu0
    %v2000 = vadd.f32 0.0, %v1999
    %v2001 = vpop.f32.mrb[0].mxu0
    %2002 = vdwg.mxu0
    %v2004 = vsel %vm1921, %v1898, 0
    %v2007 = vsel %vm1921, %v1899, 0
    %2009 = vmatprep.subr.mxu0 0.0
    %2010 = vmatpush1.msra.mxu0 %v1900
    %2011 = vmatprep.subr.mxu0 0.0
    %2012 = vmatpush1.msra.mxu0 %v1901
    %2013 = vmatprep.subr.mxu0 0.0
    %2014 = vmatpush1.msra.mxu0 %v1902
    %2015 = vmatprep.subr.mxu0 0.0
    %2016 = vmatpush1.msra.mxu0 %v1903
    %2017 = vmatprep.subr.mxu0 0.0
    %2018 = vmatpush1.msra.mxu0 %v1904
    %2019 = vmatprep.subr.mxu0 0.0
    %2020 = vmatpush1.msra.mxu0 %v1905
    %2021 = vmatprep.subr.mxu0 0.0
    %2022 = vmatpush1.msra.mxu0 %v1906
    %2023 = vmatprep.subr.mxu0 0.0
    %2024 = vmatpush1.msra.mxu0 %v1907
    %2025 = vmatprep.subr.mxu0 0.0
    %2026 = vmatpush1.msra.mxu0 %v1908
    %2027 = vmatprep.subr.mxu0 0.0
    %2028 = vmatpush1.msra.mxu0 0.0
    %2029 = vmatprep.subr.mxu0 0.0
    %2030 = vmatpush1.msra.mxu0 0.0
    %2031 = vmatprep.subr.mxu0 0.0
    %2032 = vmatpush1.msra.mxu0 0.0
    %2033 = vmatprep.subr.mxu0 0.0
    %2034 = vmatpush1.msra.mxu0 0.0
    %2035 = vmatprep.subr.mxu0 0.0
    %2036 = vmatpush1.msra.mxu0 0.0
    %2037 = vmatprep.subr.mxu0 0.0
    %2038 = vmatpush1.msra.mxu0 0.0
    %2039 = vmatprep.subr.mxu0 0.0
    %2040 = vmatpush1.msra.mxu0 0.0
    %2041 = vmatprep.subr.mxu0 0.0
    %2042 = vmatpush1.msra.mxu0 0.0
    %2043 = vmatprep.subr.mxu0 0.0
    %2044 = vmatpush1.msra.mxu0 0.0
    %2045 = vmatprep.subr.mxu0 0.0
    %2046 = vmatpush1.msra.mxu0 0.0
    %2047 = vmatprep.subr.mxu0 0.0
    %2048 = vmatpush1.msra.mxu0 0.0
    %2049 = vmatprep.subr.mxu0 0.0
    %2050 = vmatpush1.msra.mxu0 0.0
    %2051 = vmatprep.subr.mxu0 0.0
    %2052 = vmatpush1.msra.mxu0 0.0
    %2053 = vmatprep.subr.mxu0 0.0
    %2054 = vmatpush1.msra.mxu0 0.0
    %2055 = vmatprep.subr.mxu0 0.0
    %2056 = vmatpush1.msra.mxu0 0.0
    %2057 = vmatprep.subr.mxu0 0.0
    %2058 = vmatpush1.msra.mxu0 0.0
    %2059 = vmatprep.subr.mxu0 0.0
    %2060 = vmatpush1.msra.mxu0 0.0
    %2061 = vmatprep.subr.mxu0 0.0
    %2062 = vmatpush1.msra.mxu0 0.0
    %2063 = vmatprep.subr.mxu0 0.0
    %2064 = vmatpush1.msra.mxu0 0.0
    %2065 = vmatprep.subr.mxu0 0.0
    %2066 = vmatpush1.msra.mxu0 0.0
    %2067 = vmatprep.subr.mxu0 0.0
    %2068 = vmatpush1.msra.mxu0 0.0
    %2069 = vmatprep.subr.mxu0 0.0
    %2070 = vmatpush1.msra.mxu0 0.0
    %2071 = vmatprep.subr.mxu0 0.0
    %2072 = vmatpush1.msra.mxu0 0.0
    %2073 = vmatprep.mubr.f32.mxu0 0.0
    %2074 = vmatmul.mubr.f32.gmra.mrb[0].mxu0 %v2004
    %v2075 = vpop.f32.mrb[0].mxu0
    %v2076 = vadd.f32 %v1995, %v2075
    %v2077 = vpop.f32.mrb[0].mxu0
    %2078 = vmatprep.mubr.f32.mxu0 0.0
    %2079 = vmatmul.mubr.f32.gmra.mrb[0].mxu0 %v2007
    %v2080 = vpop.f32.mrb[0].mxu0
    %v2081 = vadd.f32 %v2000, %v2080
    %v2082 = vpop.f32.mrb[0].mxu0
    %2083 = vdwg.mxu0
    %v2084 = vld [vmem:[#allocation3 + $0x4] sm:$0xff]
    %v2085 = vld [vmem:[#allocation3 + $0xc] sm:$0x3f]
    %s2086 = scalar_lea.vmem %s9, 144
    %v2087 = vld [vmem:[%s2086] sm:$0xff]
    %v2088 = vld [vmem:[%s2086 + $0x8] sm:$0xff]
    %v2089 = vld [vmem:[%s2086 + $0x10] sm:$0xff]
    %v2090 = vld [vmem:[%s2086 + $0x18] sm:$0xff]
    %v2091 = vld [vmem:[%s2086 + $0x20] sm:$0xff]
    %v2092 = vld [vmem:[%s2086 + $0x28] sm:$0xff]
    %v2093 = vld [vmem:[%s2086 + $0x30] sm:$0xff]
    %v2094 = vld [vmem:[%s2086 + $0x38] sm:$0xff]
    %v2095 = vld [vmem:[%s2086 + $0x40] sm:$0xff]
    %v2097 = vsel %vm1921, %v2084, 0
    %v2100 = vsel %vm1921, %v2085, 0
    %2102 = vmatprep.subr.mxu0 0.0
    %2103 = vmatpush1.msra.mxu0 %v2087
    %2104 = vmatprep.subr.mxu0 0.0
    %2105 = vmatpush1.msra.mxu0 %v2088
    %2106 = vmatprep.subr.mxu0 0.0
    %2107 = vmatpush1.msra.mxu0 %v2089
    %2108 = vmatprep.subr.mxu0 0.0
    %2109 = vmatpush1.msra.mxu0 %v2090
    %2110 = vmatprep.subr.mxu0 0.0
    %2111 = vmatpush1.msra.mxu0 %v2091
    %2112 = vmatprep.subr.mxu0 0.0
    %2113 = vmatpush1.msra.mxu0 %v2092
    %2114 = vmatprep.subr.mxu0 0.0
    %2115 = vmatpush1.msra.mxu0 %v2093
    %2116 = vmatprep.subr.mxu0 0.0
    %2117 = vmatpush1.msra.mxu0 %v2094
    %2118 = vmatprep.subr.mxu0 0.0
    %2119 = vmatpush1.msra.mxu0 %v2095
    %2120 = vmatprep.subr.mxu0 0.0
    %2121 = vmatpush1.msra.mxu0 0.0
    %2122 = vmatprep.subr.mxu0 0.0
    %2123 = vmatpush1.msra.mxu0 0.0
    %2124 = vmatprep.subr.mxu0 0.0
    %2125 = vmatpush1.msra.mxu0 0.0
    %2126 = vmatprep.subr.mxu0 0.0
    %2127 = vmatpush1.msra.mxu0 0.0
    %2128 = vmatprep.subr.mxu0 0.0
    %2129 = vmatpush1.msra.mxu0 0.0
    %2130 = vmatprep.subr.mxu0 0.0
    %2131 = vmatpush1.msra.mxu0 0.0
    %2132 = vmatprep.subr.mxu0 0.0
    %2133 = vmatpush1.msra.mxu0 0.0
    %2134 = vmatprep.subr.mxu0 0.0
    %2135 = vmatpush1.msra.mxu0 0.0
    %2136 = vmatprep.subr.mxu0 0.0
    %2137 = vmatpush1.msra.mxu0 0.0
    %2138 = vmatprep.subr.mxu0 0.0
    %2139 = vmatpush1.msra.mxu0 0.0
    %2140 = vmatprep.subr.mxu0 0.0
    %2141 = vmatpush1.msra.mxu0 0.0
    %2142 = vmatprep.subr.mxu0 0.0
    %2143 = vmatpush1.msra.mxu0 0.0
    %2144 = vmatprep.subr.mxu0 0.0
    %2145 = vmatpush1.msra.mxu0 0.0
    %2146 = vmatprep.subr.mxu0 0.0
    %2147 = vmatpush1.msra.mxu0 0.0
    %2148 = vmatprep.subr.mxu0 0.0
    %2149 = vmatpush1.msra.mxu0 0.0
    %2150 = vmatprep.subr.mxu0 0.0
    %2151 = vmatpush1.msra.mxu0 0.0
    %2152 = vmatprep.subr.mxu0 0.0
    %2153 = vmatpush1.msra.mxu0 0.0
    %2154 = vmatprep.subr.mxu0 0.0
    %2155 = vmatpush1.msra.mxu0 0.0
    %2156 = vmatprep.subr.mxu0 0.0
    %2157 = vmatpush1.msra.mxu0 0.0
    %2158 = vmatprep.subr.mxu0 0.0
    %2159 = vmatpush1.msra.mxu0 0.0
    %2160 = vmatprep.subr.mxu0 0.0
    %2161 = vmatpush1.msra.mxu0 0.0
    %2162 = vmatprep.subr.mxu0 0.0
    %2163 = vmatpush1.msra.mxu0 0.0
    %2164 = vmatprep.subr.mxu0 0.0
    %2165 = vmatpush1.msra.mxu0 0.0
    %2166 = vmatprep.mubr.f32.mxu0 0.0
    %2167 = vmatmul.mubr.f32.gmra.mrb[0].mxu0 %v2097
    %v2168 = vpop.f32.mrb[0].mxu0
    %v2169 = vadd.f32 0.0, %v2168
    %v2170 = vpop.f32.mrb[0].mxu0
    %2171 = vmatprep.mubr.f32.mxu0 0.0
    %2172 = vmatmul.mubr.f32.gmra.mrb[0].mxu0 %v2100
    %v2173 = vpop.f32.mrb[0].mxu0
    %v2174 = vadd.f32 0.0, %v2173
    %v2175 = vpop.f32.mrb[0].mxu0
    %2176 = vdwg.mxu0
    %v2177 = vadd.f32 %v2076, %v2169
    %v2178 = vadd.f32 %v2081, %v2174
    %v2179 = vld [vmem:[%s10] sm:$0xff]
    %v2180 = vld [vmem:[%s10 + $0x8] sm:$0xff]
    %v2181 = vld [vmem:[%s10 + $0x10] sm:$0xff]
    %v2182 = vld [vmem:[%s10 + $0x18] sm:$0xff]
    %v2183 = vld [vmem:[%s10 + $0x20] sm:$0xff]
    %v2184 = vld [vmem:[%s10 + $0x28] sm:$0xff]
    %v2185 = vld [vmem:[%s10 + $0x30] sm:$0xff]
    %v2186 = vsel %vm282, %v2177, 0.0
    %v2187 = vsel %vm284, %v2178, 0.0
    %v2188 = vadd.f32 %v2186, %v2187
    %v2189 = vrot.slane %v2188, 4
    %v2190 = vadd.f32 %v2188, %v2189
    %v2191 = vrot.slane %v2190, 2
    %v2192 = vadd.f32 %v2190, %v2191
    %v2193 = vrot.slane %v2192, 1
    %v2194 = vadd.f32 %v2192, %v2193
    %v2196 = vsel %vm282, %v2194, 0
    %2198 = vmatprep.subr.mxu0 0.0
    %2199 = vmatpush1.msra.mxu0 %v2179
    %2200 = vmatprep.subr.mxu0 0.0
    %2201 = vmatpush1.msra.mxu0 %v2180
    %2202 = vmatprep.subr.mxu0 0.0
    %2203 = vmatpush1.msra.mxu0 %v2181
    %2204 = vmatprep.subr.mxu0 0.0
    %2205 = vmatpush1.msra.mxu0 %v2182
    %2206 = vmatprep.subr.mxu0 0.0
    %2207 = vmatpush1.msra.mxu0 %v2183
    %2208 = vmatprep.subr.mxu0 0.0
    %2209 = vmatpush1.msra.mxu0 %v2184
    %2210 = vmatprep.subr.mxu0 0.0
    %2211 = vmatpush1.msra.mxu0 %v2185
    %2212 = vmatprep.subr.mxu0 0.0
    %2213 = vmatpush1.msra.mxu0 0.0
    %2214 = vmatprep.subr.mxu0 0.0
    %2215 = vmatpush1.msra.mxu0 0.0
    %2216 = vmatprep.subr.mxu0 0.0
    %2217 = vmatpush1.msra.mxu0 0.0
    %2218 = vmatprep.subr.mxu0 0.0
    %2219 = vmatpush1.msra.mxu0 0.0
    %2220 = vmatprep.subr.mxu0 0.0
    %2221 = vmatpush1.msra.mxu0 0.0
    %2222 = vmatprep.subr.mxu0 0.0
    %2223 = vmatpush1.msra.mxu0 0.0
    %2224 = vmatprep.subr.mxu0 0.0
    %2225 = vmatpush1.msra.mxu0 0.0
    %2226 = vmatprep.subr.mxu0 0.0
    %2227 = vmatpush1.msra.mxu0 0.0
    %2228 = vmatprep.subr.mxu0 0.0
    %2229 = vmatpush1.msra.mxu0 0.0
    %2230 = vmatprep.subr.mxu0 0.0
    %2231 = vmatpush1.msra.mxu0 0.0
    %2232 = vmatprep.subr.mxu0 0.0
    %2233 = vmatpush1.msra.mxu0 0.0
    %2234 = vmatprep.subr.mxu0 0.0
    %2235 = vmatpush1.msra.mxu0 0.0
    %2236 = vmatprep.subr.mxu0 0.0
    %2237 = vmatpush1.msra.mxu0 0.0
    %2238 = vmatprep.subr.mxu0 0.0
    %2239 = vmatpush1.msra.mxu0 0.0
    %2240 = vmatprep.subr.mxu0 0.0
    %2241 = vmatpush1.msra.mxu0 0.0
    %2242 = vmatprep.subr.mxu0 0.0
    %2243 = vmatpush1.msra.mxu0 0.0
    %2244 = vmatprep.subr.mxu0 0.0
    %2245 = vmatpush1.msra.mxu0 0.0
    %2246 = vmatprep.subr.mxu0 0.0
    %2247 = vmatpush1.msra.mxu0 0.0
    %2248 = vmatprep.subr.mxu0 0.0
    %2249 = vmatpush1.msra.mxu0 0.0
    %2250 = vmatprep.subr.mxu0 0.0
    %2251 = vmatpush1.msra.mxu0 0.0
    %2252 = vmatprep.subr.mxu0 0.0
    %2253 = vmatpush1.msra.mxu0 0.0
    %2254 = vmatprep.subr.mxu0 0.0
    %2255 = vmatpush1.msra.mxu0 0.0
    %2256 = vmatprep.subr.mxu0 0.0
    %2257 = vmatpush1.msra.mxu0 0.0
    %2258 = vmatprep.subr.mxu0 0.0
    %2259 = vmatpush1.msra.mxu0 0.0
    %2260 = vmatprep.subr.mxu0 0.0
    %2261 = vmatpush1.msra.mxu0 0.0
    %2262 = vmatprep.mubr.f32.mxu0 0.0
    %2263 = vmatmul.mubr.f32.gmra.mrb[0].mxu0 %v2196
    %v2264 = vpop.f32.mrb[0].mxu0
    %v2265 = vadd.f32 0.0, %v2264
    %v2266 = vpop.f32.mrb[0].mxu0
    %2267 = vdwg.mxu0
    %v2268 = vmul.f32 %v2177, %v2177
    %v2269 = vmul.f32 %v2178, %v2178
    %v2270 = vsel %vm282, %v2268, 0.0
    %v2271 = vsel %vm284, %v2269, 0.0
    %v2272 = vadd.f32 %v2270, %v2271
    %v2273 = vrot.slane %v2272, 4
    %v2274 = vadd.f32 %v2272, %v2273
    %v2275 = vrot.slane %v2274, 2
    %v2276 = vadd.f32 %v2274, %v2275
    %v2277 = vrot.slane %v2276, 1
    %v2278 = vadd.f32 %v2276, %v2277
    %v2280 = vsel %vm282, %v2278, 0
    %2282 = vmatprep.subr.mxu0 0.0
    %2283 = vmatpush1.msra.mxu0 %v2179
    %2284 = vmatprep.subr.mxu0 0.0
    %2285 = vmatpush1.msra.mxu0 %v2180
    %2286 = vmatprep.subr.mxu0 0.0
    %2287 = vmatpush1.msra.mxu0 %v2181
    %2288 = vmatprep.subr.mxu0 0.0
    %2289 = vmatpush1.msra.mxu0 %v2182
    %2290 = vmatprep.subr.mxu0 0.0
    %2291 = vmatpush1.msra.mxu0 %v2183
    %2292 = vmatprep.subr.mxu0 0.0
    %2293 = vmatpush1.msra.mxu0 %v2184
    %2294 = vmatprep.subr.mxu0 0.0
    %2295 = vmatpush1.msra.mxu0 %v2185
    %2296 = vmatprep.subr.mxu0 0.0
    %2297 = vmatpush1.msra.mxu0 0.0
    %2298 = vmatprep.subr.mxu0 0.0
    %2299 = vmatpush1.msra.mxu0 0.0
    %2300 = vmatprep.subr.mxu0 0.0
    %2301 = vmatpush1.msra.mxu0 0.0
    %2302 = vmatprep.subr.mxu0 0.0
    %2303 = vmatpush1.msra.mxu0 0.0
    %2304 = vmatprep.subr.mxu0 0.0
    %2305 = vmatpush1.msra.mxu0 0.0
    %2306 = vmatprep.subr.mxu0 0.0
    %2307 = vmatpush1.msra.mxu0 0.0
    %2308 = vmatprep.subr.mxu0 0.0
    %2309 = vmatpush1.msra.mxu0 0.0
    %2310 = vmatprep.subr.mxu0 0.0
    %2311 = vmatpush1.msra.mxu0 0.0
    %2312 = vmatprep.subr.mxu0 0.0
    %2313 = vmatpush1.msra.mxu0 0.0
    %2314 = vmatprep.subr.mxu0 0.0
    %2315 = vmatpush1.msra.mxu0 0.0
    %2316 = vmatprep.subr.mxu0 0.0
    %2317 = vmatpush1.msra.mxu0 0.0
    %2318 = vmatprep.subr.mxu0 0.0
    %2319 = vmatpush1.msra.mxu0 0.0
    %2320 = vmatprep.subr.mxu0 0.0
    %2321 = vmatpush1.msra.mxu0 0.0
    %2322 = vmatprep.subr.mxu0 0.0
    %2323 = vmatpush1.msra.mxu0 0.0
    %2324 = vmatprep.subr.mxu0 0.0
    %2325 = vmatpush1.msra.mxu0 0.0
    %2326 = vmatprep.subr.mxu0 0.0
    %2327 = vmatpush1.msra.mxu0 0.0
    %2328 = vmatprep.subr.mxu0 0.0
    %2329 = vmatpush1.msra.mxu0 0.0
    %2330 = vmatprep.subr.mxu0 0.0
    %2331 = vmatpush1.msra.mxu0 0.0
    %2332 = vmatprep.subr.mxu0 0.0
    %2333 = vmatpush1.msra.mxu0 0.0
    %2334 = vmatprep.subr.mxu0 0.0
    %2335 = vmatpush1.msra.mxu0 0.0
    %2336 = vmatprep.subr.mxu0 0.0
    %2337 = vmatpush1.msra.mxu0 0.0
    %2338 = vmatprep.subr.mxu0 0.0
    %2339 = vmatpush1.msra.mxu0 0.0
    %2340 = vmatprep.subr.mxu0 0.0
    %2341 = vmatpush1.msra.mxu0 0.0
    %2342 = vmatprep.subr.mxu0 0.0
    %2343 = vmatpush1.msra.mxu0 0.0
    %2344 = vmatprep.subr.mxu0 0.0
    %2345 = vmatpush1.msra.mxu0 0.0
    %2346 = vmatprep.mubr.f32.mxu0 0.0
    %2347 = vmatmul.mubr.f32.gmra.mrb[0].mxu0 %v2280
    %v2348 = vpop.f32.mrb[0].mxu0
    %v2349 = vadd.f32 0.0, %v2348
    %v2350 = vpop.f32.mrb[0].mxu0
    %2351 = vdwg.mxu0
    %v2352 = vmul.f32 %v2265, %v450
    %v2353 = vmul.f32 %v2349, %v450
    %v2354 = vmul.f32 %v2352, %v2352
    %v2355 = vsub.f32 %v2353, %v2354
    %v2356 = vmax.f32 %v2355, 0.0
    %v2357 = vadd.f32 %v2356, 1e-05
    %v2358 = vrsqrt.pop %v2357
    %v2359 = vld [vmem:[%s11] sm:$0x1]
    %v2360 = vmul.f32 %v2359, %v2358
    %v2361 = vld [vmem:[%s12] sm:$0x1]
    %v2362 = vmul.f32 %v2352, %v2360
    %v2363 = vsub.f32 %v2361, %v2362
    %v2365 = vsel %vm80, %v2360, 0
    %v2368 = vsel %vm80, %v2179, 0
    %v2371 = vsel %vm80, %v2180, 0
    %v2374 = vsel %vm80, %v2181, 0
    %v2377 = vsel %vm80, %v2182, 0
    %v2380 = vsel %vm80, %v2183, 0
    %v2383 = vsel %vm80, %v2184, 0
    %v2386 = vsel %vm80, %v2185, 0
    %2388 = vmatprep.subr.mxu0 0.0
    %2389 = vmatpush1.xpose.msra.mxu0 %v2368
    %2390 = vmatprep.subr.mxu0 0.0
    %2391 = vmatpush1.xpose.msra.mxu0 %v2371
    %2392 = vmatprep.subr.mxu0 0.0
    %2393 = vmatpush1.xpose.msra.mxu0 %v2374
    %2394 = vmatprep.subr.mxu0 0.0
    %2395 = vmatpush1.xpose.msra.mxu0 %v2377
    %2396 = vmatprep.subr.mxu0 0.0
    %2397 = vmatpush1.xpose.msra.mxu0 %v2380
    %2398 = vmatprep.subr.mxu0 0.0
    %2399 = vmatpush1.xpose.msra.mxu0 %v2383
    %2400 = vmatprep.subr.mxu0 0.0
    %2401 = vmatpush1.xpose.msra.mxu0 %v2386
    %2402 = vmatprep.subr.mxu0 0.0
    %2403 = vmatpush1.xpose.msra.mxu0 0.0
    %2404 = vmatprep.subr.mxu0 0.0
    %2405 = vmatpush1.xpose.msra.mxu0 0.0
    %2406 = vmatprep.subr.mxu0 0.0
    %2407 = vmatpush1.xpose.msra.mxu0 0.0
    %2408 = vmatprep.subr.mxu0 0.0
    %2409 = vmatpush1.xpose.msra.mxu0 0.0
    %2410 = vmatprep.subr.mxu0 0.0
    %2411 = vmatpush1.xpose.msra.mxu0 0.0
    %2412 = vmatprep.subr.mxu0 0.0
    %2413 = vmatpush1.xpose.msra.mxu0 0.0
    %2414 = vmatprep.subr.mxu0 0.0
    %2415 = vmatpush1.xpose.msra.mxu0 0.0
    %2416 = vmatprep.subr.mxu0 0.0
    %2417 = vmatpush1.xpose.msra.mxu0 0.0
    %2418 = vmatprep.subr.mxu0 0.0
    %2419 = vmatpush1.xpose.msra.mxu0 0.0
    %2420 = vmatprep.subr.mxu0 0.0
    %2421 = vmatpush1.xpose.msra.mxu0 0.0
    %2422 = vmatprep.subr.mxu0 0.0
    %2423 = vmatpush1.xpose.msra.mxu0 0.0
    %2424 = vmatprep.subr.mxu0 0.0
    %2425 = vmatpush1.xpose.msra.mxu0 0.0
    %2426 = vmatprep.subr.mxu0 0.0
    %2427 = vmatpush1.xpose.msra.mxu0 0.0
    %2428 = vmatprep.subr.mxu0 0.0
    %2429 = vmatpush1.xpose.msra.mxu0 0.0
    %2430 = vmatprep.subr.mxu0 0.0
    %2431 = vmatpush1.xpose.msra.mxu0 0.0
    %2432 = vmatprep.subr.mxu0 0.0
    %2433 = vmatpush1.xpose.msra.mxu0 0.0
    %2434 = vmatprep.subr.mxu0 0.0
    %2435 = vmatpush1.xpose.msra.mxu0 0.0
    %2436 = vmatprep.subr.mxu0 0.0
    %2437 = vmatpush1.xpose.msra.mxu0 0.0
    %2438 = vmatprep.subr.mxu0 0.0
    %2439 = vmatpush1.xpose.msra.mxu0 0.0
    %2440 = vmatprep.subr.mxu0 0.0
    %2441 = vmatpush1.xpose.msra.mxu0 0.0
    %2442 = vmatprep.subr.mxu0 0.0
    %2443 = vmatpush1.xpose.msra.mxu0 0.0
    %2444 = vmatprep.subr.mxu0 0.0
    %2445 = vmatpush1.xpose.msra.mxu0 0.0
    %2446 = vmatprep.subr.mxu0 0.0
    %2447 = vmatpush1.xpose.msra.mxu0 0.0
    %2448 = vmatprep.subr.mxu0 0.0
    %2449 = vmatpush1.xpose.msra.mxu0 0.0
    %2450 = vmatprep.subr.mxu0 0.0
    %2451 = vmatpush1.xpose.msra.mxu0 0.0
    %2452 = vmatprep.mubr.f32.mxu0 0.0
    %2453 = vmatmul.mubr.f32.gmra.mrb[0].mxu0 %v2365
    %v2454 = vpop.f32.mrb[0].mxu0
    %v2455 = vadd.f32 0.0, %v2454
    %v2456 = vpop.f32.mrb[0].mxu0
    %2457 = vdwg.mxu0
    %v2459 = vsel %vm80, %v2363, 0
    %2461 = vmatprep.subr.mxu0 0.0
    %2462 = vmatpush1.xpose.msra.mxu0 %v2368
    %2463 = vmatprep.subr.mxu0 0.0
    %2464 = vmatpush1.xpose.msra.mxu0 %v2371
    %2465 = vmatprep.subr.mxu0 0.0
    %2466 = vmatpush1.xpose.msra.mxu0 %v2374
    %2467 = vmatprep.subr.mxu0 0.0
    %2468 = vmatpush1.xpose.msra.mxu0 %v2377
    %2469 = vmatprep.subr.mxu0 0.0
    %2470 = vmatpush1.xpose.msra.mxu0 %v2380
    %2471 = vmatprep.subr.mxu0 0.0
    %2472 = vmatpush1.xpose.msra.mxu0 %v2383
    %2473 = vmatprep.subr.mxu0 0.0
    %2474 = vmatpush1.xpose.msra.mxu0 %v2386
    %2475 = vmatprep.subr.mxu0 0.0
    %2476 = vmatpush1.xpose.msra.mxu0 0.0
    %2477 = vmatprep.subr.mxu0 0.0
    %2478 = vmatpush1.xpose.msra.mxu0 0.0
    %2479 = vmatprep.subr.mxu0 0.0
    %2480 = vmatpush1.xpose.msra.mxu0 0.0
    %2481 = vmatprep.subr.mxu0 0.0
    %2482 = vmatpush1.xpose.msra.mxu0 0.0
    %2483 = vmatprep.subr.mxu0 0.0
    %2484 = vmatpush1.xpose.msra.mxu0 0.0
    %2485 = vmatprep.subr.mxu0 0.0
    %2486 = vmatpush1.xpose.msra.mxu0 0.0
    %2487 = vmatprep.subr.mxu0 0.0
    %2488 = vmatpush1.xpose.msra.mxu0 0.0
    %2489 = vmatprep.subr.mxu0 0.0
    %2490 = vmatpush1.xpose.msra.mxu0 0.0
    %2491 = vmatprep.subr.mxu0 0.0
    %2492 = vmatpush1.xpose.msra.mxu0 0.0
    %2493 = vmatprep.subr.mxu0 0.0
    %2494 = vmatpush1.xpose.msra.mxu0 0.0
    %2495 = vmatprep.subr.mxu0 0.0
    %2496 = vmatpush1.xpose.msra.mxu0 0.0
    %2497 = vmatprep.subr.mxu0 0.0
    %2498 = vmatpush1.xpose.msra.mxu0 0.0
    %2499 = vmatprep.subr.mxu0 0.0
    %2500 = vmatpush1.xpose.msra.mxu0 0.0
    %2501 = vmatprep.subr.mxu0 0.0
    %2502 = vmatpush1.xpose.msra.mxu0 0.0
    %2503 = vmatprep.subr.mxu0 0.0
    %2504 = vmatpush1.xpose.msra.mxu0 0.0
    %2505 = vmatprep.subr.mxu0 0.0
    %2506 = vmatpush1.xpose.msra.mxu0 0.0
    %2507 = vmatprep.subr.mxu0 0.0
    %2508 = vmatpush1.xpose.msra.mxu0 0.0
    %2509 = vmatprep.subr.mxu0 0.0
    %2510 = vmatpush1.xpose.msra.mxu0 0.0
    %2511 = vmatprep.subr.mxu0 0.0
    %2512 = vmatpush1.xpose.msra.mxu0 0.0
    %2513 = vmatprep.subr.mxu0 0.0
    %2514 = vmatpush1.xpose.msra.mxu0 0.0
    %2515 = vmatprep.subr.mxu0 0.0
    %2516 = vmatpush1.xpose.msra.mxu0 0.0
    %2517 = vmatprep.subr.mxu0 0.0
    %2518 = vmatpush1.xpose.msra.mxu0 0.0
    %2519 = vmatprep.subr.mxu0 0.0
    %2520 = vmatpush1.xpose.msra.mxu0 0.0
    %2521 = vmatprep.subr.mxu0 0.0
    %2522 = vmatpush1.xpose.msra.mxu0 0.0
    %2523 = vmatprep.subr.mxu0 0.0
    %2524 = vmatpush1.xpose.msra.mxu0 0.0
    %2525 = vmatprep.mubr.f32.mxu0 0.0
    %2526 = vmatmul.mubr.f32.gmra.mrb[0].mxu0 %v2459
    %v2527 = vpop.f32.mrb[0].mxu0
    %v2528 = vadd.f32 0.0, %v2527
    %v2529 = vpop.f32.mrb[0].mxu0
    %2530 = vdwg.mxu0
    %v2531 = vlaneseq
    %v2532 = vshrl.u32 %v2531, 7
    %v2533 = vsub.s32 0, %v2532
    %v2534 = vrot.slane %v2455, %v2533
    %v2535 = vmul.f32 %v2177, %v2534
    %v2536 = vmul.f32 %v2178, %v2534
    %v2537 = vlaneseq
    %v2538 = vshrl.u32 %v2537, 7
    %v2539 = vsub.s32 0, %v2538
    %v2540 = vrot.slane %v2528, %v2539
    %v2541 = vadd.f32 %v2535, %v2540
    %v2542 = vadd.f32 %v2536, %v2540
    %v2543 = vmax.f32 %v2541, 0.0
    %v2544 = vmax.f32 %v2542, 0.0
    %2547 = vrot.lane.b32.xlu0 %v2543, 8
    %v2548 = vpop.permute.xlu0 %2547
    %2549 = vrot.lane.b32.xlu0 %v2544, 8
    %v2550 = vpop.permute.xlu0 %2549
    %vm2553 = vcmask 523328
    %2554 = vst.msk [vmem:[#allocation4 + $0x2] sm:$0xff] %vm2553, %v2548
    %vm2555 = vcmask 521280
    %2556 = vst.msk [vmem:[#allocation4 + $0xa] sm:$0x3f] %vm2555, %v2550
    %v2557 = vld [vmem:[#allocation4] sm:$0xff]
    %v2558 = vld [vmem:[#allocation4 + $0x8] sm:$0xff]
    %v2559 = vld [vmem:[%s13] sm:$0xff]
    %v2560 = vld [vmem:[%s13 + $0x8] sm:$0xff]
    %v2561 = vld [vmem:[%s13 + $0x10] sm:$0xff]
    %v2562 = vld [vmem:[%s13 + $0x18] sm:$0xff]
    %v2563 = vld [vmem:[%s13 + $0x20] sm:$0xff]
    %v2564 = vld [vmem:[%s13 + $0x28] sm:$0xff]
    %v2565 = vld [vmem:[%s13 + $0x30] sm:$0xff]
    %v2566 = vld [vmem:[%s13 + $0x38] sm:$0xff]
    %v2567 = vld [vmem:[%s13 + $0x40] sm:$0xff]
    %v2568 = vld [vmem:[#allocation4 + $0x2] sm:$0xff]
    %v2569 = vld [vmem:[#allocation4 + $0xa] sm:$0xff]
    %s2570 = scalar_lea.vmem %s13, 72
    %v2571 = vld [vmem:[%s2570] sm:$0xff]
    %v2572 = vld [vmem:[%s2570 + $0x8] sm:$0xff]
    %v2573 = vld [vmem:[%s2570 + $0x10] sm:$0xff]
    %v2574 = vld [vmem:[%s2570 + $0x18] sm:$0xff]
    %v2575 = vld [vmem:[%s2570 + $0x20] sm:$0xff]
    %v2576 = vld [vmem:[%s2570 + $0x28] sm:$0xff]
    %v2577 = vld [vmem:[%s2570 + $0x30] sm:$0xff]
    %v2578 = vld [vmem:[%s2570 + $0x38] sm:$0xff]
    %v2579 = vld [vmem:[%s2570 + $0x40] sm:$0xff]
    %v2581 = vsel %vm1921, %v2568, 0
    %v2584 = vsel %vm1921, %v2569, 0
    %2586 = vmatprep.subr.mxu0 0.0
    %2587 = vmatpush1.msra.mxu0 %v2571
    %2588 = vmatprep.subr.mxu0 0.0
    %2589 = vmatpush1.msra.mxu0 %v2572
    %2590 = vmatprep.subr.mxu0 0.0
    %2591 = vmatpush1.msra.mxu0 %v2573
    %2592 = vmatprep.subr.mxu0 0.0
    %2593 = vmatpush1.msra.mxu0 %v2574
    %2594 = vmatprep.subr.mxu0 0.0
    %2595 = vmatpush1.msra.mxu0 %v2575
    %2596 = vmatprep.subr.mxu0 0.0
    %2597 = vmatpush1.msra.mxu0 %v2576
    %2598 = vmatprep.subr.mxu0 0.0
    %2599 = vmatpush1.msra.mxu0 %v2577
    %2600 = vmatprep.subr.mxu0 0.0
    %2601 = vmatpush1.msra.mxu0 %v2578
    %2602 = vmatprep.subr.mxu0 0.0
    %2603 = vmatpush1.msra.mxu0 %v2579
    %2604 = vmatprep.subr.mxu0 0.0
    %2605 = vmatpush1.msra.mxu0 0.0
    %2606 = vmatprep.subr.mxu0 0.0
    %2607 = vmatpush1.msra.mxu0 0.0
    %2608 = vmatprep.subr.mxu0 0.0
    %2609 = vmatpush1.msra.mxu0 0.0
    %2610 = vmatprep.subr.mxu0 0.0
    %2611 = vmatpush1.msra.mxu0 0.0
    %2612 = vmatprep.subr.mxu0 0.0
    %2613 = vmatpush1.msra.mxu0 0.0
    %2614 = vmatprep.subr.mxu0 0.0
    %2615 = vmatpush1.msra.mxu0 0.0
    %2616 = vmatprep.subr.mxu0 0.0
    %2617 = vmatpush1.msra.mxu0 0.0
    %2618 = vmatprep.subr.mxu0 0.0
    %2619 = vmatpush1.msra.mxu0 0.0
    %2620 = vmatprep.subr.mxu0 0.0
    %2621 = vmatpush1.msra.mxu0 0.0
    %2622 = vmatprep.subr.mxu0 0.0
    %2623 = vmatpush1.msra.mxu0 0.0
    %2624 = vmatprep.subr.mxu0 0.0
    %2625 = vmatpush1.msra.mxu0 0.0
    %2626 = vmatprep.subr.mxu0 0.0
    %2627 = vmatpush1.msra.mxu0 0.0
    %2628 = vmatprep.subr.mxu0 0.0
    %2629 = vmatpush1.msra.mxu0 0.0
    %2630 = vmatprep.subr.mxu0 0.0
    %2631 = vmatpush1.msra.mxu0 0.0
    %2632 = vmatprep.subr.mxu0 0.0
    %2633 = vmatpush1.msra.mxu0 0.0
    %2634 = vmatprep.subr.mxu0 0.0
    %2635 = vmatpush1.msra.mxu0 0.0
    %2636 = vmatprep.subr.mxu0 0.0
    %2637 = vmatpush1.msra.mxu0 0.0
    %2638 = vmatprep.subr.mxu0 0.0
    %2639 = vmatpush1.msra.mxu0 0.0
    %2640 = vmatprep.subr.mxu0 0.0
    %2641 = vmatpush1.msra.mxu0 0.0
    %2642 = vmatprep.subr.mxu0 0.0
    %2643 = vmatpush1.msra.mxu0 0.0
    %2644 = vmatprep.subr.mxu0 0.0
    %2645 = vmatpush1.msra.mxu0 0.0
    %2646 = vmatprep.subr.mxu0 0.0
    %2647 = vmatpush1.msra.mxu0 0.0
    %2648 = vmatprep.subr.mxu0 0.0
    %2649 = vmatpush1.msra.mxu0 0.0
    %2650 = vmatprep.mubr.f32.mxu0 0.0
    %2651 = vmatmul.mubr.f32.gmra.mrb[0].mxu0 %v2581
    %v2652 = vpop.f32.mrb[0].mxu0
    %v2653 = vadd.f32 0.0, %v2652
    %v2654 = vpop.f32.mrb[0].mxu0
    %2655 = vmatprep.mubr.f32.mxu0 0.0
    %2656 = vmatmul.mubr.f32.gmra.mrb[0].mxu0 %v2584
    %v2657 = vpop.f32.mrb[0].mxu0
    %v2658 = vadd.f32 0.0, %v2657
    %v2659 = vpop.f32.mrb[0].mxu0
    %2660 = vdwg.mxu0
    %v2662 = vsel %vm1921, %v2557, 0
    %v2665 = vsel %vm1921, %v2558, 0
    %2667 = vmatprep.subr.mxu0 0.0
    %2668 = vmatpush1.msra.mxu0 %v2559
    %2669 = vmatprep.subr.mxu0 0.0
    %2670 = vmatpush1.msra.mxu0 %v2560
    %2671 = vmatprep.subr.mxu0 0.0
    %2672 = vmatpush1.msra.mxu0 %v2561
    %2673 = vmatprep.subr.mxu0 0.0
    %2674 = vmatpush1.msra.mxu0 %v2562
    %2675 = vmatprep.subr.mxu0 0.0
    %2676 = vmatpush1.msra.mxu0 %v2563
    %2677 = vmatprep.subr.mxu0 0.0
    %2678 = vmatpush1.msra.mxu0 %v2564
    %2679 = vmatprep.subr.mxu0 0.0
    %2680 = vmatpush1.msra.mxu0 %v2565
    %2681 = vmatprep.subr.mxu0 0.0
    %2682 = vmatpush1.msra.mxu0 %v2566
    %2683 = vmatprep.subr.mxu0 0.0
    %2684 = vmatpush1.msra.mxu0 %v2567
    %2685 = vmatprep.subr.mxu0 0.0
    %2686 = vmatpush1.msra.mxu0 0.0
    %2687 = vmatprep.subr.mxu0 0.0
    %2688 = vmatpush1.msra.mxu0 0.0
    %2689 = vmatprep.subr.mxu0 0.0
    %2690 = vmatpush1.msra.mxu0 0.0
    %2691 = vmatprep.subr.mxu0 0.0
    %2692 = vmatpush1.msra.mxu0 0.0
    %2693 = vmatprep.subr.mxu0 0.0
    %2694 = vmatpush1.msra.mxu0 0.0
    %2695 = vmatprep.subr.mxu0 0.0
    %2696 = vmatpush1.msra.mxu0 0.0
    %2697 = vmatprep.subr.mxu0 0.0
    %2698 = vmatpush1.msra.mxu0 0.0
    %2699 = vmatprep.subr.mxu0 0.0
    %2700 = vmatpush1.msra.mxu0 0.0
    %2701 = vmatprep.subr.mxu0 0.0
    %2702 = vmatpush1.msra.mxu0 0.0
    %2703 = vmatprep.subr.mxu0 0.0
    %2704 = vmatpush1.msra.mxu0 0.0
    %2705 = vmatprep.subr.mxu0 0.0
    %2706 = vmatpush1.msra.mxu0 0.0
    %2707 = vmatprep.subr.mxu0 0.0
    %2708 = vmatpush1.msra.mxu0 0.0
    %2709 = vmatprep.subr.mxu0 0.0
    %2710 = vmatpush1.msra.mxu0 0.0
    %2711 = vmatprep.subr.mxu0 0.0
    %2712 = vmatpush1.msra.mxu0 0.0
    %2713 = vmatprep.subr.mxu0 0.0
    %2714 = vmatpush1.msra.mxu0 0.0
    %2715 = vmatprep.subr.mxu0 0.0
    %2716 = vmatpush1.msra.mxu0 0.0
    %2717 = vmatprep.subr.mxu0 0.0
    %2718 = vmatpush1.msra.mxu0 0.0
    %2719 = vmatprep.subr.mxu0 0.0
    %2720 = vmatpush1.msra.mxu0 0.0
    %2721 = vmatprep.subr.mxu0 0.0
    %2722 = vmatpush1.msra.mxu0 0.0
    %2723 = vmatprep.subr.mxu0 0.0
    %2724 = vmatpush1.msra.mxu0 0.0
    %2725 = vmatprep.subr.mxu0 0.0
    %2726 = vmatpush1.msra.mxu0 0.0
    %2727 = vmatprep.subr.mxu0 0.0
    %2728 = vmatpush1.msra.mxu0 0.0
    %2729 = vmatprep.subr.mxu0 0.0
    %2730 = vmatpush1.msra.mxu0 0.0
    %2731 = vmatprep.mubr.f32.mxu0 0.0
    %2732 = vmatmul.mubr.f32.gmra.mrb[0].mxu0 %v2662
    %v2733 = vpop.f32.mrb[0].mxu0
    %v2734 = vadd.f32 %v2653, %v2733
    %v2735 = vpop.f32.mrb[0].mxu0
    %2736 = vmatprep.mubr.f32.mxu0 0.0
    %2737 = vmatmul.mubr.f32.gmra.mrb[0].mxu0 %v2665
    %v2738 = vpop.f32.mrb[0].mxu0
    %v2739 = vadd.f32 %v2658, %v2738
    %v2740 = vpop.f32.mrb[0].mxu0
    %2741 = vdwg.mxu0
    %v2742 = vld [vmem:[%s14] sm:$0xff]
    %v2743 = vld [vmem:[%s14 + $0x8] sm:$0xff]
    %v2744 = vld [vmem:[%s14 + $0x10] sm:$0xff]
    %v2745 = vld [vmem:[%s14 + $0x18] sm:$0xff]
    %v2746 = vld [vmem:[%s14 + $0x20] sm:$0xff]
    %v2747 = vld [vmem:[%s14 + $0x28] sm:$0xff]
    %v2748 = vld [vmem:[%s14 + $0x30] sm:$0xff]
    %v2749 = vld [vmem:[%s14 + $0x38] sm:$0xff]
    %v2750 = vld [vmem:[%s14 + $0x40] sm:$0xff]
    %v2751 = vld [vmem:[%s14 + $0x48] sm:$0xff]
    %v2752 = vld [vmem:[%s14 + $0x50] sm:$0xff]
    %v2753 = vld [vmem:[%s14 + $0x58] sm:$0xff]
    %v2754 = vld [vmem:[%s14 + $0x60] sm:$0xff]
    %v2755 = vld [vmem:[%s14 + $0x68] sm:$0xff]
    %v2756 = vld [vmem:[%s14 + $0x70] sm:$0xff]
    %v2757 = vld [vmem:[%s14 + $0x78] sm:$0xff]
    %v2758 = vadd.f32 %v2734, %v2739
    %v2759 = vrot.slane %v2758, 4
    %v2760 = vadd.f32 %v2758, %v2759
    %v2761 = vrot.slane %v2760, 2
    %v2762 = vadd.f32 %v2760, %v2761
    %v2763 = vrot.slane %v2762, 1
    %v2764 = vadd.f32 %v2762, %v2763
    %2765 = vmatprep.subr.mxu0 0.0
    %2766 = vmatpush1.msra.mxu0 %v2742
    %2767 = vmatprep.subr.mxu0 0.0
    %2768 = vmatpush1.msra.mxu0 %v2743
    %2769 = vmatprep.subr.mxu0 0.0
    %2770 = vmatpush1.msra.mxu0 %v2744
    %2771 = vmatprep.subr.mxu0 0.0
    %2772 = vmatpush1.msra.mxu0 %v2745
    %2773 = vmatprep.subr.mxu0 0.0
    %2774 = vmatpush1.msra.mxu0 %v2746
    %2775 = vmatprep.subr.mxu0 0.0
    %2776 = vmatpush1.msra.mxu0 %v2747
    %2777 = vmatprep.subr.mxu0 0.0
    %2778 = vmatpush1.msra.mxu0 %v2748
    %2779 = vmatprep.subr.mxu0 0.0
    %2780 = vmatpush1.msra.mxu0 %v2749
    %2781 = vmatprep.subr.mxu0 0.0
    %2782 = vmatpush1.msra.mxu0 %v2750
    %2783 = vmatprep.subr.mxu0 0.0
    %2784 = vmatpush1.msra.mxu0 %v2751
    %2785 = vmatprep.subr.mxu0 0.0
    %2786 = vmatpush1.msra.mxu0 %v2752
    %2787 = vmatprep.subr.mxu0 0.0
    %2788 = vmatpush1.msra.mxu0 %v2753
    %2789 = vmatprep.subr.mxu0 0.0
    %2790 = vmatpush1.msra.mxu0 %v2754
    %2791 = vmatprep.subr.mxu0 0.0
    %2792 = vmatpush1.msra.mxu0 %v2755
    %2793 = vmatprep.subr.mxu0 0.0
    %2794 = vmatpush1.msra.mxu0 %v2756
    %2795 = vmatprep.subr.mxu0 0.0
    %2796 = vmatpush1.msra.mxu0 %v2757
    %2797 = vmatprep.subr.mxu0 0.0
    %2798 = vmatpush1.msra.mxu0 0.0
    %2799 = vmatprep.subr.mxu0 0.0
    %2800 = vmatpush1.msra.mxu0 0.0
    %2801 = vmatprep.subr.mxu0 0.0
    %2802 = vmatpush1.msra.mxu0 0.0
    %2803 = vmatprep.subr.mxu0 0.0
    %2804 = vmatpush1.msra.mxu0 0.0
    %2805 = vmatprep.subr.mxu0 0.0
    %2806 = vmatpush1.msra.mxu0 0.0
    %2807 = vmatprep.subr.mxu0 0.0
    %2808 = vmatpush1.msra.mxu0 0.0
    %2809 = vmatprep.subr.mxu0 0.0
    %2810 = vmatpush1.msra.mxu0 0.0
    %2811 = vmatprep.subr.mxu0 0.0
    %2812 = vmatpush1.msra.mxu0 0.0
    %2813 = vmatprep.subr.mxu0 0.0
    %2814 = vmatpush1.msra.mxu0 0.0
    %2815 = vmatprep.subr.mxu0 0.0
    %2816 = vmatpush1.msra.mxu0 0.0
    %2817 = vmatprep.subr.mxu0 0.0
    %2818 = vmatpush1.msra.mxu0 0.0
    %2819 = vmatprep.subr.mxu0 0.0
    %2820 = vmatpush1.msra.mxu0 0.0
    %2821 = vmatprep.subr.mxu0 0.0
    %2822 = vmatpush1.msra.mxu0 0.0
    %2823 = vmatprep.subr.mxu0 0.0
    %2824 = vmatpush1.msra.mxu0 0.0
    %2825 = vmatprep.subr.mxu0 0.0
    %2826 = vmatpush1.msra.mxu0 0.0
    %2827 = vmatprep.subr.mxu0 0.0
    %2828 = vmatpush1.msra.mxu0 0.0
    %2829 = vmatprep.mubr.f32.mxu0 0.0
    %2830 = vmatmul.mubr.f32.gmra.mrb[0].mxu0 %v2764
    %v2831 = vpop.f32.mrb[0].mxu0
    %v2832 = vadd.f32 0.0, %v2831
    %v2833 = vpop.f32.mrb[0].mxu0
    %2834 = vdwg.mxu0
    %v2835 = vmul.f32 %v2734, %v2734
    %v2836 = vmul.f32 %v2739, %v2739
    %v2837 = vadd.f32 %v2835, %v2836
    %v2838 = vrot.slane %v2837, 4
    %v2839 = vadd.f32 %v2837, %v2838
    %v2840 = vrot.slane %v2839, 2
    %v2841 = vadd.f32 %v2839, %v2840
    %v2842 = vrot.slane %v2841, 1
    %v2843 = vadd.f32 %v2841, %v2842
    %2844 = vmatprep.subr.mxu0 0.0
    %2845 = vmatpush1.msra.mxu0 %v2742
    %2846 = vmatprep.subr.mxu0 0.0
    %2847 = vmatpush1.msra.mxu0 %v2743
    %2848 = vmatprep.subr.mxu0 0.0
    %2849 = vmatpush1.msra.mxu0 %v2744
    %2850 = vmatprep.subr.mxu0 0.0
    %2851 = vmatpush1.msra.mxu0 %v2745
    %2852 = vmatprep.subr.mxu0 0.0
    %2853 = vmatpush1.msra.mxu0 %v2746
    %2854 = vmatprep.subr.mxu0 0.0
    %2855 = vmatpush1.msra.mxu0 %v2747
    %2856 = vmatprep.subr.mxu0 0.0
    %2857 = vmatpush1.msra.mxu0 %v2748
    %2858 = vmatprep.subr.mxu0 0.0
    %2859 = vmatpush1.msra.mxu0 %v2749
    %2860 = vmatprep.subr.mxu0 0.0
    %2861 = vmatpush1.msra.mxu0 %v2750
    %2862 = vmatprep.subr.mxu0 0.0
    %2863 = vmatpush1.msra.mxu0 %v2751
    %2864 = vmatprep.subr.mxu0 0.0
    %2865 = vmatpush1.msra.mxu0 %v2752
    %2866 = vmatprep.subr.mxu0 0.0
    %2867 = vmatpush1.msra.mxu0 %v2753
    %2868 = vmatprep.subr.mxu0 0.0
    %2869 = vmatpush1.msra.mxu0 %v2754
    %2870 = vmatprep.subr.mxu0 0.0
    %2871 = vmatpush1.msra.mxu0 %v2755
    %2872 = vmatprep.subr.mxu0 0.0
    %2873 = vmatpush1.msra.mxu0 %v2756
    %2874 = vmatprep.subr.mxu0 0.0
    %2875 = vmatpush1.msra.mxu0 %v2757
    %2876 = vmatprep.subr.mxu0 0.0
    %2877 = vmatpush1.msra.mxu0 0.0
    %2878 = vmatprep.subr.mxu0 0.0
    %2879 = vmatpush1.msra.mxu0 0.0
    %2880 = vmatprep.subr.mxu0 0.0
    %2881 = vmatpush1.msra.mxu0 0.0
    %2882 = vmatprep.subr.mxu0 0.0
    %2883 = vmatpush1.msra.mxu0 0.0
    %2884 = vmatprep.subr.mxu0 0.0
    %2885 = vmatpush1.msra.mxu0 0.0
    %2886 = vmatprep.subr.mxu0 0.0
    %2887 = vmatpush1.msra.mxu0 0.0
    %2888 = vmatprep.subr.mxu0 0.0
    %2889 = vmatpush1.msra.mxu0 0.0
    %2890 = vmatprep.subr.mxu0 0.0
    %2891 = vmatpush1.msra.mxu0 0.0
    %2892 = vmatprep.subr.mxu0 0.0
    %2893 = vmatpush1.msra.mxu0 0.0
    %2894 = vmatprep.subr.mxu0 0.0
    %2895 = vmatpush1.msra.mxu0 0.0
    %2896 = vmatprep.subr.mxu0 0.0
    %2897 = vmatpush1.msra.mxu0 0.0
    %2898 = vmatprep.subr.mxu0 0.0
    %2899 = vmatpush1.msra.mxu0 0.0
    %2900 = vmatprep.subr.mxu0 0.0
    %2901 = vmatpush1.msra.mxu0 0.0
    %2902 = vmatprep.subr.mxu0 0.0
    %2903 = vmatpush1.msra.mxu0 0.0
    %2904 = vmatprep.subr.mxu0 0.0
    %2905 = vmatpush1.msra.mxu0 0.0
    %2906 = vmatprep.subr.mxu0 0.0
    %2907 = vmatpush1.msra.mxu0 0.0
    %2908 = vmatprep.mubr.f32.mxu0 0.0
    %2909 = vmatmul.mubr.f32.gmra.mrb[0].mxu0 %v2843
    %v2910 = vpop.f32.mrb[0].mxu0
    %v2911 = vadd.f32 0.0, %v2910
    %v2912 = vpop.f32.mrb[0].mxu0
    %2913 = vdwg.mxu0
    %v2914 = vrcp.pop 512.0
    %v2915 = vmul.f32 %v2832, %v2914
    %v2916 = vmul.f32 %v2911, %v2914
    %v2917 = vmul.f32 %v2915, %v2915
    %v2918 = vsub.f32 %v2916, %v2917
    %v2919 = vmax.f32 %v2918, 0.0
    %v2920 = vadd.f32 %v2919, 1e-05
    %v2921 = vrsqrt.pop %v2920
    %v2922 = vld [vmem:[%s15] sm:$0x1]
    %v2923 = vmul.f32 %v2922, %v2921
    %v2924 = vld [vmem:[%s16] sm:$0x1]
    %v2925 = vmul.f32 %v2915, %v2923
    %v2926 = vsub.f32 %v2924, %v2925
    %vm2927 = vcmask 31744
    %v2929 = vsel %vm2927, %v2923, 0
    %v2932 = vsel %vm2927, %v2742, 0
    %v2935 = vsel %vm2927, %v2743, 0
    %v2938 = vsel %vm2927, %v2744, 0
    %v2941 = vsel %vm2927, %v2745, 0
    %v2944 = vsel %vm2927, %v2746, 0
    %v2947 = vsel %vm2927, %v2747, 0
    %v2950 = vsel %vm2927, %v2748, 0
    %v2953 = vsel %vm2927, %v2749, 0
    %v2956 = vsel %vm2927, %v2750, 0
    %v2959 = vsel %vm2927, %v2751, 0
    %v2962 = vsel %vm2927, %v2752, 0
    %v2965 = vsel %vm2927, %v2753, 0
    %v2968 = vsel %vm2927, %v2754, 0
    %v2971 = vsel %vm2927, %v2755, 0
    %v2974 = vsel %vm2927, %v2756, 0
    %v2977 = vsel %vm2927, %v2757, 0
    %2979 = vmatprep.subr.mxu0 0.0
    %2980 = vmatpush1.xpose.msra.mxu0 %v2932
    %2981 = vmatprep.subr.mxu0 0.0
    %2982 = vmatpush1.xpose.msra.mxu0 %v2935
    %2983 = vmatprep.subr.mxu0 0.0
    %2984 = vmatpush1.xpose.msra.mxu0 %v2938
    %2985 = vmatprep.subr.mxu0 0.0
    %2986 = vmatpush1.xpose.msra.mxu0 %v2941
    %2987 = vmatprep.subr.mxu0 0.0
    %2988 = vmatpush1.xpose.msra.mxu0 %v2944
    %2989 = vmatprep.subr.mxu0 0.0
    %2990 = vmatpush1.xpose.msra.mxu0 %v2947
    %2991 = vmatprep.subr.mxu0 0.0
    %2992 = vmatpush1.xpose.msra.mxu0 %v2950
    %2993 = vmatprep.subr.mxu0 0.0
    %2994 = vmatpush1.xpose.msra.mxu0 %v2953
    %2995 = vmatprep.subr.mxu0 0.0
    %2996 = vmatpush1.xpose.msra.mxu0 %v2956
    %2997 = vmatprep.subr.mxu0 0.0
    %2998 = vmatpush1.xpose.msra.mxu0 %v2959
    %2999 = vmatprep.subr.mxu0 0.0
    %3000 = vmatpush1.xpose.msra.mxu0 %v2962
    %3001 = vmatprep.subr.mxu0 0.0
    %3002 = vmatpush1.xpose.msra.mxu0 %v2965
    %3003 = vmatprep.subr.mxu0 0.0
    %3004 = vmatpush1.xpose.msra.mxu0 %v2968
    %3005 = vmatprep.subr.mxu0 0.0
    %3006 = vmatpush1.xpose.msra.mxu0 %v2971
    %3007 = vmatprep.subr.mxu0 0.0
    %3008 = vmatpush1.xpose.msra.mxu0 %v2974
    %3009 = vmatprep.subr.mxu0 0.0
    %3010 = vmatpush1.xpose.msra.mxu0 %v2977
    %3011 = vmatprep.subr.mxu0 0.0
    %3012 = vmatpush1.xpose.msra.mxu0 0.0
    %3013 = vmatprep.subr.mxu0 0.0
    %3014 = vmatpush1.xpose.msra.mxu0 0.0
    %3015 = vmatprep.subr.mxu0 0.0
    %3016 = vmatpush1.xpose.msra.mxu0 0.0
    %3017 = vmatprep.subr.mxu0 0.0
    %3018 = vmatpush1.xpose.msra.mxu0 0.0
    %3019 = vmatprep.subr.mxu0 0.0
    %3020 = vmatpush1.xpose.msra.mxu0 0.0
    %3021 = vmatprep.subr.mxu0 0.0
    %3022 = vmatpush1.xpose.msra.mxu0 0.0
    %3023 = vmatprep.subr.mxu0 0.0
    %3024 = vmatpush1.xpose.msra.mxu0 0.0
    %3025 = vmatprep.subr.mxu0 0.0
    %3026 = vmatpush1.xpose.msra.mxu0 0.0
    %3027 = vmatprep.subr.mxu0 0.0
    %3028 = vmatpush1.xpose.msra.mxu0 0.0
    %3029 = vmatprep.subr.mxu0 0.0
    %3030 = vmatpush1.xpose.msra.mxu0 0.0
    %3031 = vmatprep.subr.mxu0 0.0
    %3032 = vmatpush1.xpose.msra.mxu0 0.0
    %3033 = vmatprep.subr.mxu0 0.0
    %3034 = vmatpush1.xpose.msra.mxu0 0.0
    %3035 = vmatprep.subr.mxu0 0.0
    %3036 = vmatpush1.xpose.msra.mxu0 0.0
    %3037 = vmatprep.subr.mxu0 0.0
    %3038 = vmatpush1.xpose.msra.mxu0 0.0
    %3039 = vmatprep.subr.mxu0 0.0
    %3040 = vmatpush1.xpose.msra.mxu0 0.0
    %3041 = vmatprep.subr.mxu0 0.0
    %3042 = vmatpush1.xpose.msra.mxu0 0.0
    %3043 = vmatprep.mubr.f32.mxu0 0.0
    %3044 = vmatmul.mubr.f32.gmra.mrb[0].mxu0 %v2929
    %v3045 = vpop.f32.mrb[0].mxu0
    %v3046 = vadd.f32 0.0, %v3045
    %v3047 = vpop.f32.mrb[0].mxu0
    %3048 = vdwg.mxu0
    %v3050 = vsel %vm2927, %v2926, 0
    %3052 = vmatprep.subr.mxu0 0.0
    %3053 = vmatpush1.xpose.msra.mxu0 %v2932
    %3054 = vmatprep.subr.mxu0 0.0
    %3055 = vmatpush1.xpose.msra.mxu0 %v2935
    %3056 = vmatprep.subr.mxu0 0.0
    %3057 = vmatpush1.xpose.msra.mxu0 %v2938
    %3058 = vmatprep.subr.mxu0 0.0
    %3059 = vmatpush1.xpose.msra.mxu0 %v2941
    %3060 = vmatprep.subr.mxu0 0.0
    %3061 = vmatpush1.xpose.msra.mxu0 %v2944
    %3062 = vmatprep.subr.mxu0 0.0
    %3063 = vmatpush1.xpose.msra.mxu0 %v2947
    %3064 = vmatprep.subr.mxu0 0.0
    %3065 = vmatpush1.xpose.msra.mxu0 %v2950
    %3066 = vmatprep.subr.mxu0 0.0
    %3067 = vmatpush1.xpose.msra.mxu0 %v2953
    %3068 = vmatprep.subr.mxu0 0.0
    %3069 = vmatpush1.xpose.msra.mxu0 %v2956
    %3070 = vmatprep.subr.mxu0 0.0
    %3071 = vmatpush1.xpose.msra.mxu0 %v2959
    %3072 = vmatprep.subr.mxu0 0.0
    %3073 = vmatpush1.xpose.msra.mxu0 %v2962
    %3074 = vmatprep.subr.mxu0 0.0
    %3075 = vmatpush1.xpose.msra.mxu0 %v2965
    %3076 = vmatprep.subr.mxu0 0.0
    %3077 = vmatpush1.xpose.msra.mxu0 %v2968
    %3078 = vmatprep.subr.mxu0 0.0
    %3079 = vmatpush1.xpose.msra.mxu0 %v2971
    %3080 = vmatprep.subr.mxu0 0.0
    %3081 = vmatpush1.xpose.msra.mxu0 %v2974
    %3082 = vmatprep.subr.mxu0 0.0
    %3083 = vmatpush1.xpose.msra.mxu0 %v2977
    %3084 = vmatprep.subr.mxu0 0.0
    %3085 = vmatpush1.xpose.msra.mxu0 0.0
    %3086 = vmatprep.subr.mxu0 0.0
    %3087 = vmatpush1.xpose.msra.mxu0 0.0
    %3088 = vmatprep.subr.mxu0 0.0
    %3089 = vmatpush1.xpose.msra.mxu0 0.0
    %3090 = vmatprep.subr.mxu0 0.0
    %3091 = vmatpush1.xpose.msra.mxu0 0.0
    %3092 = vmatprep.subr.mxu0 0.0
    %3093 = vmatpush1.xpose.msra.mxu0 0.0
    %3094 = vmatprep.subr.mxu0 0.0
    %3095 = vmatpush1.xpose.msra.mxu0 0.0
    %3096 = vmatprep.subr.mxu0 0.0
    %3097 = vmatpush1.xpose.msra.mxu0 0.0
    %3098 = vmatprep.subr.mxu0 0.0
    %3099 = vmatpush1.xpose.msra.mxu0 0.0
    %3100 = vmatprep.subr.mxu0 0.0
    %3101 = vmatpush1.xpose.msra.mxu0 0.0
    %3102 = vmatprep.subr.mxu0 0.0
    %3103 = vmatpush1.xpose.msra.mxu0 0.0
    %3104 = vmatprep.subr.mxu0 0.0
    %3105 = vmatpush1.xpose.msra.mxu0 0.0
    %3106 = vmatprep.subr.mxu0 0.0
    %3107 = vmatpush1.xpose.msra.mxu0 0.0
    %3108 = vmatprep.subr.mxu0 0.0
    %3109 = vmatpush1.xpose.msra.mxu0 0.0
    %3110 = vmatprep.subr.mxu0 0.0
    %3111 = vmatpush1.xpose.msra.mxu0 0.0
    %3112 = vmatprep.subr.mxu0 0.0
    %3113 = vmatpush1.xpose.msra.mxu0 0.0
    %3114 = vmatprep.subr.mxu0 0.0
    %3115 = vmatpush1.xpose.msra.mxu0 0.0
    %3116 = vmatprep.mubr.f32.mxu0 0.0
    %3117 = vmatmul.mubr.f32.gmra.mrb[0].mxu0 %v3050
    %v3118 = vpop.f32.mrb[0].mxu0
    %v3119 = vadd.f32 0.0, %v3118
    %v3120 = vpop.f32.mrb[0].mxu0
    %3121 = vdwg.mxu0
    %v3122 = vlaneseq
    %v3123 = vshrl.u32 %v3122, 7
    %v3124 = vsub.s32 0, %v3123
    %v3125 = vrot.slane %v3046, %v3124
    %v3126 = vmul.f32 %v2734, %v3125
    %v3127 = vmul.f32 %v2739, %v3125
    %v3128 = vlaneseq
    %v3129 = vshrl.u32 %v3128, 7
    %v3130 = vsub.s32 0, %v3129
    %v3131 = vrot.slane %v3119, %v3130
    %v3132 = vadd.f32 %v3126, %v3131
    %v3133 = vadd.f32 %v3127, %v3131
    %v3134 = vmax.f32 %v3132, 0.0
    %v3135 = vmax.f32 %v3133, 0.0
    %3136 = vst [vmem:[%s19] sm:$0xff] %v3134
    %3137 = vst [vmem:[%s19 + $0x8] sm:$0xff] %v3135
    // Predicated region
    $region78: #{vqvae_forward.1} parent=1 // pred_check
      _
    $region79: #{vqvae_forward.1} parent=1 // pred_check_branch
      %3139 = sbr.rel (0) target = $region81
    $region80: #{vqvae_forward.1} parent=1 // pred_region
      _
    $region81: #{vqvae_forward.1} parent=1 // pred_fallthru
      _
    // Predicated region
    $region82: #{vqvae_forward.1} parent=1 // pred_check
      _
    $region83: #{vqvae_forward.1} parent=1 // pred_check_branch
      %3141 = sbr.rel (0) target = $region85
    $region84: #{vqvae_forward.1} parent=1 // pred_region
      _
    $region85: #{vqvae_forward.1} parent=1 // pred_fallthru
      _
    // Predicated region
    $region86: #{vqvae_forward.1} parent=1 // pred_check
      _
    $region87: #{vqvae_forward.1} parent=1 // pred_check_branch
      %3143 = sbr.rel (0) target = $region89
    $region88: #{vqvae_forward.1} parent=1 // pred_region
      %s3145 = ssub.s32 16, 16
      %3146 = vsyncadd [#allocation6], %s3145
      %3149 = dma.smem_to_hbm [#allocation5], 16, %s21, [#allocation6]
    $region89: #{vqvae_forward.1} parent=1 // pred_fallthru
      _
    // Predicated region
    $region90: #{vqvae_forward.1} parent=1 // pred_check
      _
    $region91: #{vqvae_forward.1} parent=1 // pred_check_branch
      %3151 = sbr.rel (0) target = $region93
    $region92: #{vqvae_forward.1} parent=1 // pred_region
      _
    $region93: #{vqvae_forward.1} parent=1 // pred_fallthru
      _
    // Predicated region
    $region94: #{vqvae_forward.1} parent=1 // pred_check
      _
    $region95: #{vqvae_forward.1} parent=1 // pred_check_branch
      %3153 = sbr.rel (0) target = $region97
    $region96: #{vqvae_forward.1} parent=1 // pred_region
      _
    $region97: #{vqvae_forward.1} parent=1 // pred_fallthru
      _
    // Predicated region
    $region98: #{vqvae_forward.1} parent=1 // pred_check
      _
    $region99: #{vqvae_forward.1} parent=1 // pred_check_branch
      %3155 = sbr.rel (0) target = $region101
    $region100: #{vqvae_forward.1} parent=1 // pred_region
      %3156 = dma.done [#allocation6], 16
    $region101: #{vqvae_forward.1} parent=1 // pred_fallthru
      _
    %3157 = sfence
    %3158 = vsyncpa [#allocation6], 1

</llo_original>
